<compile_context>
chip_gen: v6e
topology: v6e:2x2x1
jax: 0.10.0
libtpu: 0.0.40
codegen_flags: <defaults>
</compile_context>

<pallas_src>
import functools
import math

import jax
import jax.numpy as jnp
from jax.experimental import pallas as pl
from jax.experimental.pallas import tpu as pltpu

# ------------------------------ model hyper-params ------------------------------
IN_CHANNELS = 16
HIDDEN_CHANNELS = 32
OUT_CHANNELS = 32
HEADS = 4
NUM_CLASSES = 3
_LIN_PAD = 128                      # lane-dense classifier output width

NODE_TYPES = ["user", "movie"]
EDGE_TYPES = [
    ("user", "rates", "movie"),      # user  -> movie
    ("movie", "rev_rates", "user"),  # movie -> user
    ("user", "follows", "user"),     # user  -> user
]

_VMEM = pl.BlockSpec(memory_space=pltpu.MemorySpace.VMEM)


def _round8(n):
    return -(-n // 8) * 8


# ------------------------------ weight-slab layout (static) ------------------------------
_SLAB_COLS = 5 * HIDDEN_CHANNELS    # widest block: conv1 user fused projection (160)

_WEIGHT_BLOCKS = [
    # name,     rows,            cols
    ("w1_u", IN_CHANNELS, 5 * HIDDEN_CHANNELS),   # [q | kA_rates | vM_rates | kA_fol | vM_fol]
    ("b1_u", 1, 5 * HIDDEN_CHANNELS),
    ("w1_m", IN_CHANNELS, 3 * HIDDEN_CHANNELS),   # [q | kA_rev | vM_rev]
    ("b1_m", 1, 3 * HIDDEN_CHANNELS),
    ("wa1_u", HIDDEN_CHANNELS, HIDDEN_CHANNELS),
    ("ba1_u", 1, HIDDEN_CHANNELS),
    ("wa1_m", HIDDEN_CHANNELS, HIDDEN_CHANNELS),
    ("ba1_m", 1, HIDDEN_CHANNELS),
    ("w2_u", HIDDEN_CHANNELS, 3 * OUT_CHANNELS),  # [q | kA_fol | vM_fol]
    ("b2_u", 1, 3 * OUT_CHANNELS),
    ("w2_m", HIDDEN_CHANNELS, 2 * OUT_CHANNELS),  # [kA_rev | vM_rev]   (dead movie-q dropped)
    ("b2_m", 1, 2 * OUT_CHANNELS),
    ("wa2_u", OUT_CHANNELS, OUT_CHANNELS),        # pre-scaled by sigmoid(skip_user)
    ("ba2_u", 1, OUT_CHANNELS),
    ("res_u", 1, OUT_CHANNELS),                   # (1 - sigmoid(skip_user)) residual row
    ("wlin", OUT_CHANNELS, _LIN_PAD),             # zero-padded to 128 lanes
    ("blin", 1, _LIN_PAD),
]


def _build_layout():
    layout, r = {}, 0
    for name, nr, nc in _WEIGHT_BLOCKS:
        layout[name] = (r, nr, nc)
        r += _round8(nr)             # every block starts sublane-aligned
    return layout, r


_LAYOUT, _SLAB_ROWS = _build_layout()


def _mask_layout(n_user, n_movie):
    """Row offsets of the three dense masks inside the packed mask slab."""
    r_rate = 0                                   # (n_movie, n_user)
    r_rev = r_rate + _round8(n_movie)            # (n_user, n_movie)
    r_fol = r_rev + _round8(n_user)              # (n_user, n_user)
    rows = r_fol + _round8(n_user)
    cols = max(n_user, n_movie)
    return r_rate, r_rev, r_fol, rows, cols


# ---------------------------------- in-kernel helpers ----------------------------------
def _erf(x):
    # Abramowitz & Stegun 7.1.26 polynomial erf, |abs err| < 1.5e-7 (exact-GELU grade).
    ax = jnp.abs(x)
    t = 1.0 / (1.0 + 0.3275911 * ax)
    poly = ((((1.061405429 * t - 1.453152027) * t + 1.421413741) * t
             - 0.284496736) * t + 0.254829592) * t
    y = 1.0 - poly * jnp.exp(-ax * ax)
    return jnp.where(x >= 0, y, -y)


def _gelu(x):
    # Matches torch.nn.functional.gelu default (exact erf formulation).
    return 0.5 * x * (1.0 + _erf(x * jnp.float32(1.0 / math.sqrt(2.0))))


def _edge_message(q_dst, kt, vt, bias, rowmask, *, heads, head_dim):
    """Masked dense HGT attention for one edge type, all heads.

    q_dst   (Nd, H*D)  destination queries
    kt      (Ns, H*D)  source keys   (relation transform + p_rel/sqrt(D) pre-folded)
    vt      (Ns, H*D)  source values (relation transform pre-folded)
    bias    (Nd, Ns)   additive mask: 0 on edges, -1e30 elsewhere (hoisted, reused)
    rowmask (Nd, 1)    1.0 if the destination has >=1 incoming edge, else 0.0
    returns (Nd, H*D)  aggregated messages (lane-dense accumulation, no concatenate)
    """
    hd = heads * head_dim
    lane = jax.lax.broadcasted_iota(jnp.int32, (1, hd), 1)   # head-id per column

    out = None
    for h in range(heads):   # static unroll; each iter = 2 tiny MXU matmuls + softmax
        sl = slice(h * head_dim, (h + 1) * head_dim)
        s = jax.lax.dot_general(q_dst[:, sl], kt[:, sl], (((1,), (1,)), ((), ())),
                                preferred_element_type=jnp.float32)
        s = s + bias
        e = jnp.exp(s - jnp.max(s, axis=-1, keepdims=True))   # non-edges underflow to 0
        denom = jnp.sum(e, axis=-1, keepdims=True)
        alpha = e * pl.reciprocal(jnp.maximum(denom, jnp.float32(1e-30)), approx=True)
        # keep only head h's value columns so the (Nd,Ns)@(Ns,H*D) matmul writes the
        # head-h output slab in place -> lane-dense accumulation, no concat / narrow store
        in_head = (lane >= h * head_dim) & (lane < (h + 1) * head_dim)
        vt_h = jnp.where(in_head, vt, jnp.float32(0.0))
        contrib = jnp.dot(alpha, vt_h, preferred_element_type=jnp.float32)
        out = contrib if out is None else out + contrib
    # edgeless destinations get a uniform softmax above -> zero them with one row multiply
    return out * rowmask


# ---------------------------------- the fused kernel ----------------------------------
def _hgt_forward_kernel(xu_ref, xm_ref, mask_ref, w_ref, o_ref,
                        *, heads, head_dim, n_user, n_movie):
    c = heads * head_dim
    r_rate, r_rev, r_fol, _, _ = _mask_layout(n_user, n_movie)

    def blk(name):
        r, nr, nc = _LAYOUT[name]
        return w_ref[r:r + nr, 0:nc]

    xu = xu_ref[...]
    xm = xm_ref[...]

    mk_rate = mask_ref[r_rate:r_rate + n_movie, 0:n_user]   # user  -rates->     movie
    mk_rev = mask_ref[r_rev:r_rev + n_user, 0:n_movie]      # movie -rev_rates-> user
    mk_fol = mask_ref[r_fol:r_fol + n_user, 0:n_user]       # user  -follows->   user

    # Hoisted per-mask work (mk_rev / mk_fol are reused by both conv layers).
    def prep(mk):
        bias = (mk - jnp.float32(1.0)) * jnp.float32(1e30)                  # 0 / -1e30
        rowm = jnp.minimum(jnp.sum(mk, axis=-1, keepdims=True), jnp.float32(1.0))
        return bias, rowm

    bias_rate, rm_rate = prep(mk_rate)
    bias_rev, rm_rev = prep(mk_rev)
    bias_fol, rm_fol = prep(mk_fol)

    msg = functools.partial(_edge_message, heads=heads, head_dim=head_dim)

    # -------- conv1 (16 -> 32): one fused projection matmul per node type;
    # relation k/v transforms are already folded into the weights.
    pu = jnp.dot(xu, blk("w1_u"), preferred_element_type=jnp.float32) + blk("b1_u")
    pm = jnp.dot(xm, blk("w1_m"), preferred_element_type=jnp.float32) + blk("b1_m")
    q_u = pu[:, 0:c]
    kA_rate, vM_rate = pu[:, c:2 * c], pu[:, 2 * c:3 * c]
    kA_fol1, vM_fol1 = pu[:, 3 * c:4 * c], pu[:, 4 * c:5 * c]
    q_m = pm[:, 0:c]
    kA_rev1, vM_rev1 = pm[:, c:2 * c], pm[:, 2 * c:3 * c]

    msg_m = msg(q_m, kA_rate, vM_rate, bias_rate, rm_rate)
    msg_u = (msg(q_u, kA_rev1, vM_rev1, bias_rev, rm_rev)
             + msg(q_u, kA_fol1, vM_fol1, bias_fol, rm_fol))       # group='sum'

    # a_lin(gelu(msg)); no skip in conv1 (in 16 != out 32); then F.relu between convs
    hu = jnp.dot(_gelu(msg_u), blk("wa1_u"), preferred_element_type=jnp.float32) + blk("ba1_u")
    hm = jnp.dot(_gelu(msg_m), blk("wa1_m"), preferred_element_type=jnp.float32) + blk("ba1_m")
    hu = jnp.maximum(hu, jnp.float32(0.0))
    hm = jnp.maximum(hm, jnp.float32(0.0))

    # -------- conv2 (32 -> 32). Only the 'user' output feeds the classifier, so the
    # movie-destination branch is dead code and skipped; the movie projection is [k|v] only.
    pu2 = jnp.dot(hu, blk("w2_u"), preferred_element_type=jnp.float32) + blk("b2_u")
    pm2 = jnp.dot(hm, blk("w2_m"), preferred_element_type=jnp.float32) + blk("b2_m")
    q_u2 = pu2[:, 0:c]
    kA_fol2, vM_fol2 = pu2[:, c:2 * c], pu2[:, 2 * c:3 * c]
    kA_rev2, vM_rev2 = pm2[:, 0:c], pm2[:, c:2 * c]

    msg_u2 = (msg(q_u2, kA_rev2, vM_rev2, bias_rev, rm_rev)
              + msg(q_u2, kA_fol2, vM_fol2, bias_fol, rm_fol))

    # sigmoid(skip) is folded into wa2_u / ba2_u at pack time; res_u = (1 - gate).
    ou = jnp.dot(_gelu(msg_u2), blk("wa2_u"), preferred_element_type=jnp.float32) + blk("ba2_u")
    ou = ou + blk("res_u") * hu

    # -------- classifier on 'user' nodes (lane-dense, zero-padded to 128 columns)
    o_ref[...] = (jnp.dot(ou, blk("wlin"), preferred_element_type=jnp.float32)
                  + blk("blin"))


# ---------------------------------- parameter packing ----------------------------------
def _block_diag(mats):
    h = len(mats)
    d = mats[0].shape[0]
    out = jnp.zeros((h * d, h * d), jnp.float32)
    for i, m in enumerate(mats):
        out = out.at[i * d:(i + 1) * d, i * d:(i + 1) * d].set(m)
    return out


def _rel_block_diag(p, et, heads, head_dim):
    a = p["a_rel"][et] * (p["p_rel"][et] / math.sqrt(head_dim))[:, None, None]
    A = _block_diag([a[h] for h in range(heads)])            # p_rel/sqrt(D) folded in
    M = _block_diag([p["m_rel"][et][h] for h in range(heads)])
    return A, M


def _fused_projection(p, node_type, src_edge_types, heads, head_dim, with_q=True):
    """Fold the per-edge-type relation transforms into the k/v projection weights and
    concatenate into one [in, width] matmul:  [q | Wk*A_e | Wv*M_e | ...]."""
    wq, bq = p["q_lin"][node_type]
    wk, bk = p["k_lin"][node_type]
    wv, bv = p["v_lin"][node_type]
    w_parts, b_parts = [], []
    if with_q:
        w_parts.append(wq.T)
        b_parts.append(bq)
    for et in src_edge_types:
        A, M = _rel_block_diag(p, et, heads, head_dim)
        w_parts.append(wk.T @ A)
        b_parts.append(bk @ A)
        w_parts.append(wv.T @ M)
        b_parts.append(bv @ M)
    return jnp.concatenate(w_parts, axis=1), jnp.concatenate(b_parts)


def pack_model_params(params):
    """Pack every weight of the model into ONE f32 slab (one HBM->VMEM DMA)."""
    H, D = HEADS, OUT_CHANNELS // HEADS
    c1, c2 = params["conv1"], params["conv2"]
    rates, rev, fol = EDGE_TYPES

    vals = {}
    vals["w1_u"], vals["b1_u"] = _fused_projection(c1, "user", [rates, fol], H, D)
    vals["w1_m"], vals["b1_m"] = _fused_projection(c1, "movie", [rev], H, D)
    vals["wa1_u"], vals["ba1_u"] = c1["a_lin"]["user"][0].T, c1["a_lin"]["user"][1]
    vals["wa1_m"], vals["ba1_m"] = c1["a_lin"]["movie"][0].T, c1["a_lin"]["movie"][1]

    vals["w2_u"], vals["b2_u"] = _fused_projection(c2, "user", [fol], H, D)
    vals["w2_m"], vals["b2_m"] = _fused_projection(c2, "movie", [rev], H, D, with_q=False)

    gate = jax.nn.sigmoid(c2["skip"]["user"])                 # constant per call
    vals["wa2_u"] = gate * c2["a_lin"]["user"][0].T
    vals["ba2_u"] = gate * c2["a_lin"]["user"][1]
    vals["res_u"] = (1.0 - gate) * jnp.ones((OUT_CHANNELS,), jnp.float32)

    wlin, blin = params["lin"]
    vals["wlin"] = jnp.zeros((OUT_CHANNELS, _LIN_PAD), jnp.float32).at[:, :NUM_CLASSES].set(wlin.T)
    vals["blin"] = jnp.zeros((_LIN_PAD,), jnp.float32).at[:NUM_CLASSES].set(blin)

    slab = jnp.zeros((_SLAB_ROWS, _SLAB_COLS), jnp.float32)
    for name, (r, nr, nc) in _LAYOUT.items():
        v = jnp.asarray(vals[name], jnp.float32).reshape(nr, nc)
        slab = slab.at[r:r + nr, 0:nc].set(v)
    return slab


def pack_masks(mask_dict, n_user, n_movie):
    """Pack the three dense adjacency masks into ONE slab (one HBM->VMEM DMA)."""
    r_rate, r_rev, r_fol, rows, cols = _mask_layout(n_user, n_movie)
    slab = jnp.zeros((rows, cols), jnp.float32)
    slab = slab.at[r_rate:r_rate + n_movie, 0:n_user].set(mask_dict[EDGE_TYPES[0]].astype(jnp.float32))
    slab = slab.at[r_rev:r_rev + n_user, 0:n_movie].set(mask_dict[EDGE_TYPES[1]].astype(jnp.float32))
    slab = slab.at[r_fol:r_fol + n_user, 0:n_user].set(mask_dict[EDGE_TYPES[2]].astype(jnp.float32))
    return slab


# ---------------------------------- forward (single pallas_call) ----------------------------------
@jax.jit
def hgt_model_forward(weight_slab, x_user, x_movie, mask_slab):
    n_user, n_movie = x_user.shape[0], x_movie.shape[0]
    kernel = functools.partial(_hgt_forward_kernel, heads=HEADS,
                               head_dim=OUT_CHANNELS // HEADS,
                               n_user=n_user, n_movie=n_movie)
    # TODO(synk): for large graphs, add a 1-D grid over destination-node tiles with
    # dimension_semantics=("parallel",) (both v7x TensorCores), BlockSpec-tile the dense
    # masks/logits against v7x's 64 MiB VMEM / 32 MiB scoped default (raise via
    # CompilerParams(vmem_limit_bytes=...)), and keep the source-tile reduction as a
    # trailing "arbitrary" axis with a resident output accumulator.
    out = pl.pallas_call(
        kernel,
        out_shape=jax.ShapeDtypeStruct((n_user, _LIN_PAD), jnp.float32),
        in_specs=[_VMEM, _VMEM, _VMEM, _VMEM],
        out_specs=_VMEM,
    )(x_user.astype(jnp.float32), x_movie.astype(jnp.float32), mask_slab, weight_slab)
    return out[:, :NUM_CLASSES]          # lane-dense store in-kernel; trim padding outside


# ---------------------------------- deterministic init ----------------------------------
def _init_linear(key, fin, fout):
    k1, k2 = jax.random.split(key)
    w = jax.random.normal(k1, (fout, fin), jnp.float32) * (1.0 / math.sqrt(fin))
    b = jax.random.normal(k2, (fout,), jnp.float32) * 0.01
    return (w, b)


def init_hgt_conv(key, in_channels, out_channels, heads):
    d = out_channels // heads
    p = {"k_lin": {}, "q_lin": {}, "v_lin": {}, "a_lin": {}, "skip": {},
         "a_rel": {}, "m_rel": {}, "p_rel": {}}
    for nt in NODE_TYPES:
        key, k1, k2, k3, k4 = jax.random.split(key, 5)
        p["k_lin"][nt] = _init_linear(k1, in_channels, out_channels)
        p["q_lin"][nt] = _init_linear(k2, in_channels, out_channels)
        p["v_lin"][nt] = _init_linear(k3, in_channels, out_channels)
        p["a_lin"][nt] = _init_linear(k4, out_channels, out_channels)
        p["skip"][nt] = jnp.float32(1.0)
    for et in EDGE_TYPES:
        key, k1, k2 = jax.random.split(key, 3)
        p["a_rel"][et] = jax.random.normal(k1, (heads, d, d), jnp.float32) * (1.0 / math.sqrt(d))
        p["m_rel"][et] = jax.random.normal(k2, (heads, d, d), jnp.float32) * (1.0 / math.sqrt(d))
        p["p_rel"][et] = jnp.ones((heads,), jnp.float32)
    return p, key


def init_model(key):
    conv1, key = init_hgt_conv(key, IN_CHANNELS, HIDDEN_CHANNELS, HEADS)
    conv2, key = init_hgt_conv(key, HIDDEN_CHANNELS, OUT_CHANNELS, HEADS)
    key, kl = jax.random.split(key)
    return {"conv1": conv1, "conv2": conv2,
            "lin": _init_linear(kl, OUT_CHANNELS, NUM_CLASSES)}


# ---------------------------------- main ----------------------------------
if __name__ == "__main__":
    num_nodes = {"user": 16, "movie": 8}

    key = jax.random.PRNGKey(0)
    key, kx_user, kx_movie = jax.random.split(key, 3)
    x_dict = {
        "user": jax.random.normal(kx_user, (num_nodes["user"], IN_CHANNELS), jnp.float32),
        "movie": jax.random.normal(kx_movie, (num_nodes["movie"], IN_CHANNELS), jnp.float32),
    }

    mask_dict = {}
    for et in EDGE_TYPES:
        src, _, dst = et
        key, km = jax.random.split(key)
        mask_dict[et] = jax.random.bernoulli(
            km, 0.4, (num_nodes[dst], num_nodes[src])
        ).astype(jnp.float32)

    params = init_model(jax.random.PRNGKey(42))
    weight_slab = pack_model_params(params)                       # packed once
    mask_slab = pack_masks(mask_dict, num_nodes["user"], num_nodes["movie"])

    out = hgt_model_forward(weight_slab, x_dict["user"], x_dict["movie"], mask_slab)
    out = jax.block_until_ready(out)

    assert out.shape == (num_nodes["user"], NUM_CLASSES), out.shape
    assert bool(jnp.all(jnp.isfinite(out)))
    print("KERNEL_OK")
</pallas_src>

<mosaic_0001>
module attributes {stable_mosaic.version = 11 : i64} {
  func.func @_hgt_forward_kernel(%arg0: memref<16x16xf32, #tpu.memory_space<vmem>>, %arg1: memref<8x16xf32, #tpu.memory_space<vmem>>, %arg2: memref<40x16xf32, #tpu.memory_space<vmem>>, %arg3: memref<296x160xf32, #tpu.memory_space<vmem>>, %arg4: memref<16x128xf32, #tpu.memory_space<vmem>>) attributes {dimension_semantics = [], scalar_prefetch = 0 : i64, scratch_operands = 0 : i64, tpu.core_type = #tpu.core_type<tc>} {
    %c0 = arith.constant 0 : index
    %c0_0 = arith.constant 0 : index
    %0 = vector.load %arg0[%c0, %c0_0] : memref<16x16xf32, #tpu.memory_space<vmem>>, vector<16x16xf32>
    %c0_1 = arith.constant 0 : index
    %c0_2 = arith.constant 0 : index
    %1 = vector.load %arg1[%c0_1, %c0_2] : memref<8x16xf32, #tpu.memory_space<vmem>>, vector<8x16xf32>
    %c0_3 = arith.constant 0 : index
    %c0_4 = arith.constant 0 : index
    %2 = vector.load %arg2[%c0_3, %c0_4] : memref<40x16xf32, #tpu.memory_space<vmem>>, vector<8x16xf32>
    %c8 = arith.constant 8 : index
    %c0_5 = arith.constant 0 : index
    %3 = vector.load %arg2[%c8, %c0_5] : memref<40x16xf32, #tpu.memory_space<vmem>>, vector<16x8xf32>
    %c24 = arith.constant 24 : index
    %c0_6 = arith.constant 0 : index
    %4 = vector.load %arg2[%c24, %c0_6] : memref<40x16xf32, #tpu.memory_space<vmem>>, vector<16x16xf32>
    %cst = arith.constant 1.000000e+00 : f32
    %5 = vector.broadcast %cst : f32 to vector<8x16xf32>
    %6 = arith.subf %2, %5 : vector<8x16xf32>
    %cst_7 = arith.constant 1.000000e+30 : f32
    %7 = vector.broadcast %cst_7 : f32 to vector<8x16xf32>
    %8 = arith.mulf %6, %7 : vector<8x16xf32>
    %cst_8 = arith.constant dense<0.000000e+00> : vector<8xf32>
    %9 = vector.multi_reduction <add>, %2, %cst_8 [1] : vector<8x16xf32> to vector<8xf32>
    %10 = vector.shape_cast %9 : vector<8xf32> to vector<8x1xf32>
    %cst_9 = arith.constant 1.000000e+00 : f32
    %11 = vector.broadcast %cst_9 : f32 to vector<8x1xf32>
    %12 = arith.minimumf %10, %11 : vector<8x1xf32>
    %cst_10 = arith.constant 1.000000e+00 : f32
    %13 = vector.broadcast %cst_10 : f32 to vector<16x8xf32>
    %14 = arith.subf %3, %13 : vector<16x8xf32>
    %cst_11 = arith.constant 1.000000e+30 : f32
    %15 = vector.broadcast %cst_11 : f32 to vector<16x8xf32>
    %16 = arith.mulf %14, %15 : vector<16x8xf32>
    %cst_12 = arith.constant dense<0.000000e+00> : vector<16xf32>
    %17 = vector.multi_reduction <add>, %3, %cst_12 [1] : vector<16x8xf32> to vector<16xf32>
    %18 = vector.shape_cast %17 : vector<16xf32> to vector<16x1xf32>
    %cst_13 = arith.constant 1.000000e+00 : f32
    %19 = vector.broadcast %cst_13 : f32 to vector<16x1xf32>
    %20 = arith.minimumf %18, %19 : vector<16x1xf32>
    %cst_14 = arith.constant 1.000000e+00 : f32
    %21 = vector.broadcast %cst_14 : f32 to vector<16x16xf32>
    %22 = arith.subf %4, %21 : vector<16x16xf32>
    %cst_15 = arith.constant 1.000000e+30 : f32
    %23 = vector.broadcast %cst_15 : f32 to vector<16x16xf32>
    %24 = arith.mulf %22, %23 : vector<16x16xf32>
    %cst_16 = arith.constant dense<0.000000e+00> : vector<16xf32>
    %25 = vector.multi_reduction <add>, %4, %cst_16 [1] : vector<16x16xf32> to vector<16xf32>
    %26 = vector.shape_cast %25 : vector<16xf32> to vector<16x1xf32>
    %cst_17 = arith.constant 1.000000e+00 : f32
    %27 = vector.broadcast %cst_17 : f32 to vector<16x1xf32>
    %28 = arith.minimumf %26, %27 : vector<16x1xf32>
    %c0_18 = arith.constant 0 : index
    %c0_19 = arith.constant 0 : index
    %29 = vector.load %arg3[%c0_18, %c0_19] : memref<296x160xf32, #tpu.memory_space<vmem>>, vector<16x160xf32>
    %cst_20 = arith.constant dense<0.000000e+00> : vector<16x160xf32>
    %30 = tpu.matmul %0, %29, %cst_20 {dimension_numbers = #tpu.dot_dimension_numbers<[1], [0], [0], [1], [0, 0, 1, 1], [], []>} : vector<16x16xf32>, vector<16x160xf32>, vector<16x160xf32> -> vector<16x160xf32>
    %c16 = arith.constant 16 : index
    %c0_21 = arith.constant 0 : index
    %31 = vector.load %arg3[%c16, %c0_21] : memref<296x160xf32, #tpu.memory_space<vmem>>, vector<1x160xf32>
    %32 = vector.broadcast %31 : vector<1x160xf32> to vector<16x160xf32>
    %33 = arith.addf %30, %32 : vector<16x160xf32>
    %c24_22 = arith.constant 24 : index
    %c0_23 = arith.constant 0 : index
    %34 = vector.load %arg3[%c24_22, %c0_23] : memref<296x160xf32, #tpu.memory_space<vmem>>, vector<16x96xf32>
    %cst_24 = arith.constant dense<0.000000e+00> : vector<8x96xf32>
    %35 = tpu.matmul %1, %34, %cst_24 {dimension_numbers = #tpu.dot_dimension_numbers<[1], [0], [0], [1], [0, 0, 1, 1], [], []>} : vector<8x16xf32>, vector<16x96xf32>, vector<8x96xf32> -> vector<8x96xf32>
    %c40 = arith.constant 40 : index
    %c0_25 = arith.constant 0 : index
    %36 = vector.load %arg3[%c40, %c0_25] : memref<296x160xf32, #tpu.memory_space<vmem>>, vector<1x96xf32>
    %37 = vector.broadcast %36 : vector<1x96xf32> to vector<8x96xf32>
    %38 = arith.addf %35, %37 : vector<8x96xf32>
    %39 = vector.extract_strided_slice %33 {offsets = [0, 0], sizes = [16, 32], strides = [1, 1]} : vector<16x160xf32> to vector<16x32xf32>
    %40 = vector.extract_strided_slice %33 {offsets = [0, 32], sizes = [16, 32], strides = [1, 1]} : vector<16x160xf32> to vector<16x32xf32>
    %41 = vector.extract_strided_slice %33 {offsets = [0, 64], sizes = [16, 32], strides = [1, 1]} : vector<16x160xf32> to vector<16x32xf32>
    %42 = vector.extract_strided_slice %33 {offsets = [0, 96], sizes = [16, 32], strides = [1, 1]} : vector<16x160xf32> to vector<16x32xf32>
    %43 = vector.extract_strided_slice %33 {offsets = [0, 128], sizes = [16, 32], strides = [1, 1]} : vector<16x160xf32> to vector<16x32xf32>
    %44 = vector.extract_strided_slice %38 {offsets = [0, 0], sizes = [8, 32], strides = [1, 1]} : vector<8x96xf32> to vector<8x32xf32>
    %45 = vector.extract_strided_slice %38 {offsets = [0, 32], sizes = [8, 32], strides = [1, 1]} : vector<8x96xf32> to vector<8x32xf32>
    %46 = vector.extract_strided_slice %38 {offsets = [0, 64], sizes = [8, 32], strides = [1, 1]} : vector<8x96xf32> to vector<8x32xf32>
    %47 = tpu.iota {dimensions = array<i32: 1>} : vector<1x32xi32>
    %48 = vector.extract_strided_slice %44 {offsets = [0, 0], sizes = [8, 8], strides = [1, 1]} : vector<8x32xf32> to vector<8x8xf32>
    %49 = vector.extract_strided_slice %40 {offsets = [0, 0], sizes = [16, 8], strides = [1, 1]} : vector<16x32xf32> to vector<16x8xf32>
    %cst_26 = arith.constant dense<0.000000e+00> : vector<8x16xf32>
    %50 = tpu.matmul %48, %49, %cst_26 {dimension_numbers = #tpu.dot_dimension_numbers<[1], [1], [0], [0], [0, 0, 1, 0], [], []>} : vector<8x8xf32>, vector<16x8xf32>, vector<8x16xf32> -> vector<8x16xf32>
    %51 = arith.addf %50, %8 : vector<8x16xf32>
    %cst_27 = arith.constant dense<0xFF800000> : vector<8xf32>
    %52 = vector.multi_reduction <maximumf>, %51, %cst_27 [1] : vector<8x16xf32> to vector<8xf32>
    %53 = vector.shape_cast %52 : vector<8xf32> to vector<8x1xf32>
    %54 = vector.broadcast %53 : vector<8x1xf32> to vector<8x16xf32>
    %55 = arith.subf %51, %54 : vector<8x16xf32>
    %56 = math.exp %55 : vector<8x16xf32>
    %cst_28 = arith.constant dense<0.000000e+00> : vector<8xf32>
    %57 = vector.multi_reduction <add>, %56, %cst_28 [1] : vector<8x16xf32> to vector<8xf32>
    %58 = vector.shape_cast %57 : vector<8xf32> to vector<8x1xf32>
    %cst_29 = arith.constant 1.000000e-30 : f32
    %59 = vector.broadcast %cst_29 : f32 to vector<8x1xf32>
    %60 = arith.maximumf %58, %59 : vector<8x1xf32>
    %61 = tpu.reciprocal %60 {approx = true} : vector<8x1xf32> -> vector<8x1xf32>
    %62 = vector.broadcast %61 : vector<8x1xf32> to vector<8x16xf32>
    %63 = arith.mulf %56, %62 : vector<8x16xf32>
    %c0_i32 = arith.constant 0 : i32
    %64 = vector.broadcast %c0_i32 : i32 to vector<1x32xi32>
    %65 = arith.cmpi sge, %47, %64 : vector<1x32xi32>
    %c8_i32 = arith.constant 8 : i32
    %66 = vector.broadcast %c8_i32 : i32 to vector<1x32xi32>
    %67 = arith.cmpi slt, %47, %66 : vector<1x32xi32>
    %68 = arith.andi %65, %67 : vector<1x32xi1>
    %cst_30 = arith.constant 0.000000e+00 : f32
    %69 = vector.shape_cast %68 : vector<1x32xi1> to vector<1x32xi1>
    %70 = vector.broadcast %69 : vector<1x32xi1> to vector<16x32xi1>
    %71 = vector.broadcast %cst_30 : f32 to vector<16x32xf32>
    %72 = arith.select %70, %41, %71 : vector<16x32xi1>, vector<16x32xf32>
    %cst_31 = arith.constant dense<0.000000e+00> : vector<8x32xf32>
    %73 = tpu.matmul %63, %72, %cst_31 {dimension_numbers = #tpu.dot_dimension_numbers<[1], [0], [0], [1], [0, 0, 1, 1], [], []>} : vector<8x16xf32>, vector<16x32xf32>, vector<8x32xf32> -> vector<8x32xf32>
    %74 = vector.extract_strided_slice %44 {offsets = [0, 8], sizes = [8, 8], strides = [1, 1]} : vector<8x32xf32> to vector<8x8xf32>
    %75 = vector.extract_strided_slice %40 {offsets = [0, 8], sizes = [16, 8], strides = [1, 1]} : vector<16x32xf32> to vector<16x8xf32>
    %cst_32 = arith.constant dense<0.000000e+00> : vector<8x16xf32>
    %76 = tpu.matmul %74, %75, %cst_32 {dimension_numbers = #tpu.dot_dimension_numbers<[1], [1], [0], [0], [0, 0, 1, 0], [], []>} : vector<8x8xf32>, vector<16x8xf32>, vector<8x16xf32> -> vector<8x16xf32>
    %77 = arith.addf %76, %8 : vector<8x16xf32>
    %cst_33 = arith.constant dense<0xFF800000> : vector<8xf32>
    %78 = vector.multi_reduction <maximumf>, %77, %cst_33 [1] : vector<8x16xf32> to vector<8xf32>
    %79 = vector.shape_cast %78 : vector<8xf32> to vector<8x1xf32>
    %80 = vector.broadcast %79 : vector<8x1xf32> to vector<8x16xf32>
    %81 = arith.subf %77, %80 : vector<8x16xf32>
    %82 = math.exp %81 : vector<8x16xf32>
    %cst_34 = arith.constant dense<0.000000e+00> : vector<8xf32>
    %83 = vector.multi_reduction <add>, %82, %cst_34 [1] : vector<8x16xf32> to vector<8xf32>
    %84 = vector.shape_cast %83 : vector<8xf32> to vector<8x1xf32>
    %cst_35 = arith.constant 1.000000e-30 : f32
    %85 = vector.broadcast %cst_35 : f32 to vector<8x1xf32>
    %86 = arith.maximumf %84, %85 : vector<8x1xf32>
    %87 = tpu.reciprocal %86 {approx = true} : vector<8x1xf32> -> vector<8x1xf32>
    %88 = vector.broadcast %87 : vector<8x1xf32> to vector<8x16xf32>
    %89 = arith.mulf %82, %88 : vector<8x16xf32>
    %c8_i32_36 = arith.constant 8 : i32
    %90 = vector.broadcast %c8_i32_36 : i32 to vector<1x32xi32>
    %91 = arith.cmpi sge, %47, %90 : vector<1x32xi32>
    %c16_i32 = arith.constant 16 : i32
    %92 = vector.broadcast %c16_i32 : i32 to vector<1x32xi32>
    %93 = arith.cmpi slt, %47, %92 : vector<1x32xi32>
    %94 = arith.andi %91, %93 : vector<1x32xi1>
    %cst_37 = arith.constant 0.000000e+00 : f32
    %95 = vector.shape_cast %94 : vector<1x32xi1> to vector<1x32xi1>
    %96 = vector.broadcast %95 : vector<1x32xi1> to vector<16x32xi1>
    %97 = vector.broadcast %cst_37 : f32 to vector<16x32xf32>
    %98 = arith.select %96, %41, %97 : vector<16x32xi1>, vector<16x32xf32>
    %cst_38 = arith.constant dense<0.000000e+00> : vector<8x32xf32>
    %99 = tpu.matmul %89, %98, %cst_38 {dimension_numbers = #tpu.dot_dimension_numbers<[1], [0], [0], [1], [0, 0, 1, 1], [], []>} : vector<8x16xf32>, vector<16x32xf32>, vector<8x32xf32> -> vector<8x32xf32>
    %100 = arith.addf %73, %99 : vector<8x32xf32>
    %101 = vector.extract_strided_slice %44 {offsets = [0, 16], sizes = [8, 8], strides = [1, 1]} : vector<8x32xf32> to vector<8x8xf32>
    %102 = vector.extract_strided_slice %40 {offsets = [0, 16], sizes = [16, 8], strides = [1, 1]} : vector<16x32xf32> to vector<16x8xf32>
    %cst_39 = arith.constant dense<0.000000e+00> : vector<8x16xf32>
    %103 = tpu.matmul %101, %102, %cst_39 {dimension_numbers = #tpu.dot_dimension_numbers<[1], [1], [0], [0], [0, 0, 1, 0], [], []>} : vector<8x8xf32>, vector<16x8xf32>, vector<8x16xf32> -> vector<8x16xf32>
    %104 = arith.addf %103, %8 : vector<8x16xf32>
    %cst_40 = arith.constant dense<0xFF800000> : vector<8xf32>
    %105 = vector.multi_reduction <maximumf>, %104, %cst_40 [1] : vector<8x16xf32> to vector<8xf32>
    %106 = vector.shape_cast %105 : vector<8xf32> to vector<8x1xf32>
    %107 = vector.broadcast %106 : vector<8x1xf32> to vector<8x16xf32>
    %108 = arith.subf %104, %107 : vector<8x16xf32>
    %109 = math.exp %108 : vector<8x16xf32>
    %cst_41 = arith.constant dense<0.000000e+00> : vector<8xf32>
    %110 = vector.multi_reduction <add>, %109, %cst_41 [1] : vector<8x16xf32> to vector<8xf32>
    %111 = vector.shape_cast %110 : vector<8xf32> to vector<8x1xf32>
    %cst_42 = arith.constant 1.000000e-30 : f32
    %112 = vector.broadcast %cst_42 : f32 to vector<8x1xf32>
    %113 = arith.maximumf %111, %112 : vector<8x1xf32>
    %114 = tpu.reciprocal %113 {approx = true} : vector<8x1xf32> -> vector<8x1xf32>
    %115 = vector.broadcast %114 : vector<8x1xf32> to vector<8x16xf32>
    %116 = arith.mulf %109, %115 : vector<8x16xf32>
    %c16_i32_43 = arith.constant 16 : i32
    %117 = vector.broadcast %c16_i32_43 : i32 to vector<1x32xi32>
    %118 = arith.cmpi sge, %47, %117 : vector<1x32xi32>
    %c24_i32 = arith.constant 24 : i32
    %119 = vector.broadcast %c24_i32 : i32 to vector<1x32xi32>
    %120 = arith.cmpi slt, %47, %119 : vector<1x32xi32>
    %121 = arith.andi %118, %120 : vector<1x32xi1>
    %cst_44 = arith.constant 0.000000e+00 : f32
    %122 = vector.shape_cast %121 : vector<1x32xi1> to vector<1x32xi1>
    %123 = vector.broadcast %122 : vector<1x32xi1> to vector<16x32xi1>
    %124 = vector.broadcast %cst_44 : f32 to vector<16x32xf32>
    %125 = arith.select %123, %41, %124 : vector<16x32xi1>, vector<16x32xf32>
    %cst_45 = arith.constant dense<0.000000e+00> : vector<8x32xf32>
    %126 = tpu.matmul %116, %125, %cst_45 {dimension_numbers = #tpu.dot_dimension_numbers<[1], [0], [0], [1], [0, 0, 1, 1], [], []>} : vector<8x16xf32>, vector<16x32xf32>, vector<8x32xf32> -> vector<8x32xf32>
    %127 = arith.addf %100, %126 : vector<8x32xf32>
    %128 = vector.extract_strided_slice %44 {offsets = [0, 24], sizes = [8, 8], strides = [1, 1]} : vector<8x32xf32> to vector<8x8xf32>
    %129 = vector.extract_strided_slice %40 {offsets = [0, 24], sizes = [16, 8], strides = [1, 1]} : vector<16x32xf32> to vector<16x8xf32>
    %cst_46 = arith.constant dense<0.000000e+00> : vector<8x16xf32>
    %130 = tpu.matmul %128, %129, %cst_46 {dimension_numbers = #tpu.dot_dimension_numbers<[1], [1], [0], [0], [0, 0, 1, 0], [], []>} : vector<8x8xf32>, vector<16x8xf32>, vector<8x16xf32> -> vector<8x16xf32>
    %131 = arith.addf %130, %8 : vector<8x16xf32>
    %cst_47 = arith.constant dense<0xFF800000> : vector<8xf32>
    %132 = vector.multi_reduction <maximumf>, %131, %cst_47 [1] : vector<8x16xf32> to vector<8xf32>
    %133 = vector.shape_cast %132 : vector<8xf32> to vector<8x1xf32>
    %134 = vector.broadcast %133 : vector<8x1xf32> to vector<8x16xf32>
    %135 = arith.subf %131, %134 : vector<8x16xf32>
    %136 = math.exp %135 : vector<8x16xf32>
    %cst_48 = arith.constant dense<0.000000e+00> : vector<8xf32>
    %137 = vector.multi_reduction <add>, %136, %cst_48 [1] : vector<8x16xf32> to vector<8xf32>
    %138 = vector.shape_cast %137 : vector<8xf32> to vector<8x1xf32>
    %cst_49 = arith.constant 1.000000e-30 : f32
    %139 = vector.broadcast %cst_49 : f32 to vector<8x1xf32>
    %140 = arith.maximumf %138, %139 : vector<8x1xf32>
    %141 = tpu.reciprocal %140 {approx = true} : vector<8x1xf32> -> vector<8x1xf32>
    %142 = vector.broadcast %141 : vector<8x1xf32> to vector<8x16xf32>
    %143 = arith.mulf %136, %142 : vector<8x16xf32>
    %c24_i32_50 = arith.constant 24 : i32
    %144 = vector.broadcast %c24_i32_50 : i32 to vector<1x32xi32>
    %145 = arith.cmpi sge, %47, %144 : vector<1x32xi32>
    %c32_i32 = arith.constant 32 : i32
    %146 = vector.broadcast %c32_i32 : i32 to vector<1x32xi32>
    %147 = arith.cmpi slt, %47, %146 : vector<1x32xi32>
    %148 = arith.andi %145, %147 : vector<1x32xi1>
    %cst_51 = arith.constant 0.000000e+00 : f32
    %149 = vector.shape_cast %148 : vector<1x32xi1> to vector<1x32xi1>
    %150 = vector.broadcast %149 : vector<1x32xi1> to vector<16x32xi1>
    %151 = vector.broadcast %cst_51 : f32 to vector<16x32xf32>
    %152 = arith.select %150, %41, %151 : vector<16x32xi1>, vector<16x32xf32>
    %cst_52 = arith.constant dense<0.000000e+00> : vector<8x32xf32>
    %153 = tpu.matmul %143, %152, %cst_52 {dimension_numbers = #tpu.dot_dimension_numbers<[1], [0], [0], [1], [0, 0, 1, 1], [], []>} : vector<8x16xf32>, vector<16x32xf32>, vector<8x32xf32> -> vector<8x32xf32>
    %154 = arith.addf %127, %153 : vector<8x32xf32>
    %155 = vector.broadcast %12 : vector<8x1xf32> to vector<8x32xf32>
    %156 = arith.mulf %154, %155 : vector<8x32xf32>
    %157 = tpu.iota {dimensions = array<i32: 1>} : vector<1x32xi32>
    %158 = vector.extract_strided_slice %39 {offsets = [0, 0], sizes = [16, 8], strides = [1, 1]} : vector<16x32xf32> to vector<16x8xf32>
    %159 = vector.extract_strided_slice %45 {offsets = [0, 0], sizes = [8, 8], strides = [1, 1]} : vector<8x32xf32> to vector<8x8xf32>
    %cst_53 = arith.constant dense<0.000000e+00> : vector<16x8xf32>
    %160 = tpu.matmul %158, %159, %cst_53 {dimension_numbers = #tpu.dot_dimension_numbers<[1], [1], [0], [0], [0, 0, 1, 0], [], []>} : vector<16x8xf32>, vector<8x8xf32>, vector<16x8xf32> -> vector<16x8xf32>
    %161 = arith.addf %160, %16 : vector<16x8xf32>
    %cst_54 = arith.constant dense<0xFF800000> : vector<16xf32>
    %162 = vector.multi_reduction <maximumf>, %161, %cst_54 [1] : vector<16x8xf32> to vector<16xf32>
    %163 = vector.shape_cast %162 : vector<16xf32> to vector<16x1xf32>
    %164 = vector.broadcast %163 : vector<16x1xf32> to vector<16x8xf32>
    %165 = arith.subf %161, %164 : vector<16x8xf32>
    %166 = math.exp %165 : vector<16x8xf32>
    %cst_55 = arith.constant dense<0.000000e+00> : vector<16xf32>
    %167 = vector.multi_reduction <add>, %166, %cst_55 [1] : vector<16x8xf32> to vector<16xf32>
    %168 = vector.shape_cast %167 : vector<16xf32> to vector<16x1xf32>
    %cst_56 = arith.constant 1.000000e-30 : f32
    %169 = vector.broadcast %cst_56 : f32 to vector<16x1xf32>
    %170 = arith.maximumf %168, %169 : vector<16x1xf32>
    %171 = tpu.reciprocal %170 {approx = true} : vector<16x1xf32> -> vector<16x1xf32>
    %172 = vector.broadcast %171 : vector<16x1xf32> to vector<16x8xf32>
    %173 = arith.mulf %166, %172 : vector<16x8xf32>
    %c0_i32_57 = arith.constant 0 : i32
    %174 = vector.broadcast %c0_i32_57 : i32 to vector<1x32xi32>
    %175 = arith.cmpi sge, %157, %174 : vector<1x32xi32>
    %c8_i32_58 = arith.constant 8 : i32
    %176 = vector.broadcast %c8_i32_58 : i32 to vector<1x32xi32>
    %177 = arith.cmpi slt, %157, %176 : vector<1x32xi32>
    %178 = arith.andi %175, %177 : vector<1x32xi1>
    %cst_59 = arith.constant 0.000000e+00 : f32
    %179 = vector.shape_cast %178 : vector<1x32xi1> to vector<1x32xi1>
    %180 = vector.broadcast %179 : vector<1x32xi1> to vector<8x32xi1>
    %181 = vector.broadcast %cst_59 : f32 to vector<8x32xf32>
    %182 = arith.select %180, %46, %181 : vector<8x32xi1>, vector<8x32xf32>
    %cst_60 = arith.constant dense<0.000000e+00> : vector<16x32xf32>
    %183 = tpu.matmul %173, %182, %cst_60 {dimension_numbers = #tpu.dot_dimension_numbers<[1], [0], [0], [1], [0, 0, 1, 1], [], []>} : vector<16x8xf32>, vector<8x32xf32>, vector<16x32xf32> -> vector<16x32xf32>
    %184 = vector.extract_strided_slice %39 {offsets = [0, 8], sizes = [16, 8], strides = [1, 1]} : vector<16x32xf32> to vector<16x8xf32>
    %185 = vector.extract_strided_slice %45 {offsets = [0, 8], sizes = [8, 8], strides = [1, 1]} : vector<8x32xf32> to vector<8x8xf32>
    %cst_61 = arith.constant dense<0.000000e+00> : vector<16x8xf32>
    %186 = tpu.matmul %184, %185, %cst_61 {dimension_numbers = #tpu.dot_dimension_numbers<[1], [1], [0], [0], [0, 0, 1, 0], [], []>} : vector<16x8xf32>, vector<8x8xf32>, vector<16x8xf32> -> vector<16x8xf32>
    %187 = arith.addf %186, %16 : vector<16x8xf32>
    %cst_62 = arith.constant dense<0xFF800000> : vector<16xf32>
    %188 = vector.multi_reduction <maximumf>, %187, %cst_62 [1] : vector<16x8xf32> to vector<16xf32>
    %189 = vector.shape_cast %188 : vector<16xf32> to vector<16x1xf32>
    %190 = vector.broadcast %189 : vector<16x1xf32> to vector<16x8xf32>
    %191 = arith.subf %187, %190 : vector<16x8xf32>
    %192 = math.exp %191 : vector<16x8xf32>
    %cst_63 = arith.constant dense<0.000000e+00> : vector<16xf32>
    %193 = vector.multi_reduction <add>, %192, %cst_63 [1] : vector<16x8xf32> to vector<16xf32>
    %194 = vector.shape_cast %193 : vector<16xf32> to vector<16x1xf32>
    %cst_64 = arith.constant 1.000000e-30 : f32
    %195 = vector.broadcast %cst_64 : f32 to vector<16x1xf32>
    %196 = arith.maximumf %194, %195 : vector<16x1xf32>
    %197 = tpu.reciprocal %196 {approx = true} : vector<16x1xf32> -> vector<16x1xf32>
    %198 = vector.broadcast %197 : vector<16x1xf32> to vector<16x8xf32>
    %199 = arith.mulf %192, %198 : vector<16x8xf32>
    %c8_i32_65 = arith.constant 8 : i32
    %200 = vector.broadcast %c8_i32_65 : i32 to vector<1x32xi32>
    %201 = arith.cmpi sge, %157, %200 : vector<1x32xi32>
    %c16_i32_66 = arith.constant 16 : i32
    %202 = vector.broadcast %c16_i32_66 : i32 to vector<1x32xi32>
    %203 = arith.cmpi slt, %157, %202 : vector<1x32xi32>
    %204 = arith.andi %201, %203 : vector<1x32xi1>
    %cst_67 = arith.constant 0.000000e+00 : f32
    %205 = vector.shape_cast %204 : vector<1x32xi1> to vector<1x32xi1>
    %206 = vector.broadcast %205 : vector<1x32xi1> to vector<8x32xi1>
    %207 = vector.broadcast %cst_67 : f32 to vector<8x32xf32>
    %208 = arith.select %206, %46, %207 : vector<8x32xi1>, vector<8x32xf32>
    %cst_68 = arith.constant dense<0.000000e+00> : vector<16x32xf32>
    %209 = tpu.matmul %199, %208, %cst_68 {dimension_numbers = #tpu.dot_dimension_numbers<[1], [0], [0], [1], [0, 0, 1, 1], [], []>} : vector<16x8xf32>, vector<8x32xf32>, vector<16x32xf32> -> vector<16x32xf32>
    %210 = arith.addf %183, %209 : vector<16x32xf32>
    %211 = vector.extract_strided_slice %39 {offsets = [0, 16], sizes = [16, 8], strides = [1, 1]} : vector<16x32xf32> to vector<16x8xf32>
    %212 = vector.extract_strided_slice %45 {offsets = [0, 16], sizes = [8, 8], strides = [1, 1]} : vector<8x32xf32> to vector<8x8xf32>
    %cst_69 = arith.constant dense<0.000000e+00> : vector<16x8xf32>
    %213 = tpu.matmul %211, %212, %cst_69 {dimension_numbers = #tpu.dot_dimension_numbers<[1], [1], [0], [0], [0, 0, 1, 0], [], []>} : vector<16x8xf32>, vector<8x8xf32>, vector<16x8xf32> -> vector<16x8xf32>
    %214 = arith.addf %213, %16 : vector<16x8xf32>
    %cst_70 = arith.constant dense<0xFF800000> : vector<16xf32>
    %215 = vector.multi_reduction <maximumf>, %214, %cst_70 [1] : vector<16x8xf32> to vector<16xf32>
    %216 = vector.shape_cast %215 : vector<16xf32> to vector<16x1xf32>
    %217 = vector.broadcast %216 : vector<16x1xf32> to vector<16x8xf32>
    %218 = arith.subf %214, %217 : vector<16x8xf32>
    %219 = math.exp %218 : vector<16x8xf32>
    %cst_71 = arith.constant dense<0.000000e+00> : vector<16xf32>
    %220 = vector.multi_reduction <add>, %219, %cst_71 [1] : vector<16x8xf32> to vector<16xf32>
    %221 = vector.shape_cast %220 : vector<16xf32> to vector<16x1xf32>
    %cst_72 = arith.constant 1.000000e-30 : f32
    %222 = vector.broadcast %cst_72 : f32 to vector<16x1xf32>
    %223 = arith.maximumf %221, %222 : vector<16x1xf32>
    %224 = tpu.reciprocal %223 {approx = true} : vector<16x1xf32> -> vector<16x1xf32>
    %225 = vector.broadcast %224 : vector<16x1xf32> to vector<16x8xf32>
    %226 = arith.mulf %219, %225 : vector<16x8xf32>
    %c16_i32_73 = arith.constant 16 : i32
    %227 = vector.broadcast %c16_i32_73 : i32 to vector<1x32xi32>
    %228 = arith.cmpi sge, %157, %227 : vector<1x32xi32>
    %c24_i32_74 = arith.constant 24 : i32
    %229 = vector.broadcast %c24_i32_74 : i32 to vector<1x32xi32>
    %230 = arith.cmpi slt, %157, %229 : vector<1x32xi32>
    %231 = arith.andi %228, %230 : vector<1x32xi1>
    %cst_75 = arith.constant 0.000000e+00 : f32
    %232 = vector.shape_cast %231 : vector<1x32xi1> to vector<1x32xi1>
    %233 = vector.broadcast %232 : vector<1x32xi1> to vector<8x32xi1>
    %234 = vector.broadcast %cst_75 : f32 to vector<8x32xf32>
    %235 = arith.select %233, %46, %234 : vector<8x32xi1>, vector<8x32xf32>
    %cst_76 = arith.constant dense<0.000000e+00> : vector<16x32xf32>
    %236 = tpu.matmul %226, %235, %cst_76 {dimension_numbers = #tpu.dot_dimension_numbers<[1], [0], [0], [1], [0, 0, 1, 1], [], []>} : vector<16x8xf32>, vector<8x32xf32>, vector<16x32xf32> -> vector<16x32xf32>
    %237 = arith.addf %210, %236 : vector<16x32xf32>
    %238 = vector.extract_strided_slice %39 {offsets = [0, 24], sizes = [16, 8], strides = [1, 1]} : vector<16x32xf32> to vector<16x8xf32>
    %239 = vector.extract_strided_slice %45 {offsets = [0, 24], sizes = [8, 8], strides = [1, 1]} : vector<8x32xf32> to vector<8x8xf32>
    %cst_77 = arith.constant dense<0.000000e+00> : vector<16x8xf32>
    %240 = tpu.matmul %238, %239, %cst_77 {dimension_numbers = #tpu.dot_dimension_numbers<[1], [1], [0], [0], [0, 0, 1, 0], [], []>} : vector<16x8xf32>, vector<8x8xf32>, vector<16x8xf32> -> vector<16x8xf32>
    %241 = arith.addf %240, %16 : vector<16x8xf32>
    %cst_78 = arith.constant dense<0xFF800000> : vector<16xf32>
    %242 = vector.multi_reduction <maximumf>, %241, %cst_78 [1] : vector<16x8xf32> to vector<16xf32>
    %243 = vector.shape_cast %242 : vector<16xf32> to vector<16x1xf32>
    %244 = vector.broadcast %243 : vector<16x1xf32> to vector<16x8xf32>
    %245 = arith.subf %241, %244 : vector<16x8xf32>
    %246 = math.exp %245 : vector<16x8xf32>
    %cst_79 = arith.constant dense<0.000000e+00> : vector<16xf32>
    %247 = vector.multi_reduction <add>, %246, %cst_79 [1] : vector<16x8xf32> to vector<16xf32>
    %248 = vector.shape_cast %247 : vector<16xf32> to vector<16x1xf32>
    %cst_80 = arith.constant 1.000000e-30 : f32
    %249 = vector.broadcast %cst_80 : f32 to vector<16x1xf32>
    %250 = arith.maximumf %248, %249 : vector<16x1xf32>
    %251 = tpu.reciprocal %250 {approx = true} : vector<16x1xf32> -> vector<16x1xf32>
    %252 = vector.broadcast %251 : vector<16x1xf32> to vector<16x8xf32>
    %253 = arith.mulf %246, %252 : vector<16x8xf32>
    %c24_i32_81 = arith.constant 24 : i32
    %254 = vector.broadcast %c24_i32_81 : i32 to vector<1x32xi32>
    %255 = arith.cmpi sge, %157, %254 : vector<1x32xi32>
    %c32_i32_82 = arith.constant 32 : i32
    %256 = vector.broadcast %c32_i32_82 : i32 to vector<1x32xi32>
    %257 = arith.cmpi slt, %157, %256 : vector<1x32xi32>
    %258 = arith.andi %255, %257 : vector<1x32xi1>
    %cst_83 = arith.constant 0.000000e+00 : f32
    %259 = vector.shape_cast %258 : vector<1x32xi1> to vector<1x32xi1>
    %260 = vector.broadcast %259 : vector<1x32xi1> to vector<8x32xi1>
    %261 = vector.broadcast %cst_83 : f32 to vector<8x32xf32>
    %262 = arith.select %260, %46, %261 : vector<8x32xi1>, vector<8x32xf32>
    %cst_84 = arith.constant dense<0.000000e+00> : vector<16x32xf32>
    %263 = tpu.matmul %253, %262, %cst_84 {dimension_numbers = #tpu.dot_dimension_numbers<[1], [0], [0], [1], [0, 0, 1, 1], [], []>} : vector<16x8xf32>, vector<8x32xf32>, vector<16x32xf32> -> vector<16x32xf32>
    %264 = arith.addf %237, %263 : vector<16x32xf32>
    %265 = vector.broadcast %20 : vector<16x1xf32> to vector<16x32xf32>
    %266 = arith.mulf %264, %265 : vector<16x32xf32>
    %267 = tpu.iota {dimensions = array<i32: 1>} : vector<1x32xi32>
    %268 = vector.extract_strided_slice %39 {offsets = [0, 0], sizes = [16, 8], strides = [1, 1]} : vector<16x32xf32> to vector<16x8xf32>
    %269 = vector.extract_strided_slice %42 {offsets = [0, 0], sizes = [16, 8], strides = [1, 1]} : vector<16x32xf32> to vector<16x8xf32>
    %cst_85 = arith.constant dense<0.000000e+00> : vector<16x16xf32>
    %270 = tpu.matmul %268, %269, %cst_85 {dimension_numbers = #tpu.dot_dimension_numbers<[1], [1], [0], [0], [0, 0, 1, 0], [], []>} : vector<16x8xf32>, vector<16x8xf32>, vector<16x16xf32> -> vector<16x16xf32>
    %271 = arith.addf %270, %24 : vector<16x16xf32>
    %cst_86 = arith.constant dense<0xFF800000> : vector<16xf32>
    %272 = vector.multi_reduction <maximumf>, %271, %cst_86 [1] : vector<16x16xf32> to vector<16xf32>
    %273 = vector.shape_cast %272 : vector<16xf32> to vector<16x1xf32>
    %274 = vector.broadcast %273 : vector<16x1xf32> to vector<16x16xf32>
    %275 = arith.subf %271, %274 : vector<16x16xf32>
    %276 = math.exp %275 : vector<16x16xf32>
    %cst_87 = arith.constant dense<0.000000e+00> : vector<16xf32>
    %277 = vector.multi_reduction <add>, %276, %cst_87 [1] : vector<16x16xf32> to vector<16xf32>
    %278 = vector.shape_cast %277 : vector<16xf32> to vector<16x1xf32>
    %cst_88 = arith.constant 1.000000e-30 : f32
    %279 = vector.broadcast %cst_88 : f32 to vector<16x1xf32>
    %280 = arith.maximumf %278, %279 : vector<16x1xf32>
    %281 = tpu.reciprocal %280 {approx = true} : vector<16x1xf32> -> vector<16x1xf32>
    %282 = vector.broadcast %281 : vector<16x1xf32> to vector<16x16xf32>
    %283 = arith.mulf %276, %282 : vector<16x16xf32>
    %c0_i32_89 = arith.constant 0 : i32
    %284 = vector.broadcast %c0_i32_89 : i32 to vector<1x32xi32>
    %285 = arith.cmpi sge, %267, %284 : vector<1x32xi32>
    %c8_i32_90 = arith.constant 8 : i32
    %286 = vector.broadcast %c8_i32_90 : i32 to vector<1x32xi32>
    %287 = arith.cmpi slt, %267, %286 : vector<1x32xi32>
    %288 = arith.andi %285, %287 : vector<1x32xi1>
    %cst_91 = arith.constant 0.000000e+00 : f32
    %289 = vector.shape_cast %288 : vector<1x32xi1> to vector<1x32xi1>
    %290 = vector.broadcast %289 : vector<1x32xi1> to vector<16x32xi1>
    %291 = vector.broadcast %cst_91 : f32 to vector<16x32xf32>
    %292 = arith.select %290, %43, %291 : vector<16x32xi1>, vector<16x32xf32>
    %cst_92 = arith.constant dense<0.000000e+00> : vector<16x32xf32>
    %293 = tpu.matmul %283, %292, %cst_92 {dimension_numbers = #tpu.dot_dimension_numbers<[1], [0], [0], [1], [0, 0, 1, 1], [], []>} : vector<16x16xf32>, vector<16x32xf32>, vector<16x32xf32> -> vector<16x32xf32>
    %294 = vector.extract_strided_slice %39 {offsets = [0, 8], sizes = [16, 8], strides = [1, 1]} : vector<16x32xf32> to vector<16x8xf32>
    %295 = vector.extract_strided_slice %42 {offsets = [0, 8], sizes = [16, 8], strides = [1, 1]} : vector<16x32xf32> to vector<16x8xf32>
    %cst_93 = arith.constant dense<0.000000e+00> : vector<16x16xf32>
    %296 = tpu.matmul %294, %295, %cst_93 {dimension_numbers = #tpu.dot_dimension_numbers<[1], [1], [0], [0], [0, 0, 1, 0], [], []>} : vector<16x8xf32>, vector<16x8xf32>, vector<16x16xf32> -> vector<16x16xf32>
    %297 = arith.addf %296, %24 : vector<16x16xf32>
    %cst_94 = arith.constant dense<0xFF800000> : vector<16xf32>
    %298 = vector.multi_reduction <maximumf>, %297, %cst_94 [1] : vector<16x16xf32> to vector<16xf32>
    %299 = vector.shape_cast %298 : vector<16xf32> to vector<16x1xf32>
    %300 = vector.broadcast %299 : vector<16x1xf32> to vector<16x16xf32>
    %301 = arith.subf %297, %300 : vector<16x16xf32>
    %302 = math.exp %301 : vector<16x16xf32>
    %cst_95 = arith.constant dense<0.000000e+00> : vector<16xf32>
    %303 = vector.multi_reduction <add>, %302, %cst_95 [1] : vector<16x16xf32> to vector<16xf32>
    %304 = vector.shape_cast %303 : vector<16xf32> to vector<16x1xf32>
    %cst_96 = arith.constant 1.000000e-30 : f32
    %305 = vector.broadcast %cst_96 : f32 to vector<16x1xf32>
    %306 = arith.maximumf %304, %305 : vector<16x1xf32>
    %307 = tpu.reciprocal %306 {approx = true} : vector<16x1xf32> -> vector<16x1xf32>
    %308 = vector.broadcast %307 : vector<16x1xf32> to vector<16x16xf32>
    %309 = arith.mulf %302, %308 : vector<16x16xf32>
    %c8_i32_97 = arith.constant 8 : i32
    %310 = vector.broadcast %c8_i32_97 : i32 to vector<1x32xi32>
    %311 = arith.cmpi sge, %267, %310 : vector<1x32xi32>
    %c16_i32_98 = arith.constant 16 : i32
    %312 = vector.broadcast %c16_i32_98 : i32 to vector<1x32xi32>
    %313 = arith.cmpi slt, %267, %312 : vector<1x32xi32>
    %314 = arith.andi %311, %313 : vector<1x32xi1>
    %cst_99 = arith.constant 0.000000e+00 : f32
    %315 = vector.shape_cast %314 : vector<1x32xi1> to vector<1x32xi1>
    %316 = vector.broadcast %315 : vector<1x32xi1> to vector<16x32xi1>
    %317 = vector.broadcast %cst_99 : f32 to vector<16x32xf32>
    %318 = arith.select %316, %43, %317 : vector<16x32xi1>, vector<16x32xf32>
    %cst_100 = arith.constant dense<0.000000e+00> : vector<16x32xf32>
    %319 = tpu.matmul %309, %318, %cst_100 {dimension_numbers = #tpu.dot_dimension_numbers<[1], [0], [0], [1], [0, 0, 1, 1], [], []>} : vector<16x16xf32>, vector<16x32xf32>, vector<16x32xf32> -> vector<16x32xf32>
    %320 = arith.addf %293, %319 : vector<16x32xf32>
    %321 = vector.extract_strided_slice %39 {offsets = [0, 16], sizes = [16, 8], strides = [1, 1]} : vector<16x32xf32> to vector<16x8xf32>
    %322 = vector.extract_strided_slice %42 {offsets = [0, 16], sizes = [16, 8], strides = [1, 1]} : vector<16x32xf32> to vector<16x8xf32>
    %cst_101 = arith.constant dense<0.000000e+00> : vector<16x16xf32>
    %323 = tpu.matmul %321, %322, %cst_101 {dimension_numbers = #tpu.dot_dimension_numbers<[1], [1], [0], [0], [0, 0, 1, 0], [], []>} : vector<16x8xf32>, vector<16x8xf32>, vector<16x16xf32> -> vector<16x16xf32>
    %324 = arith.addf %323, %24 : vector<16x16xf32>
    %cst_102 = arith.constant dense<0xFF800000> : vector<16xf32>
    %325 = vector.multi_reduction <maximumf>, %324, %cst_102 [1] : vector<16x16xf32> to vector<16xf32>
    %326 = vector.shape_cast %325 : vector<16xf32> to vector<16x1xf32>
    %327 = vector.broadcast %326 : vector<16x1xf32> to vector<16x16xf32>
    %328 = arith.subf %324, %327 : vector<16x16xf32>
    %329 = math.exp %328 : vector<16x16xf32>
    %cst_103 = arith.constant dense<0.000000e+00> : vector<16xf32>
    %330 = vector.multi_reduction <add>, %329, %cst_103 [1] : vector<16x16xf32> to vector<16xf32>
    %331 = vector.shape_cast %330 : vector<16xf32> to vector<16x1xf32>
    %cst_104 = arith.constant 1.000000e-30 : f32
    %332 = vector.broadcast %cst_104 : f32 to vector<16x1xf32>
    %333 = arith.maximumf %331, %332 : vector<16x1xf32>
    %334 = tpu.reciprocal %333 {approx = true} : vector<16x1xf32> -> vector<16x1xf32>
    %335 = vector.broadcast %334 : vector<16x1xf32> to vector<16x16xf32>
    %336 = arith.mulf %329, %335 : vector<16x16xf32>
    %c16_i32_105 = arith.constant 16 : i32
    %337 = vector.broadcast %c16_i32_105 : i32 to vector<1x32xi32>
    %338 = arith.cmpi sge, %267, %337 : vector<1x32xi32>
    %c24_i32_106 = arith.constant 24 : i32
    %339 = vector.broadcast %c24_i32_106 : i32 to vector<1x32xi32>
    %340 = arith.cmpi slt, %267, %339 : vector<1x32xi32>
    %341 = arith.andi %338, %340 : vector<1x32xi1>
    %cst_107 = arith.constant 0.000000e+00 : f32
    %342 = vector.shape_cast %341 : vector<1x32xi1> to vector<1x32xi1>
    %343 = vector.broadcast %342 : vector<1x32xi1> to vector<16x32xi1>
    %344 = vector.broadcast %cst_107 : f32 to vector<16x32xf32>
    %345 = arith.select %343, %43, %344 : vector<16x32xi1>, vector<16x32xf32>
    %cst_108 = arith.constant dense<0.000000e+00> : vector<16x32xf32>
    %346 = tpu.matmul %336, %345, %cst_108 {dimension_numbers = #tpu.dot_dimension_numbers<[1], [0], [0], [1], [0, 0, 1, 1], [], []>} : vector<16x16xf32>, vector<16x32xf32>, vector<16x32xf32> -> vector<16x32xf32>
    %347 = arith.addf %320, %346 : vector<16x32xf32>
    %348 = vector.extract_strided_slice %39 {offsets = [0, 24], sizes = [16, 8], strides = [1, 1]} : vector<16x32xf32> to vector<16x8xf32>
    %349 = vector.extract_strided_slice %42 {offsets = [0, 24], sizes = [16, 8], strides = [1, 1]} : vector<16x32xf32> to vector<16x8xf32>
    %cst_109 = arith.constant dense<0.000000e+00> : vector<16x16xf32>
    %350 = tpu.matmul %348, %349, %cst_109 {dimension_numbers = #tpu.dot_dimension_numbers<[1], [1], [0], [0], [0, 0, 1, 0], [], []>} : vector<16x8xf32>, vector<16x8xf32>, vector<16x16xf32> -> vector<16x16xf32>
    %351 = arith.addf %350, %24 : vector<16x16xf32>
    %cst_110 = arith.constant dense<0xFF800000> : vector<16xf32>
    %352 = vector.multi_reduction <maximumf>, %351, %cst_110 [1] : vector<16x16xf32> to vector<16xf32>
    %353 = vector.shape_cast %352 : vector<16xf32> to vector<16x1xf32>
    %354 = vector.broadcast %353 : vector<16x1xf32> to vector<16x16xf32>
    %355 = arith.subf %351, %354 : vector<16x16xf32>
    %356 = math.exp %355 : vector<16x16xf32>
    %cst_111 = arith.constant dense<0.000000e+00> : vector<16xf32>
    %357 = vector.multi_reduction <add>, %356, %cst_111 [1] : vector<16x16xf32> to vector<16xf32>
    %358 = vector.shape_cast %357 : vector<16xf32> to vector<16x1xf32>
    %cst_112 = arith.constant 1.000000e-30 : f32
    %359 = vector.broadcast %cst_112 : f32 to vector<16x1xf32>
    %360 = arith.maximumf %358, %359 : vector<16x1xf32>
    %361 = tpu.reciprocal %360 {approx = true} : vector<16x1xf32> -> vector<16x1xf32>
    %362 = vector.broadcast %361 : vector<16x1xf32> to vector<16x16xf32>
    %363 = arith.mulf %356, %362 : vector<16x16xf32>
    %c24_i32_113 = arith.constant 24 : i32
    %364 = vector.broadcast %c24_i32_113 : i32 to vector<1x32xi32>
    %365 = arith.cmpi sge, %267, %364 : vector<1x32xi32>
    %c32_i32_114 = arith.constant 32 : i32
    %366 = vector.broadcast %c32_i32_114 : i32 to vector<1x32xi32>
    %367 = arith.cmpi slt, %267, %366 : vector<1x32xi32>
    %368 = arith.andi %365, %367 : vector<1x32xi1>
    %cst_115 = arith.constant 0.000000e+00 : f32
    %369 = vector.shape_cast %368 : vector<1x32xi1> to vector<1x32xi1>
    %370 = vector.broadcast %369 : vector<1x32xi1> to vector<16x32xi1>
    %371 = vector.broadcast %cst_115 : f32 to vector<16x32xf32>
    %372 = arith.select %370, %43, %371 : vector<16x32xi1>, vector<16x32xf32>
    %cst_116 = arith.constant dense<0.000000e+00> : vector<16x32xf32>
    %373 = tpu.matmul %363, %372, %cst_116 {dimension_numbers = #tpu.dot_dimension_numbers<[1], [0], [0], [1], [0, 0, 1, 1], [], []>} : vector<16x16xf32>, vector<16x32xf32>, vector<16x32xf32> -> vector<16x32xf32>
    %374 = arith.addf %347, %373 : vector<16x32xf32>
    %375 = vector.broadcast %28 : vector<16x1xf32> to vector<16x32xf32>
    %376 = arith.mulf %374, %375 : vector<16x32xf32>
    %377 = arith.addf %266, %376 : vector<16x32xf32>
    %cst_117 = arith.constant 5.000000e-01 : f32
    %378 = vector.broadcast %cst_117 : f32 to vector<16x32xf32>
    %379 = arith.mulf %378, %377 : vector<16x32xf32>
    %cst_118 = arith.constant 0.707106769 : f32
    %380 = vector.broadcast %cst_118 : f32 to vector<16x32xf32>
    %381 = arith.mulf %377, %380 : vector<16x32xf32>
    %382 = math.absf %381 : vector<16x32xf32>
    %cst_119 = arith.constant 0.327591091 : f32
    %383 = vector.broadcast %cst_119 : f32 to vector<16x32xf32>
    %384 = arith.mulf %383, %382 : vector<16x32xf32>
    %cst_120 = arith.constant 1.000000e+00 : f32
    %385 = vector.broadcast %cst_120 : f32 to vector<16x32xf32>
    %386 = arith.addf %385, %384 : vector<16x32xf32>
    %cst_121 = arith.constant 1.000000e+00 : f32
    %387 = vector.broadcast %cst_121 : f32 to vector<16x32xf32>
    %388 = arith.divf %387, %386 : vector<16x32xf32>
    %cst_122 = arith.constant 1.06140542 : f32
    %389 = vector.broadcast %cst_122 : f32 to vector<16x32xf32>
    %390 = arith.mulf %389, %388 : vector<16x32xf32>
    %cst_123 = arith.constant 1.45315206 : f32
    %391 = vector.broadcast %cst_123 : f32 to vector<16x32xf32>
    %392 = arith.subf %390, %391 : vector<16x32xf32>
    %393 = arith.mulf %392, %388 : vector<16x32xf32>
    %cst_124 = arith.constant 1.42141378 : f32
    %394 = vector.broadcast %cst_124 : f32 to vector<16x32xf32>
    %395 = arith.addf %393, %394 : vector<16x32xf32>
    %396 = arith.mulf %395, %388 : vector<16x32xf32>
    %cst_125 = arith.constant 0.284496725 : f32
    %397 = vector.broadcast %cst_125 : f32 to vector<16x32xf32>
    %398 = arith.subf %396, %397 : vector<16x32xf32>
    %399 = arith.mulf %398, %388 : vector<16x32xf32>
    %cst_126 = arith.constant 0.254829586 : f32
    %400 = vector.broadcast %cst_126 : f32 to vector<16x32xf32>
    %401 = arith.addf %399, %400 : vector<16x32xf32>
    %402 = arith.mulf %401, %388 : vector<16x32xf32>
    %cst_127 = arith.constant 0.000000e+00 : f32
    %403 = vector.broadcast %cst_127 : f32 to vector<16x32xf32>
    %404 = arith.subf %403, %382 : vector<16x32xf32>
    %405 = arith.mulf %404, %382 : vector<16x32xf32>
    %406 = math.exp %405 : vector<16x32xf32>
    %407 = arith.mulf %402, %406 : vector<16x32xf32>
    %cst_128 = arith.constant 1.000000e+00 : f32
    %408 = vector.broadcast %cst_128 : f32 to vector<16x32xf32>
    %409 = arith.subf %408, %407 : vector<16x32xf32>
    %cst_129 = arith.constant 0.000000e+00 : f32
    %410 = vector.broadcast %cst_129 : f32 to vector<16x32xf32>
    %411 = arith.cmpf oge, %381, %410 : vector<16x32xf32>
    %cst_130 = arith.constant 0.000000e+00 : f32
    %412 = vector.broadcast %cst_130 : f32 to vector<16x32xf32>
    %413 = arith.subf %412, %409 : vector<16x32xf32>
    %414 = arith.select %411, %409, %413 : vector<16x32xi1>, vector<16x32xf32>
    %cst_131 = arith.constant 1.000000e+00 : f32
    %415 = vector.broadcast %cst_131 : f32 to vector<16x32xf32>
    %416 = arith.addf %415, %414 : vector<16x32xf32>
    %417 = arith.mulf %379, %416 : vector<16x32xf32>
    %c48 = arith.constant 48 : index
    %c0_132 = arith.constant 0 : index
    %418 = vector.load %arg3[%c48, %c0_132] : memref<296x160xf32, #tpu.memory_space<vmem>>, vector<32x32xf32>
    %cst_133 = arith.constant dense<0.000000e+00> : vector<16x32xf32>
    %419 = tpu.matmul %417, %418, %cst_133 {dimension_numbers = #tpu.dot_dimension_numbers<[1], [0], [0], [1], [0, 0, 1, 1], [], []>} : vector<16x32xf32>, vector<32x32xf32>, vector<16x32xf32> -> vector<16x32xf32>
    %c80 = arith.constant 80 : index
    %c0_134 = arith.constant 0 : index
    %420 = vector.load %arg3[%c80, %c0_134] : memref<296x160xf32, #tpu.memory_space<vmem>>, vector<1x32xf32>
    %421 = vector.broadcast %420 : vector<1x32xf32> to vector<16x32xf32>
    %422 = arith.addf %419, %421 : vector<16x32xf32>
    %cst_135 = arith.constant 5.000000e-01 : f32
    %423 = vector.broadcast %cst_135 : f32 to vector<8x32xf32>
    %424 = arith.mulf %423, %156 : vector<8x32xf32>
    %cst_136 = arith.constant 0.707106769 : f32
    %425 = vector.broadcast %cst_136 : f32 to vector<8x32xf32>
    %426 = arith.mulf %156, %425 : vector<8x32xf32>
    %427 = math.absf %426 : vector<8x32xf32>
    %cst_137 = arith.constant 0.327591091 : f32
    %428 = vector.broadcast %cst_137 : f32 to vector<8x32xf32>
    %429 = arith.mulf %428, %427 : vector<8x32xf32>
    %cst_138 = arith.constant 1.000000e+00 : f32
    %430 = vector.broadcast %cst_138 : f32 to vector<8x32xf32>
    %431 = arith.addf %430, %429 : vector<8x32xf32>
    %cst_139 = arith.constant 1.000000e+00 : f32
    %432 = vector.broadcast %cst_139 : f32 to vector<8x32xf32>
    %433 = arith.divf %432, %431 : vector<8x32xf32>
    %cst_140 = arith.constant 1.06140542 : f32
    %434 = vector.broadcast %cst_140 : f32 to vector<8x32xf32>
    %435 = arith.mulf %434, %433 : vector<8x32xf32>
    %cst_141 = arith.constant 1.45315206 : f32
    %436 = vector.broadcast %cst_141 : f32 to vector<8x32xf32>
    %437 = arith.subf %435, %436 : vector<8x32xf32>
    %438 = arith.mulf %437, %433 : vector<8x32xf32>
    %cst_142 = arith.constant 1.42141378 : f32
    %439 = vector.broadcast %cst_142 : f32 to vector<8x32xf32>
    %440 = arith.addf %438, %439 : vector<8x32xf32>
    %441 = arith.mulf %440, %433 : vector<8x32xf32>
    %cst_143 = arith.constant 0.284496725 : f32
    %442 = vector.broadcast %cst_143 : f32 to vector<8x32xf32>
    %443 = arith.subf %441, %442 : vector<8x32xf32>
    %444 = arith.mulf %443, %433 : vector<8x32xf32>
    %cst_144 = arith.constant 0.254829586 : f32
    %445 = vector.broadcast %cst_144 : f32 to vector<8x32xf32>
    %446 = arith.addf %444, %445 : vector<8x32xf32>
    %447 = arith.mulf %446, %433 : vector<8x32xf32>
    %cst_145 = arith.constant 0.000000e+00 : f32
    %448 = vector.broadcast %cst_145 : f32 to vector<8x32xf32>
    %449 = arith.subf %448, %427 : vector<8x32xf32>
    %450 = arith.mulf %449, %427 : vector<8x32xf32>
    %451 = math.exp %450 : vector<8x32xf32>
    %452 = arith.mulf %447, %451 : vector<8x32xf32>
    %cst_146 = arith.constant 1.000000e+00 : f32
    %453 = vector.broadcast %cst_146 : f32 to vector<8x32xf32>
    %454 = arith.subf %453, %452 : vector<8x32xf32>
    %cst_147 = arith.constant 0.000000e+00 : f32
    %455 = vector.broadcast %cst_147 : f32 to vector<8x32xf32>
    %456 = arith.cmpf oge, %426, %455 : vector<8x32xf32>
    %cst_148 = arith.constant 0.000000e+00 : f32
    %457 = vector.broadcast %cst_148 : f32 to vector<8x32xf32>
    %458 = arith.subf %457, %454 : vector<8x32xf32>
    %459 = arith.select %456, %454, %458 : vector<8x32xi1>, vector<8x32xf32>
    %cst_149 = arith.constant 1.000000e+00 : f32
    %460 = vector.broadcast %cst_149 : f32 to vector<8x32xf32>
    %461 = arith.addf %460, %459 : vector<8x32xf32>
    %462 = arith.mulf %424, %461 : vector<8x32xf32>
    %c88 = arith.constant 88 : index
    %c0_150 = arith.constant 0 : index
    %463 = vector.load %arg3[%c88, %c0_150] : memref<296x160xf32, #tpu.memory_space<vmem>>, vector<32x32xf32>
    %cst_151 = arith.constant dense<0.000000e+00> : vector<8x32xf32>
    %464 = tpu.matmul %462, %463, %cst_151 {dimension_numbers = #tpu.dot_dimension_numbers<[1], [0], [0], [1], [0, 0, 1, 1], [], []>} : vector<8x32xf32>, vector<32x32xf32>, vector<8x32xf32> -> vector<8x32xf32>
    %c120 = arith.constant 120 : index
    %c0_152 = arith.constant 0 : index
    %465 = vector.load %arg3[%c120, %c0_152] : memref<296x160xf32, #tpu.memory_space<vmem>>, vector<1x32xf32>
    %466 = vector.broadcast %465 : vector<1x32xf32> to vector<8x32xf32>
    %467 = arith.addf %464, %466 : vector<8x32xf32>
    %cst_153 = arith.constant 0.000000e+00 : f32
    %468 = vector.broadcast %cst_153 : f32 to vector<16x32xf32>
    %469 = arith.maximumf %422, %468 : vector<16x32xf32>
    %cst_154 = arith.constant 0.000000e+00 : f32
    %470 = vector.broadcast %cst_154 : f32 to vector<8x32xf32>
    %471 = arith.maximumf %467, %470 : vector<8x32xf32>
    %c128 = arith.constant 128 : index
    %c0_155 = arith.constant 0 : index
    %472 = vector.load %arg3[%c128, %c0_155] : memref<296x160xf32, #tpu.memory_space<vmem>>, vector<32x96xf32>
    %cst_156 = arith.constant dense<0.000000e+00> : vector<16x96xf32>
    %473 = tpu.matmul %469, %472, %cst_156 {dimension_numbers = #tpu.dot_dimension_numbers<[1], [0], [0], [1], [0, 0, 1, 1], [], []>} : vector<16x32xf32>, vector<32x96xf32>, vector<16x96xf32> -> vector<16x96xf32>
    %c160 = arith.constant 160 : index
    %c0_157 = arith.constant 0 : index
    %474 = vector.load %arg3[%c160, %c0_157] : memref<296x160xf32, #tpu.memory_space<vmem>>, vector<1x96xf32>
    %475 = vector.broadcast %474 : vector<1x96xf32> to vector<16x96xf32>
    %476 = arith.addf %473, %475 : vector<16x96xf32>
    %c168 = arith.constant 168 : index
    %c0_158 = arith.constant 0 : index
    %477 = vector.load %arg3[%c168, %c0_158] : memref<296x160xf32, #tpu.memory_space<vmem>>, vector<32x64xf32>
    %cst_159 = arith.constant dense<0.000000e+00> : vector<8x64xf32>
    %478 = tpu.matmul %471, %477, %cst_159 {dimension_numbers = #tpu.dot_dimension_numbers<[1], [0], [0], [1], [0, 0, 1, 1], [], []>} : vector<8x32xf32>, vector<32x64xf32>, vector<8x64xf32> -> vector<8x64xf32>
    %c200 = arith.constant 200 : index
    %c0_160 = arith.constant 0 : index
    %479 = vector.load %arg3[%c200, %c0_160] : memref<296x160xf32, #tpu.memory_space<vmem>>, vector<1x64xf32>
    %480 = vector.broadcast %479 : vector<1x64xf32> to vector<8x64xf32>
    %481 = arith.addf %478, %480 : vector<8x64xf32>
    %482 = vector.extract_strided_slice %476 {offsets = [0, 0], sizes = [16, 32], strides = [1, 1]} : vector<16x96xf32> to vector<16x32xf32>
    %483 = vector.extract_strided_slice %476 {offsets = [0, 32], sizes = [16, 32], strides = [1, 1]} : vector<16x96xf32> to vector<16x32xf32>
    %484 = vector.extract_strided_slice %476 {offsets = [0, 64], sizes = [16, 32], strides = [1, 1]} : vector<16x96xf32> to vector<16x32xf32>
    %485 = vector.extract_strided_slice %481 {offsets = [0, 0], sizes = [8, 32], strides = [1, 1]} : vector<8x64xf32> to vector<8x32xf32>
    %486 = vector.extract_strided_slice %481 {offsets = [0, 32], sizes = [8, 32], strides = [1, 1]} : vector<8x64xf32> to vector<8x32xf32>
    %487 = tpu.iota {dimensions = array<i32: 1>} : vector<1x32xi32>
    %488 = vector.extract_strided_slice %482 {offsets = [0, 0], sizes = [16, 8], strides = [1, 1]} : vector<16x32xf32> to vector<16x8xf32>
    %489 = vector.extract_strided_slice %485 {offsets = [0, 0], sizes = [8, 8], strides = [1, 1]} : vector<8x32xf32> to vector<8x8xf32>
    %cst_161 = arith.constant dense<0.000000e+00> : vector<16x8xf32>
    %490 = tpu.matmul %488, %489, %cst_161 {dimension_numbers = #tpu.dot_dimension_numbers<[1], [1], [0], [0], [0, 0, 1, 0], [], []>} : vector<16x8xf32>, vector<8x8xf32>, vector<16x8xf32> -> vector<16x8xf32>
    %491 = arith.addf %490, %16 : vector<16x8xf32>
    %cst_162 = arith.constant dense<0xFF800000> : vector<16xf32>
    %492 = vector.multi_reduction <maximumf>, %491, %cst_162 [1] : vector<16x8xf32> to vector<16xf32>
    %493 = vector.shape_cast %492 : vector<16xf32> to vector<16x1xf32>
    %494 = vector.broadcast %493 : vector<16x1xf32> to vector<16x8xf32>
    %495 = arith.subf %491, %494 : vector<16x8xf32>
    %496 = math.exp %495 : vector<16x8xf32>
    %cst_163 = arith.constant dense<0.000000e+00> : vector<16xf32>
    %497 = vector.multi_reduction <add>, %496, %cst_163 [1] : vector<16x8xf32> to vector<16xf32>
    %498 = vector.shape_cast %497 : vector<16xf32> to vector<16x1xf32>
    %cst_164 = arith.constant 1.000000e-30 : f32
    %499 = vector.broadcast %cst_164 : f32 to vector<16x1xf32>
    %500 = arith.maximumf %498, %499 : vector<16x1xf32>
    %501 = tpu.reciprocal %500 {approx = true} : vector<16x1xf32> -> vector<16x1xf32>
    %502 = vector.broadcast %501 : vector<16x1xf32> to vector<16x8xf32>
    %503 = arith.mulf %496, %502 : vector<16x8xf32>
    %c0_i32_165 = arith.constant 0 : i32
    %504 = vector.broadcast %c0_i32_165 : i32 to vector<1x32xi32>
    %505 = arith.cmpi sge, %487, %504 : vector<1x32xi32>
    %c8_i32_166 = arith.constant 8 : i32
    %506 = vector.broadcast %c8_i32_166 : i32 to vector<1x32xi32>
    %507 = arith.cmpi slt, %487, %506 : vector<1x32xi32>
    %508 = arith.andi %505, %507 : vector<1x32xi1>
    %cst_167 = arith.constant 0.000000e+00 : f32
    %509 = vector.shape_cast %508 : vector<1x32xi1> to vector<1x32xi1>
    %510 = vector.broadcast %509 : vector<1x32xi1> to vector<8x32xi1>
    %511 = vector.broadcast %cst_167 : f32 to vector<8x32xf32>
    %512 = arith.select %510, %486, %511 : vector<8x32xi1>, vector<8x32xf32>
    %cst_168 = arith.constant dense<0.000000e+00> : vector<16x32xf32>
    %513 = tpu.matmul %503, %512, %cst_168 {dimension_numbers = #tpu.dot_dimension_numbers<[1], [0], [0], [1], [0, 0, 1, 1], [], []>} : vector<16x8xf32>, vector<8x32xf32>, vector<16x32xf32> -> vector<16x32xf32>
    %514 = vector.extract_strided_slice %482 {offsets = [0, 8], sizes = [16, 8], strides = [1, 1]} : vector<16x32xf32> to vector<16x8xf32>
    %515 = vector.extract_strided_slice %485 {offsets = [0, 8], sizes = [8, 8], strides = [1, 1]} : vector<8x32xf32> to vector<8x8xf32>
    %cst_169 = arith.constant dense<0.000000e+00> : vector<16x8xf32>
    %516 = tpu.matmul %514, %515, %cst_169 {dimension_numbers = #tpu.dot_dimension_numbers<[1], [1], [0], [0], [0, 0, 1, 0], [], []>} : vector<16x8xf32>, vector<8x8xf32>, vector<16x8xf32> -> vector<16x8xf32>
    %517 = arith.addf %516, %16 : vector<16x8xf32>
    %cst_170 = arith.constant dense<0xFF800000> : vector<16xf32>
    %518 = vector.multi_reduction <maximumf>, %517, %cst_170 [1] : vector<16x8xf32> to vector<16xf32>
    %519 = vector.shape_cast %518 : vector<16xf32> to vector<16x1xf32>
    %520 = vector.broadcast %519 : vector<16x1xf32> to vector<16x8xf32>
    %521 = arith.subf %517, %520 : vector<16x8xf32>
    %522 = math.exp %521 : vector<16x8xf32>
    %cst_171 = arith.constant dense<0.000000e+00> : vector<16xf32>
    %523 = vector.multi_reduction <add>, %522, %cst_171 [1] : vector<16x8xf32> to vector<16xf32>
    %524 = vector.shape_cast %523 : vector<16xf32> to vector<16x1xf32>
    %cst_172 = arith.constant 1.000000e-30 : f32
    %525 = vector.broadcast %cst_172 : f32 to vector<16x1xf32>
    %526 = arith.maximumf %524, %525 : vector<16x1xf32>
    %527 = tpu.reciprocal %526 {approx = true} : vector<16x1xf32> -> vector<16x1xf32>
    %528 = vector.broadcast %527 : vector<16x1xf32> to vector<16x8xf32>
    %529 = arith.mulf %522, %528 : vector<16x8xf32>
    %c8_i32_173 = arith.constant 8 : i32
    %530 = vector.broadcast %c8_i32_173 : i32 to vector<1x32xi32>
    %531 = arith.cmpi sge, %487, %530 : vector<1x32xi32>
    %c16_i32_174 = arith.constant 16 : i32
    %532 = vector.broadcast %c16_i32_174 : i32 to vector<1x32xi32>
    %533 = arith.cmpi slt, %487, %532 : vector<1x32xi32>
    %534 = arith.andi %531, %533 : vector<1x32xi1>
    %cst_175 = arith.constant 0.000000e+00 : f32
    %535 = vector.shape_cast %534 : vector<1x32xi1> to vector<1x32xi1>
    %536 = vector.broadcast %535 : vector<1x32xi1> to vector<8x32xi1>
    %537 = vector.broadcast %cst_175 : f32 to vector<8x32xf32>
    %538 = arith.select %536, %486, %537 : vector<8x32xi1>, vector<8x32xf32>
    %cst_176 = arith.constant dense<0.000000e+00> : vector<16x32xf32>
    %539 = tpu.matmul %529, %538, %cst_176 {dimension_numbers = #tpu.dot_dimension_numbers<[1], [0], [0], [1], [0, 0, 1, 1], [], []>} : vector<16x8xf32>, vector<8x32xf32>, vector<16x32xf32> -> vector<16x32xf32>
    %540 = arith.addf %513, %539 : vector<16x32xf32>
    %541 = vector.extract_strided_slice %482 {offsets = [0, 16], sizes = [16, 8], strides = [1, 1]} : vector<16x32xf32> to vector<16x8xf32>
    %542 = vector.extract_strided_slice %485 {offsets = [0, 16], sizes = [8, 8], strides = [1, 1]} : vector<8x32xf32> to vector<8x8xf32>
    %cst_177 = arith.constant dense<0.000000e+00> : vector<16x8xf32>
    %543 = tpu.matmul %541, %542, %cst_177 {dimension_numbers = #tpu.dot_dimension_numbers<[1], [1], [0], [0], [0, 0, 1, 0], [], []>} : vector<16x8xf32>, vector<8x8xf32>, vector<16x8xf32> -> vector<16x8xf32>
    %544 = arith.addf %543, %16 : vector<16x8xf32>
    %cst_178 = arith.constant dense<0xFF800000> : vector<16xf32>
    %545 = vector.multi_reduction <maximumf>, %544, %cst_178 [1] : vector<16x8xf32> to vector<16xf32>
    %546 = vector.shape_cast %545 : vector<16xf32> to vector<16x1xf32>
    %547 = vector.broadcast %546 : vector<16x1xf32> to vector<16x8xf32>
    %548 = arith.subf %544, %547 : vector<16x8xf32>
    %549 = math.exp %548 : vector<16x8xf32>
    %cst_179 = arith.constant dense<0.000000e+00> : vector<16xf32>
    %550 = vector.multi_reduction <add>, %549, %cst_179 [1] : vector<16x8xf32> to vector<16xf32>
    %551 = vector.shape_cast %550 : vector<16xf32> to vector<16x1xf32>
    %cst_180 = arith.constant 1.000000e-30 : f32
    %552 = vector.broadcast %cst_180 : f32 to vector<16x1xf32>
    %553 = arith.maximumf %551, %552 : vector<16x1xf32>
    %554 = tpu.reciprocal %553 {approx = true} : vector<16x1xf32> -> vector<16x1xf32>
    %555 = vector.broadcast %554 : vector<16x1xf32> to vector<16x8xf32>
    %556 = arith.mulf %549, %555 : vector<16x8xf32>
    %c16_i32_181 = arith.constant 16 : i32
    %557 = vector.broadcast %c16_i32_181 : i32 to vector<1x32xi32>
    %558 = arith.cmpi sge, %487, %557 : vector<1x32xi32>
    %c24_i32_182 = arith.constant 24 : i32
    %559 = vector.broadcast %c24_i32_182 : i32 to vector<1x32xi32>
    %560 = arith.cmpi slt, %487, %559 : vector<1x32xi32>
    %561 = arith.andi %558, %560 : vector<1x32xi1>
    %cst_183 = arith.constant 0.000000e+00 : f32
    %562 = vector.shape_cast %561 : vector<1x32xi1> to vector<1x32xi1>
    %563 = vector.broadcast %562 : vector<1x32xi1> to vector<8x32xi1>
    %564 = vector.broadcast %cst_183 : f32 to vector<8x32xf32>
    %565 = arith.select %563, %486, %564 : vector<8x32xi1>, vector<8x32xf32>
    %cst_184 = arith.constant dense<0.000000e+00> : vector<16x32xf32>
    %566 = tpu.matmul %556, %565, %cst_184 {dimension_numbers = #tpu.dot_dimension_numbers<[1], [0], [0], [1], [0, 0, 1, 1], [], []>} : vector<16x8xf32>, vector<8x32xf32>, vector<16x32xf32> -> vector<16x32xf32>
    %567 = arith.addf %540, %566 : vector<16x32xf32>
    %568 = vector.extract_strided_slice %482 {offsets = [0, 24], sizes = [16, 8], strides = [1, 1]} : vector<16x32xf32> to vector<16x8xf32>
    %569 = vector.extract_strided_slice %485 {offsets = [0, 24], sizes = [8, 8], strides = [1, 1]} : vector<8x32xf32> to vector<8x8xf32>
    %cst_185 = arith.constant dense<0.000000e+00> : vector<16x8xf32>
    %570 = tpu.matmul %568, %569, %cst_185 {dimension_numbers = #tpu.dot_dimension_numbers<[1], [1], [0], [0], [0, 0, 1, 0], [], []>} : vector<16x8xf32>, vector<8x8xf32>, vector<16x8xf32> -> vector<16x8xf32>
    %571 = arith.addf %570, %16 : vector<16x8xf32>
    %cst_186 = arith.constant dense<0xFF800000> : vector<16xf32>
    %572 = vector.multi_reduction <maximumf>, %571, %cst_186 [1] : vector<16x8xf32> to vector<16xf32>
    %573 = vector.shape_cast %572 : vector<16xf32> to vector<16x1xf32>
    %574 = vector.broadcast %573 : vector<16x1xf32> to vector<16x8xf32>
    %575 = arith.subf %571, %574 : vector<16x8xf32>
    %576 = math.exp %575 : vector<16x8xf32>
    %cst_187 = arith.constant dense<0.000000e+00> : vector<16xf32>
    %577 = vector.multi_reduction <add>, %576, %cst_187 [1] : vector<16x8xf32> to vector<16xf32>
    %578 = vector.shape_cast %577 : vector<16xf32> to vector<16x1xf32>
    %cst_188 = arith.constant 1.000000e-30 : f32
    %579 = vector.broadcast %cst_188 : f32 to vector<16x1xf32>
    %580 = arith.maximumf %578, %579 : vector<16x1xf32>
    %581 = tpu.reciprocal %580 {approx = true} : vector<16x1xf32> -> vector<16x1xf32>
    %582 = vector.broadcast %581 : vector<16x1xf32> to vector<16x8xf32>
    %583 = arith.mulf %576, %582 : vector<16x8xf32>
    %c24_i32_189 = arith.constant 24 : i32
    %584 = vector.broadcast %c24_i32_189 : i32 to vector<1x32xi32>
    %585 = arith.cmpi sge, %487, %584 : vector<1x32xi32>
    %c32_i32_190 = arith.constant 32 : i32
    %586 = vector.broadcast %c32_i32_190 : i32 to vector<1x32xi32>
    %587 = arith.cmpi slt, %487, %586 : vector<1x32xi32>
    %588 = arith.andi %585, %587 : vector<1x32xi1>
    %cst_191 = arith.constant 0.000000e+00 : f32
    %589 = vector.shape_cast %588 : vector<1x32xi1> to vector<1x32xi1>
    %590 = vector.broadcast %589 : vector<1x32xi1> to vector<8x32xi1>
    %591 = vector.broadcast %cst_191 : f32 to vector<8x32xf32>
    %592 = arith.select %590, %486, %591 : vector<8x32xi1>, vector<8x32xf32>
    %cst_192 = arith.constant dense<0.000000e+00> : vector<16x32xf32>
    %593 = tpu.matmul %583, %592, %cst_192 {dimension_numbers = #tpu.dot_dimension_numbers<[1], [0], [0], [1], [0, 0, 1, 1], [], []>} : vector<16x8xf32>, vector<8x32xf32>, vector<16x32xf32> -> vector<16x32xf32>
    %594 = arith.addf %567, %593 : vector<16x32xf32>
    %595 = vector.broadcast %20 : vector<16x1xf32> to vector<16x32xf32>
    %596 = arith.mulf %594, %595 : vector<16x32xf32>
    %597 = tpu.iota {dimensions = array<i32: 1>} : vector<1x32xi32>
    %598 = vector.extract_strided_slice %482 {offsets = [0, 0], sizes = [16, 8], strides = [1, 1]} : vector<16x32xf32> to vector<16x8xf32>
    %599 = vector.extract_strided_slice %483 {offsets = [0, 0], sizes = [16, 8], strides = [1, 1]} : vector<16x32xf32> to vector<16x8xf32>
    %cst_193 = arith.constant dense<0.000000e+00> : vector<16x16xf32>
    %600 = tpu.matmul %598, %599, %cst_193 {dimension_numbers = #tpu.dot_dimension_numbers<[1], [1], [0], [0], [0, 0, 1, 0], [], []>} : vector<16x8xf32>, vector<16x8xf32>, vector<16x16xf32> -> vector<16x16xf32>
    %601 = arith.addf %600, %24 : vector<16x16xf32>
    %cst_194 = arith.constant dense<0xFF800000> : vector<16xf32>
    %602 = vector.multi_reduction <maximumf>, %601, %cst_194 [1] : vector<16x16xf32> to vector<16xf32>
    %603 = vector.shape_cast %602 : vector<16xf32> to vector<16x1xf32>
    %604 = vector.broadcast %603 : vector<16x1xf32> to vector<16x16xf32>
    %605 = arith.subf %601, %604 : vector<16x16xf32>
    %606 = math.exp %605 : vector<16x16xf32>
    %cst_195 = arith.constant dense<0.000000e+00> : vector<16xf32>
    %607 = vector.multi_reduction <add>, %606, %cst_195 [1] : vector<16x16xf32> to vector<16xf32>
    %608 = vector.shape_cast %607 : vector<16xf32> to vector<16x1xf32>
    %cst_196 = arith.constant 1.000000e-30 : f32
    %609 = vector.broadcast %cst_196 : f32 to vector<16x1xf32>
    %610 = arith.maximumf %608, %609 : vector<16x1xf32>
    %611 = tpu.reciprocal %610 {approx = true} : vector<16x1xf32> -> vector<16x1xf32>
    %612 = vector.broadcast %611 : vector<16x1xf32> to vector<16x16xf32>
    %613 = arith.mulf %606, %612 : vector<16x16xf32>
    %c0_i32_197 = arith.constant 0 : i32
    %614 = vector.broadcast %c0_i32_197 : i32 to vector<1x32xi32>
    %615 = arith.cmpi sge, %597, %614 : vector<1x32xi32>
    %c8_i32_198 = arith.constant 8 : i32
    %616 = vector.broadcast %c8_i32_198 : i32 to vector<1x32xi32>
    %617 = arith.cmpi slt, %597, %616 : vector<1x32xi32>
    %618 = arith.andi %615, %617 : vector<1x32xi1>
    %cst_199 = arith.constant 0.000000e+00 : f32
    %619 = vector.shape_cast %618 : vector<1x32xi1> to vector<1x32xi1>
    %620 = vector.broadcast %619 : vector<1x32xi1> to vector<16x32xi1>
    %621 = vector.broadcast %cst_199 : f32 to vector<16x32xf32>
    %622 = arith.select %620, %484, %621 : vector<16x32xi1>, vector<16x32xf32>
    %cst_200 = arith.constant dense<0.000000e+00> : vector<16x32xf32>
    %623 = tpu.matmul %613, %622, %cst_200 {dimension_numbers = #tpu.dot_dimension_numbers<[1], [0], [0], [1], [0, 0, 1, 1], [], []>} : vector<16x16xf32>, vector<16x32xf32>, vector<16x32xf32> -> vector<16x32xf32>
    %624 = vector.extract_strided_slice %482 {offsets = [0, 8], sizes = [16, 8], strides = [1, 1]} : vector<16x32xf32> to vector<16x8xf32>
    %625 = vector.extract_strided_slice %483 {offsets = [0, 8], sizes = [16, 8], strides = [1, 1]} : vector<16x32xf32> to vector<16x8xf32>
    %cst_201 = arith.constant dense<0.000000e+00> : vector<16x16xf32>
    %626 = tpu.matmul %624, %625, %cst_201 {dimension_numbers = #tpu.dot_dimension_numbers<[1], [1], [0], [0], [0, 0, 1, 0], [], []>} : vector<16x8xf32>, vector<16x8xf32>, vector<16x16xf32> -> vector<16x16xf32>
    %627 = arith.addf %626, %24 : vector<16x16xf32>
    %cst_202 = arith.constant dense<0xFF800000> : vector<16xf32>
    %628 = vector.multi_reduction <maximumf>, %627, %cst_202 [1] : vector<16x16xf32> to vector<16xf32>
    %629 = vector.shape_cast %628 : vector<16xf32> to vector<16x1xf32>
    %630 = vector.broadcast %629 : vector<16x1xf32> to vector<16x16xf32>
    %631 = arith.subf %627, %630 : vector<16x16xf32>
    %632 = math.exp %631 : vector<16x16xf32>
    %cst_203 = arith.constant dense<0.000000e+00> : vector<16xf32>
    %633 = vector.multi_reduction <add>, %632, %cst_203 [1] : vector<16x16xf32> to vector<16xf32>
    %634 = vector.shape_cast %633 : vector<16xf32> to vector<16x1xf32>
    %cst_204 = arith.constant 1.000000e-30 : f32
    %635 = vector.broadcast %cst_204 : f32 to vector<16x1xf32>
    %636 = arith.maximumf %634, %635 : vector<16x1xf32>
    %637 = tpu.reciprocal %636 {approx = true} : vector<16x1xf32> -> vector<16x1xf32>
    %638 = vector.broadcast %637 : vector<16x1xf32> to vector<16x16xf32>
    %639 = arith.mulf %632, %638 : vector<16x16xf32>
    %c8_i32_205 = arith.constant 8 : i32
    %640 = vector.broadcast %c8_i32_205 : i32 to vector<1x32xi32>
    %641 = arith.cmpi sge, %597, %640 : vector<1x32xi32>
    %c16_i32_206 = arith.constant 16 : i32
    %642 = vector.broadcast %c16_i32_206 : i32 to vector<1x32xi32>
    %643 = arith.cmpi slt, %597, %642 : vector<1x32xi32>
    %644 = arith.andi %641, %643 : vector<1x32xi1>
    %cst_207 = arith.constant 0.000000e+00 : f32
    %645 = vector.shape_cast %644 : vector<1x32xi1> to vector<1x32xi1>
    %646 = vector.broadcast %645 : vector<1x32xi1> to vector<16x32xi1>
    %647 = vector.broadcast %cst_207 : f32 to vector<16x32xf32>
    %648 = arith.select %646, %484, %647 : vector<16x32xi1>, vector<16x32xf32>
    %cst_208 = arith.constant dense<0.000000e+00> : vector<16x32xf32>
    %649 = tpu.matmul %639, %648, %cst_208 {dimension_numbers = #tpu.dot_dimension_numbers<[1], [0], [0], [1], [0, 0, 1, 1], [], []>} : vector<16x16xf32>, vector<16x32xf32>, vector<16x32xf32> -> vector<16x32xf32>
    %650 = arith.addf %623, %649 : vector<16x32xf32>
    %651 = vector.extract_strided_slice %482 {offsets = [0, 16], sizes = [16, 8], strides = [1, 1]} : vector<16x32xf32> to vector<16x8xf32>
    %652 = vector.extract_strided_slice %483 {offsets = [0, 16], sizes = [16, 8], strides = [1, 1]} : vector<16x32xf32> to vector<16x8xf32>
    %cst_209 = arith.constant dense<0.000000e+00> : vector<16x16xf32>
    %653 = tpu.matmul %651, %652, %cst_209 {dimension_numbers = #tpu.dot_dimension_numbers<[1], [1], [0], [0], [0, 0, 1, 0], [], []>} : vector<16x8xf32>, vector<16x8xf32>, vector<16x16xf32> -> vector<16x16xf32>
    %654 = arith.addf %653, %24 : vector<16x16xf32>
    %cst_210 = arith.constant dense<0xFF800000> : vector<16xf32>
    %655 = vector.multi_reduction <maximumf>, %654, %cst_210 [1] : vector<16x16xf32> to vector<16xf32>
    %656 = vector.shape_cast %655 : vector<16xf32> to vector<16x1xf32>
    %657 = vector.broadcast %656 : vector<16x1xf32> to vector<16x16xf32>
    %658 = arith.subf %654, %657 : vector<16x16xf32>
    %659 = math.exp %658 : vector<16x16xf32>
    %cst_211 = arith.constant dense<0.000000e+00> : vector<16xf32>
    %660 = vector.multi_reduction <add>, %659, %cst_211 [1] : vector<16x16xf32> to vector<16xf32>
    %661 = vector.shape_cast %660 : vector<16xf32> to vector<16x1xf32>
    %cst_212 = arith.constant 1.000000e-30 : f32
    %662 = vector.broadcast %cst_212 : f32 to vector<16x1xf32>
    %663 = arith.maximumf %661, %662 : vector<16x1xf32>
    %664 = tpu.reciprocal %663 {approx = true} : vector<16x1xf32> -> vector<16x1xf32>
    %665 = vector.broadcast %664 : vector<16x1xf32> to vector<16x16xf32>
    %666 = arith.mulf %659, %665 : vector<16x16xf32>
    %c16_i32_213 = arith.constant 16 : i32
    %667 = vector.broadcast %c16_i32_213 : i32 to vector<1x32xi32>
    %668 = arith.cmpi sge, %597, %667 : vector<1x32xi32>
    %c24_i32_214 = arith.constant 24 : i32
    %669 = vector.broadcast %c24_i32_214 : i32 to vector<1x32xi32>
    %670 = arith.cmpi slt, %597, %669 : vector<1x32xi32>
    %671 = arith.andi %668, %670 : vector<1x32xi1>
    %cst_215 = arith.constant 0.000000e+00 : f32
    %672 = vector.shape_cast %671 : vector<1x32xi1> to vector<1x32xi1>
    %673 = vector.broadcast %672 : vector<1x32xi1> to vector<16x32xi1>
    %674 = vector.broadcast %cst_215 : f32 to vector<16x32xf32>
    %675 = arith.select %673, %484, %674 : vector<16x32xi1>, vector<16x32xf32>
    %cst_216 = arith.constant dense<0.000000e+00> : vector<16x32xf32>
    %676 = tpu.matmul %666, %675, %cst_216 {dimension_numbers = #tpu.dot_dimension_numbers<[1], [0], [0], [1], [0, 0, 1, 1], [], []>} : vector<16x16xf32>, vector<16x32xf32>, vector<16x32xf32> -> vector<16x32xf32>
    %677 = arith.addf %650, %676 : vector<16x32xf32>
    %678 = vector.extract_strided_slice %482 {offsets = [0, 24], sizes = [16, 8], strides = [1, 1]} : vector<16x32xf32> to vector<16x8xf32>
    %679 = vector.extract_strided_slice %483 {offsets = [0, 24], sizes = [16, 8], strides = [1, 1]} : vector<16x32xf32> to vector<16x8xf32>
    %cst_217 = arith.constant dense<0.000000e+00> : vector<16x16xf32>
    %680 = tpu.matmul %678, %679, %cst_217 {dimension_numbers = #tpu.dot_dimension_numbers<[1], [1], [0], [0], [0, 0, 1, 0], [], []>} : vector<16x8xf32>, vector<16x8xf32>, vector<16x16xf32> -> vector<16x16xf32>
    %681 = arith.addf %680, %24 : vector<16x16xf32>
    %cst_218 = arith.constant dense<0xFF800000> : vector<16xf32>
    %682 = vector.multi_reduction <maximumf>, %681, %cst_218 [1] : vector<16x16xf32> to vector<16xf32>
    %683 = vector.shape_cast %682 : vector<16xf32> to vector<16x1xf32>
    %684 = vector.broadcast %683 : vector<16x1xf32> to vector<16x16xf32>
    %685 = arith.subf %681, %684 : vector<16x16xf32>
    %686 = math.exp %685 : vector<16x16xf32>
    %cst_219 = arith.constant dense<0.000000e+00> : vector<16xf32>
    %687 = vector.multi_reduction <add>, %686, %cst_219 [1] : vector<16x16xf32> to vector<16xf32>
    %688 = vector.shape_cast %687 : vector<16xf32> to vector<16x1xf32>
    %cst_220 = arith.constant 1.000000e-30 : f32
    %689 = vector.broadcast %cst_220 : f32 to vector<16x1xf32>
    %690 = arith.maximumf %688, %689 : vector<16x1xf32>
    %691 = tpu.reciprocal %690 {approx = true} : vector<16x1xf32> -> vector<16x1xf32>
    %692 = vector.broadcast %691 : vector<16x1xf32> to vector<16x16xf32>
    %693 = arith.mulf %686, %692 : vector<16x16xf32>
    %c24_i32_221 = arith.constant 24 : i32
    %694 = vector.broadcast %c24_i32_221 : i32 to vector<1x32xi32>
    %695 = arith.cmpi sge, %597, %694 : vector<1x32xi32>
    %c32_i32_222 = arith.constant 32 : i32
    %696 = vector.broadcast %c32_i32_222 : i32 to vector<1x32xi32>
    %697 = arith.cmpi slt, %597, %696 : vector<1x32xi32>
    %698 = arith.andi %695, %697 : vector<1x32xi1>
    %cst_223 = arith.constant 0.000000e+00 : f32
    %699 = vector.shape_cast %698 : vector<1x32xi1> to vector<1x32xi1>
    %700 = vector.broadcast %699 : vector<1x32xi1> to vector<16x32xi1>
    %701 = vector.broadcast %cst_223 : f32 to vector<16x32xf32>
    %702 = arith.select %700, %484, %701 : vector<16x32xi1>, vector<16x32xf32>
    %cst_224 = arith.constant dense<0.000000e+00> : vector<16x32xf32>
    %703 = tpu.matmul %693, %702, %cst_224 {dimension_numbers = #tpu.dot_dimension_numbers<[1], [0], [0], [1], [0, 0, 1, 1], [], []>} : vector<16x16xf32>, vector<16x32xf32>, vector<16x32xf32> -> vector<16x32xf32>
    %704 = arith.addf %677, %703 : vector<16x32xf32>
    %705 = vector.broadcast %28 : vector<16x1xf32> to vector<16x32xf32>
    %706 = arith.mulf %704, %705 : vector<16x32xf32>
    %707 = arith.addf %596, %706 : vector<16x32xf32>
    %cst_225 = arith.constant 5.000000e-01 : f32
    %708 = vector.broadcast %cst_225 : f32 to vector<16x32xf32>
    %709 = arith.mulf %708, %707 : vector<16x32xf32>
    %cst_226 = arith.constant 0.707106769 : f32
    %710 = vector.broadcast %cst_226 : f32 to vector<16x32xf32>
    %711 = arith.mulf %707, %710 : vector<16x32xf32>
    %712 = math.absf %711 : vector<16x32xf32>
    %cst_227 = arith.constant 0.327591091 : f32
    %713 = vector.broadcast %cst_227 : f32 to vector<16x32xf32>
    %714 = arith.mulf %713, %712 : vector<16x32xf32>
    %cst_228 = arith.constant 1.000000e+00 : f32
    %715 = vector.broadcast %cst_228 : f32 to vector<16x32xf32>
    %716 = arith.addf %715, %714 : vector<16x32xf32>
    %cst_229 = arith.constant 1.000000e+00 : f32
    %717 = vector.broadcast %cst_229 : f32 to vector<16x32xf32>
    %718 = arith.divf %717, %716 : vector<16x32xf32>
    %cst_230 = arith.constant 1.06140542 : f32
    %719 = vector.broadcast %cst_230 : f32 to vector<16x32xf32>
    %720 = arith.mulf %719, %718 : vector<16x32xf32>
    %cst_231 = arith.constant 1.45315206 : f32
    %721 = vector.broadcast %cst_231 : f32 to vector<16x32xf32>
    %722 = arith.subf %720, %721 : vector<16x32xf32>
    %723 = arith.mulf %722, %718 : vector<16x32xf32>
    %cst_232 = arith.constant 1.42141378 : f32
    %724 = vector.broadcast %cst_232 : f32 to vector<16x32xf32>
    %725 = arith.addf %723, %724 : vector<16x32xf32>
    %726 = arith.mulf %725, %718 : vector<16x32xf32>
    %cst_233 = arith.constant 0.284496725 : f32
    %727 = vector.broadcast %cst_233 : f32 to vector<16x32xf32>
    %728 = arith.subf %726, %727 : vector<16x32xf32>
    %729 = arith.mulf %728, %718 : vector<16x32xf32>
    %cst_234 = arith.constant 0.254829586 : f32
    %730 = vector.broadcast %cst_234 : f32 to vector<16x32xf32>
    %731 = arith.addf %729, %730 : vector<16x32xf32>
    %732 = arith.mulf %731, %718 : vector<16x32xf32>
    %cst_235 = arith.constant 0.000000e+00 : f32
    %733 = vector.broadcast %cst_235 : f32 to vector<16x32xf32>
    %734 = arith.subf %733, %712 : vector<16x32xf32>
    %735 = arith.mulf %734, %712 : vector<16x32xf32>
    %736 = math.exp %735 : vector<16x32xf32>
    %737 = arith.mulf %732, %736 : vector<16x32xf32>
    %cst_236 = arith.constant 1.000000e+00 : f32
    %738 = vector.broadcast %cst_236 : f32 to vector<16x32xf32>
    %739 = arith.subf %738, %737 : vector<16x32xf32>
    %cst_237 = arith.constant 0.000000e+00 : f32
    %740 = vector.broadcast %cst_237 : f32 to vector<16x32xf32>
    %741 = arith.cmpf oge, %711, %740 : vector<16x32xf32>
    %cst_238 = arith.constant 0.000000e+00 : f32
    %742 = vector.broadcast %cst_238 : f32 to vector<16x32xf32>
    %743 = arith.subf %742, %739 : vector<16x32xf32>
    %744 = arith.select %741, %739, %743 : vector<16x32xi1>, vector<16x32xf32>
    %cst_239 = arith.constant 1.000000e+00 : f32
    %745 = vector.broadcast %cst_239 : f32 to vector<16x32xf32>
    %746 = arith.addf %745, %744 : vector<16x32xf32>
    %747 = arith.mulf %709, %746 : vector<16x32xf32>
    %c208 = arith.constant 208 : index
    %c0_240 = arith.constant 0 : index
    %748 = vector.load %arg3[%c208, %c0_240] : memref<296x160xf32, #tpu.memory_space<vmem>>, vector<32x32xf32>
    %cst_241 = arith.constant dense<0.000000e+00> : vector<16x32xf32>
    %749 = tpu.matmul %747, %748, %cst_241 {dimension_numbers = #tpu.dot_dimension_numbers<[1], [0], [0], [1], [0, 0, 1, 1], [], []>} : vector<16x32xf32>, vector<32x32xf32>, vector<16x32xf32> -> vector<16x32xf32>
    %c240 = arith.constant 240 : index
    %c0_242 = arith.constant 0 : index
    %750 = vector.load %arg3[%c240, %c0_242] : memref<296x160xf32, #tpu.memory_space<vmem>>, vector<1x32xf32>
    %751 = vector.broadcast %750 : vector<1x32xf32> to vector<16x32xf32>
    %752 = arith.addf %749, %751 : vector<16x32xf32>
    %c248 = arith.constant 248 : index
    %c0_243 = arith.constant 0 : index
    %753 = vector.load %arg3[%c248, %c0_243] : memref<296x160xf32, #tpu.memory_space<vmem>>, vector<1x32xf32>
    %754 = vector.broadcast %753 : vector<1x32xf32> to vector<16x32xf32>
    %755 = arith.mulf %754, %469 : vector<16x32xf32>
    %756 = arith.addf %752, %755 : vector<16x32xf32>
    %c256 = arith.constant 256 : index
    %c0_244 = arith.constant 0 : index
    %757 = vector.load %arg3[%c256, %c0_244] : memref<296x160xf32, #tpu.memory_space<vmem>>, vector<32x128xf32>
    %cst_245 = arith.constant dense<0.000000e+00> : vector<16x128xf32>
    %758 = tpu.matmul %756, %757, %cst_245 {dimension_numbers = #tpu.dot_dimension_numbers<[1], [0], [0], [1], [0, 0, 1, 1], [], []>} : vector<16x32xf32>, vector<32x128xf32>, vector<16x128xf32> -> vector<16x128xf32>
    %c288 = arith.constant 288 : index
    %c0_246 = arith.constant 0 : index
    %759 = vector.load %arg3[%c288, %c0_246] : memref<296x160xf32, #tpu.memory_space<vmem>>, vector<1x128xf32>
    %760 = vector.broadcast %759 : vector<1x128xf32> to vector<16x128xf32>
    %761 = arith.addf %758, %760 : vector<16x128xf32>
    %c0_247 = arith.constant 0 : index
    %c0_248 = arith.constant 0 : index
    %762 = vector.load %arg4[%c0_247, %c0_248] : memref<16x128xf32, #tpu.memory_space<vmem>>, vector<16x128xf32>
    tpu.vector_store %arg4[%c0_247, %c0_248], %761 {strides = array<i32>} : memref<16x128xf32, #tpu.memory_space<vmem>>, vector<16x128xf32>,
    return
  }
}

</mosaic_0001>

<llo_original>
// kernel: hgt_model_forward.1
$region0: #{hgt_model_forward.1}
  #allocation0 [shape = 'u32[]', space=smem, size = 0x4, offset = 0x4, fixed_abs, tag = 'smem constant byte address 0x4 - core index']
  #allocation1 [shape = 'u32[144,128]{1,0:T(1,128)}', space=vmem, size = 0x12000, scoped, tag = 'internal scratch']
  %s0 = inlined_call_operand.vmem [shape: f32[16,16], index: 0, kind: input, shape index: {}]
  %s1 = inlined_call_operand.vmem [shape: f32[8,16], index: 1, kind: input, shape index: {}]
  %s2 = inlined_call_operand.vmem [shape: f32[40,16], index: 2, kind: input, shape index: {}]
  %s3 = inlined_call_operand.vmem [shape: f32[296,160], index: 3, kind: input, shape index: {}]
  %s4 = inlined_call_operand.vmem [shape: f32[16,128], index: 4, kind: output, shape index: {}]
  %s5 = sld [smem:[#allocation0]]
  $region26: #{hgt_model_forward.1} parent=0
    _
  %s7 = ssub.s32 1, %s5
  %s8 = scalar_select 0, %s7, %s5
  // Predicated region
  $region2: #{hgt_model_forward.1} parent=0 // pred_check
    _
  $region3: #{hgt_model_forward.1} parent=0 // pred_check_branch
    %10 = sbr.rel (0) target = $region5
  $region4: #{hgt_model_forward.1} parent=0 // pred_region
    _
  $region5: #{hgt_model_forward.1} parent=0 // pred_fallthru
    _
  // Predicated region
  $region6: #{hgt_model_forward.1} parent=0 // pred_check
    _
  $region7: #{hgt_model_forward.1} parent=0 // pred_check_branch
    %12 = sbr.rel (0) target = $region9
  $region8: #{hgt_model_forward.1} parent=0 // pred_region
    _
  $region9: #{hgt_model_forward.1} parent=0 // pred_fallthru
    _
  // Predicated region
  $region10: #{hgt_model_forward.1} parent=0 // pred_check
    _
  $region11: #{hgt_model_forward.1} parent=0 // pred_check_branch
    %14 = sbr.rel (0) target = $region13
  $region12: #{hgt_model_forward.1} parent=0 // pred_region
    _
  $region13: #{hgt_model_forward.1} parent=0 // pred_fallthru
    _
  // Predicated region
  $region14: #{hgt_model_forward.1} parent=0 // pred_check
    _
  $region15: #{hgt_model_forward.1} parent=0 // pred_check_branch
    %16 = sbr.rel (0) target = $region17
  $region16: #{hgt_model_forward.1} parent=0 // pred_region
    _
  $region17: #{hgt_model_forward.1} parent=0 // pred_fallthru
    _
  %v17 = vld [vmem:[%s0] sm:$0xff]
  %v18 = vld [vmem:[%s0 + $0x8] sm:$0xff]
  %v19 = vld [vmem:[%s1] sm:$0xff]
  %v20 = vld [vmem:[%s2] sm:$0xff]
  %v21 = vld [vmem:[%s2 + $0x8] sm:$0xff]
  %v22 = vld [vmem:[%s2 + $0x10] sm:$0xff]
  %v23 = vld [vmem:[%s2 + $0x18] sm:$0xff]
  %v24 = vld [vmem:[%s2 + $0x20] sm:$0xff]
  %v25 = vsub.f32 %v20, 1.0
  %v26 = vmul.f32 %v25, 1e+30
  %vm27 = vcmask 130048
  %v28 = vsel %vm27, %v20, 0.0
  %29 = vadd.xlane.f32.xlu0 %v28
  %v30 = vpop.xlane.xlu0 %29
  %v31 = vmin.f32 %v30, 1.0
  %v32 = vsub.f32 %v21, 1.0
  %v33 = vsub.f32 %v22, 1.0
  %v34 = vmul.f32 %v32, 1e+30
  %v35 = vmul.f32 %v33, 1e+30
  %vm36 = vcmask 64512
  %v37 = vsel %vm36, %v21, 0.0
  %38 = vadd.xlane.f32.xlu0 %v37
  %v39 = vpop.xlane.xlu0 %38
  %v40 = vsel %vm36, %v22, 0.0
  %41 = vadd.xlane.f32.xlu0 %v40
  %v42 = vpop.xlane.xlu0 %41
  %v43 = vmin.f32 %v39, 1.0
  %v44 = vmin.f32 %v42, 1.0
  %v45 = vsub.f32 %v23, 1.0
  %v46 = vsub.f32 %v24, 1.0
  %v47 = vmul.f32 %v45, 1e+30
  %v48 = vmul.f32 %v46, 1e+30
  %v49 = vsel %vm27, %v23, 0.0
  %50 = vadd.xlane.f32.xlu0 %v49
  %v51 = vpop.xlane.xlu0 %50
  %v52 = vsel %vm27, %v24, 0.0
  %53 = vadd.xlane.f32.xlu0 %v52
  %v54 = vpop.xlane.xlu0 %53
  %v55 = vmin.f32 %v51, 1.0
  %v56 = vmin.f32 %v54, 1.0
  %v57 = vld [vmem:[%s3] sm:$0xff]
  %v58 = vld [vmem:[%s3 + $0x8] sm:$0xff]
  %v59 = vld [vmem:[%s3 + $0x10] sm:$0xff]
  %v60 = vld [vmem:[%s3 + $0x18] sm:$0xff]
  %s61 = scalar_lea.vmem %s3, 32
  %v62 = vld [vmem:[%s61] ss:$8 sm:$0x3]
  %v64 = vlaneseq
  %v65 = vshrl.u32 %v64, 7
  %v66 = vsub.s32 0, %v65
  %v67 = vrot.slane %v62, %v66
  %v68 = vlaneseq
  %v69 = vshrl.u32 %v68, 7
  %v70 = vsub.s32 1, %v69
  %v71 = vrot.slane %v62, %v70
  %v75 = vsel %vm27, %v17, 0
  %v78 = vsel %vm27, %v18, 0
  %80 = vmatprep.subr.mxu0 0.0
  %81 = vmatpush1.msra.mxu0 0.0
  %82 = vmatprep.subr.mxu0 0.0
  %83 = vmatpush1.msra.mxu0 0.0
  %84 = vmatprep.subr.mxu0 0.0
  %85 = vmatpush1.msra.mxu0 0.0
  %86 = vmatprep.subr.mxu0 0.0
  %87 = vmatpush1.msra.mxu0 0.0
  %88 = vmatprep.subr.mxu0 0.0
  %89 = vmatpush1.msra.mxu0 0.0
  %90 = vmatprep.subr.mxu0 0.0
  %91 = vmatpush1.msra.mxu0 0.0
  %92 = vmatprep.subr.mxu0 0.0
  %93 = vmatpush1.msra.mxu0 0.0
  %94 = vmatprep.subr.mxu0 0.0
  %95 = vmatpush1.msra.mxu0 0.0
  %96 = vmatprep.subr.mxu0 0.0
  %97 = vmatpush1.msra.mxu0 0.0
  %98 = vmatprep.subr.mxu0 0.0
  %99 = vmatpush1.msra.mxu0 0.0
  %100 = vmatprep.subr.mxu0 0.0
  %101 = vmatpush1.msra.mxu0 0.0
  %102 = vmatprep.subr.mxu0 0.0
  %103 = vmatpush1.msra.mxu0 0.0
  %104 = vmatprep.subr.mxu0 0.0
  %105 = vmatpush1.msra.mxu0 0.0
  %106 = vmatprep.subr.mxu0 0.0
  %107 = vmatpush1.msra.mxu0 0.0
  %108 = vmatprep.subr.mxu0 %v60
  %109 = vmatpush1.msra.mxu0 %v59
  %110 = vmatprep.subr.mxu0 %v58
  %111 = vmatpush1.msra.mxu0 %v57
  %112 = vmatprep.subr.mxu0 0.0
  %113 = vmatpush2.msra.mxu0 0.0
  %114 = vmatprep.subr.mxu0 0.0
  %115 = vmatpush2.msra.mxu0 0.0
  %116 = vmatprep.subr.mxu0 0.0
  %117 = vmatpush2.msra.mxu0 0.0
  %118 = vmatprep.subr.mxu0 0.0
  %119 = vmatpush2.msra.mxu0 0.0
  %120 = vmatprep.subr.mxu0 0.0
  %121 = vmatpush2.msra.mxu0 0.0
  %122 = vmatprep.subr.mxu0 0.0
  %123 = vmatpush2.msra.mxu0 0.0
  %124 = vmatprep.subr.mxu0 0.0
  %125 = vmatpush2.msra.mxu0 0.0
  %126 = vmatprep.subr.mxu0 0.0
  %127 = vmatpush2.msra.mxu0 0.0
  %128 = vmatprep.subr.mxu0 0.0
  %129 = vmatpush2.msra.mxu0 0.0
  %130 = vmatprep.subr.mxu0 0.0
  %131 = vmatpush2.msra.mxu0 0.0
  %132 = vmatprep.subr.mxu0 0.0
  %133 = vmatpush2.msra.mxu0 0.0
  %134 = vmatprep.subr.mxu0 0.0
  %135 = vmatpush2.msra.mxu0 0.0
  %136 = vmatprep.subr.mxu0 0.0
  %137 = vmatpush2.msra.mxu0 0.0
  %138 = vmatprep.subr.mxu0 0.0
  %139 = vmatpush2.msra.mxu0 0.0
  %140 = vmatprep.subr.mxu0 0.0
  %141 = vmatpush2.msra.mxu0 0.0
  %142 = vmatprep.subr.mxu0 0.0
  %143 = vmatpush2.msra.mxu0 0.0
  %144 = vmatprep.mubr.f32.mxu0 0.0
  %145 = vmatmul.mubr.f32.gmra.mxu0 %v75
  %v146 = vpop.f32.mrf.mxu0
  %v147 = vadd.f32 %v67, %v146
  %v148 = vpop.f32.mrf.mxu0
  %v149 = vadd.f32 %v71, %v148
  %150 = vmatprep.mubr.f32.mxu0 0.0
  %151 = vmatmul.mubr.f32.gmra.mxu0 %v78
  %v152 = vpop.f32.mrf.mxu0
  %v153 = vadd.f32 %v67, %v152
  %v154 = vpop.f32.mrf.mxu0
  %v155 = vadd.f32 %v71, %v154
  %156 = vdwg.mxu0
  %v157 = vld [vmem:[%s3 + $0x30] sm:$0xff]
  %v158 = vld [vmem:[%s3 + $0x40] sm:$0xff]
  %v159 = vld [vmem:[%s3 + $0x50] ss:$0 sm:$0xff]
  %v161 = vsel %vm27, %v19, 0
  %163 = vmatprep.subr.mxu0 0.0
  %164 = vmatpush1.msra.mxu0 0.0
  %165 = vmatprep.subr.mxu0 0.0
  %166 = vmatpush1.msra.mxu0 0.0
  %167 = vmatprep.subr.mxu0 0.0
  %168 = vmatpush1.msra.mxu0 0.0
  %169 = vmatprep.subr.mxu0 0.0
  %170 = vmatpush1.msra.mxu0 0.0
  %171 = vmatprep.subr.mxu0 0.0
  %172 = vmatpush1.msra.mxu0 0.0
  %173 = vmatprep.subr.mxu0 0.0
  %174 = vmatpush1.msra.mxu0 0.0
  %175 = vmatprep.subr.mxu0 0.0
  %176 = vmatpush1.msra.mxu0 0.0
  %177 = vmatprep.subr.mxu0 0.0
  %178 = vmatpush1.msra.mxu0 0.0
  %179 = vmatprep.subr.mxu0 0.0
  %180 = vmatpush1.msra.mxu0 0.0
  %181 = vmatprep.subr.mxu0 0.0
  %182 = vmatpush1.msra.mxu0 0.0
  %183 = vmatprep.subr.mxu0 0.0
  %184 = vmatpush1.msra.mxu0 0.0
  %185 = vmatprep.subr.mxu0 0.0
  %186 = vmatpush1.msra.mxu0 0.0
  %187 = vmatprep.subr.mxu0 0.0
  %188 = vmatpush1.msra.mxu0 0.0
  %189 = vmatprep.subr.mxu0 0.0
  %190 = vmatpush1.msra.mxu0 0.0
  %191 = vmatprep.subr.mxu0 0.0
  %192 = vmatpush1.msra.mxu0 %v158
  %193 = vmatprep.subr.mxu0 0.0
  %194 = vmatpush1.msra.mxu0 %v157
  %195 = vmatprep.subr.mxu0 0.0
  %196 = vmatpush2.msra.mxu0 0.0
  %197 = vmatprep.subr.mxu0 0.0
  %198 = vmatpush2.msra.mxu0 0.0
  %199 = vmatprep.subr.mxu0 0.0
  %200 = vmatpush2.msra.mxu0 0.0
  %201 = vmatprep.subr.mxu0 0.0
  %202 = vmatpush2.msra.mxu0 0.0
  %203 = vmatprep.subr.mxu0 0.0
  %204 = vmatpush2.msra.mxu0 0.0
  %205 = vmatprep.subr.mxu0 0.0
  %206 = vmatpush2.msra.mxu0 0.0
  %207 = vmatprep.subr.mxu0 0.0
  %208 = vmatpush2.msra.mxu0 0.0
  %209 = vmatprep.subr.mxu0 0.0
  %210 = vmatpush2.msra.mxu0 0.0
  %211 = vmatprep.subr.mxu0 0.0
  %212 = vmatpush2.msra.mxu0 0.0
  %213 = vmatprep.subr.mxu0 0.0
  %214 = vmatpush2.msra.mxu0 0.0
  %215 = vmatprep.subr.mxu0 0.0
  %216 = vmatpush2.msra.mxu0 0.0
  %217 = vmatprep.subr.mxu0 0.0
  %218 = vmatpush2.msra.mxu0 0.0
  %219 = vmatprep.subr.mxu0 0.0
  %220 = vmatpush2.msra.mxu0 0.0
  %221 = vmatprep.subr.mxu0 0.0
  %222 = vmatpush2.msra.mxu0 0.0
  %223 = vmatprep.subr.mxu0 0.0
  %224 = vmatpush2.msra.mxu0 0.0
  %225 = vmatprep.subr.mxu0 0.0
  %226 = vmatpush2.msra.mxu0 0.0
  %227 = vmatprep.mubr.f32.mxu0 0.0
  %228 = vmatmul.mubr.f32.gmra.mxu0 %v161
  %v229 = vpop.f32.mrf.mxu0
  %v230 = vadd.f32 %v159, %v229
  %v231 = vpop.f32.mrf.mxu0
  %232 = vdwg.mxu0
  %v233 = vlaneseq
  %v234 = vand.u32 %v233, 127
  %237 = vrot.lane.b32.xlu0 %v147, 96
  %v238 = vpop.permute.xlu0 %237
  %239 = vrot.lane.b32.xlu0 %v153, 96
  %v240 = vpop.permute.xlu0 %239
  %v242 = vsel %vm36, %v230, 0
  %v244 = vsel %vm36, %v238, 0
  %v246 = vsel %vm36, %v240, 0
  %248 = vmatprep.subr.mxu0 0.0
  %249 = vmatpush1.xpose.msra.mxu0 0.0
  %250 = vmatprep.subr.mxu0 0.0
  %251 = vmatpush1.xpose.msra.mxu0 0.0
  %252 = vmatprep.subr.mxu0 0.0
  %253 = vmatpush1.xpose.msra.mxu0 0.0
  %254 = vmatprep.subr.mxu0 0.0
  %255 = vmatpush1.xpose.msra.mxu0 0.0
  %256 = vmatprep.subr.mxu0 0.0
  %257 = vmatpush1.xpose.msra.mxu0 0.0
  %258 = vmatprep.subr.mxu0 0.0
  %259 = vmatpush1.xpose.msra.mxu0 0.0
  %260 = vmatprep.subr.mxu0 0.0
  %261 = vmatpush1.xpose.msra.mxu0 0.0
  %262 = vmatprep.subr.mxu0 0.0
  %263 = vmatpush1.xpose.msra.mxu0 0.0
  %264 = vmatprep.subr.mxu0 0.0
  %265 = vmatpush1.xpose.msra.mxu0 0.0
  %266 = vmatprep.subr.mxu0 0.0
  %267 = vmatpush1.xpose.msra.mxu0 0.0
  %268 = vmatprep.subr.mxu0 0.0
  %269 = vmatpush1.xpose.msra.mxu0 0.0
  %270 = vmatprep.subr.mxu0 0.0
  %271 = vmatpush1.xpose.msra.mxu0 0.0
  %272 = vmatprep.subr.mxu0 0.0
  %273 = vmatpush1.xpose.msra.mxu0 0.0
  %274 = vmatprep.subr.mxu0 0.0
  %275 = vmatpush1.xpose.msra.mxu0 0.0
  %276 = vmatprep.subr.mxu0 0.0
  %277 = vmatpush1.xpose.msra.mxu0 %v246
  %278 = vmatprep.subr.mxu0 0.0
  %279 = vmatpush1.xpose.msra.mxu0 %v244
  %280 = vmatprep.subr.mxu0 0.0
  %281 = vmatpush2.xpose.msra.mxu0 0.0
  %282 = vmatprep.subr.mxu0 0.0
  %283 = vmatpush2.xpose.msra.mxu0 0.0
  %284 = vmatprep.subr.mxu0 0.0
  %285 = vmatpush2.xpose.msra.mxu0 0.0
  %286 = vmatprep.subr.mxu0 0.0
  %287 = vmatpush2.xpose.msra.mxu0 0.0
  %288 = vmatprep.subr.mxu0 0.0
  %289 = vmatpush2.xpose.msra.mxu0 0.0
  %290 = vmatprep.subr.mxu0 0.0
  %291 = vmatpush2.xpose.msra.mxu0 0.0
  %292 = vmatprep.subr.mxu0 0.0
  %293 = vmatpush2.xpose.msra.mxu0 0.0
  %294 = vmatprep.subr.mxu0 0.0
  %295 = vmatpush2.xpose.msra.mxu0 0.0
  %296 = vmatprep.subr.mxu0 0.0
  %297 = vmatpush2.xpose.msra.mxu0 0.0
  %298 = vmatprep.subr.mxu0 0.0
  %299 = vmatpush2.xpose.msra.mxu0 0.0
  %300 = vmatprep.subr.mxu0 0.0
  %301 = vmatpush2.xpose.msra.mxu0 0.0
  %302 = vmatprep.subr.mxu0 0.0
  %303 = vmatpush2.xpose.msra.mxu0 0.0
  %304 = vmatprep.subr.mxu0 0.0
  %305 = vmatpush2.xpose.msra.mxu0 0.0
  %306 = vmatprep.subr.mxu0 0.0
  %307 = vmatpush2.xpose.msra.mxu0 0.0
  %308 = vmatprep.subr.mxu0 0.0
  %309 = vmatpush2.xpose.msra.mxu0 0.0
  %310 = vmatprep.subr.mxu0 0.0
  %311 = vmatpush2.xpose.msra.mxu0 0.0
  %312 = vmatprep.mubr.f32.mxu0 0.0
  %313 = vmatmul.mubr.f32.gmra.mxu0 %v242
  %v314 = vpop.f32.mrf.mxu0
  %v315 = vadd.f32 %v26, %v314
  %v316 = vpop.f32.mrf.mxu0
  %317 = vdwg.mxu0
  %v318 = vsel %vm27, %v315, -inf
  %319 = vmax.xlane.f32.xlu0 %v318
  %v320 = vpop.xlane.xlu0 %319
  %v321 = vsub.f32 %v315, %v320
  %v322 = vmul.f32 %v321, 1.442695
  %v323 = vpow.pop %v322
  %v324 = vsel %vm27, %v323, 0.0
  %325 = vadd.xlane.f32.xlu0 %v324
  %v326 = vpop.xlane.xlu0 %325
  %v327 = vmax.f32 %v326, 1e-30
  %v328 = vrcp.pop %v327
  %v329 = vmul.f32 %v323, %v328
  %vm330 = vcmp.ge.s32.totalorder %v234, 0
  %vm331 = vcmp.lt.s32.totalorder %v234, 8
  %vm332 = vmand %vm330, %vm331
  %v333 = vsel %vm332, 1, 0
  %vm334 = vcmp.eq.s32.totalorder %v333, 1
  %335 = vrot.lane.b32.xlu0 %v147, 64
  %v336 = vpop.permute.xlu0 %335
  %337 = vrot.lane.b32.xlu0 %v153, 64
  %v338 = vpop.permute.xlu0 %337
  %v341 = vsel %vm334, %v336, 0.0
  %v342 = vsel %vm334, %v338, 0.0
  %343 = vrot.lane.b32.xlu0 %v230, 120
  %v344 = vpop.permute.xlu0 %343
  %345 = vrot.lane.b32.xlu0 %v147, 88
  %v346 = vpop.permute.xlu0 %345
  %347 = vrot.lane.b32.xlu0 %v153, 88
  %v348 = vpop.permute.xlu0 %347
  %v349 = vsel %vm36, %v344, 0
  %v351 = vsel %vm36, %v346, 0
  %v353 = vsel %vm36, %v348, 0
  %355 = vmatprep.subr.mxu0 0.0
  %356 = vmatpush1.xpose.msra.mxu0 0.0
  %357 = vmatprep.subr.mxu0 0.0
  %358 = vmatpush1.xpose.msra.mxu0 0.0
  %359 = vmatprep.subr.mxu0 0.0
  %360 = vmatpush1.xpose.msra.mxu0 0.0
  %361 = vmatprep.subr.mxu0 0.0
  %362 = vmatpush1.xpose.msra.mxu0 0.0
  %363 = vmatprep.subr.mxu0 0.0
  %364 = vmatpush1.xpose.msra.mxu0 0.0
  %365 = vmatprep.subr.mxu0 0.0
  %366 = vmatpush1.xpose.msra.mxu0 0.0
  %367 = vmatprep.subr.mxu0 0.0
  %368 = vmatpush1.xpose.msra.mxu0 0.0
  %369 = vmatprep.subr.mxu0 0.0
  %370 = vmatpush1.xpose.msra.mxu0 0.0
  %371 = vmatprep.subr.mxu0 0.0
  %372 = vmatpush1.xpose.msra.mxu0 0.0
  %373 = vmatprep.subr.mxu0 0.0
  %374 = vmatpush1.xpose.msra.mxu0 0.0
  %375 = vmatprep.subr.mxu0 0.0
  %376 = vmatpush1.xpose.msra.mxu0 0.0
  %377 = vmatprep.subr.mxu0 0.0
  %378 = vmatpush1.xpose.msra.mxu0 0.0
  %379 = vmatprep.subr.mxu0 0.0
  %380 = vmatpush1.xpose.msra.mxu0 0.0
  %381 = vmatprep.subr.mxu0 0.0
  %382 = vmatpush1.xpose.msra.mxu0 0.0
  %383 = vmatprep.subr.mxu0 0.0
  %384 = vmatpush1.xpose.msra.mxu0 %v353
  %385 = vmatprep.subr.mxu0 0.0
  %386 = vmatpush1.xpose.msra.mxu0 %v351
  %387 = vmatprep.subr.mxu0 0.0
  %388 = vmatpush2.xpose.msra.mxu0 0.0
  %389 = vmatprep.subr.mxu0 0.0
  %390 = vmatpush2.xpose.msra.mxu0 0.0
  %391 = vmatprep.subr.mxu0 0.0
  %392 = vmatpush2.xpose.msra.mxu0 0.0
  %393 = vmatprep.subr.mxu0 0.0
  %394 = vmatpush2.xpose.msra.mxu0 0.0
  %395 = vmatprep.subr.mxu0 0.0
  %396 = vmatpush2.xpose.msra.mxu0 0.0
  %397 = vmatprep.subr.mxu0 0.0
  %398 = vmatpush2.xpose.msra.mxu0 0.0
  %399 = vmatprep.subr.mxu0 0.0
  %400 = vmatpush2.xpose.msra.mxu0 0.0
  %401 = vmatprep.subr.mxu0 0.0
  %402 = vmatpush2.xpose.msra.mxu0 0.0
  %403 = vmatprep.subr.mxu0 0.0
  %404 = vmatpush2.xpose.msra.mxu0 0.0
  %405 = vmatprep.subr.mxu0 0.0
  %406 = vmatpush2.xpose.msra.mxu0 0.0
  %407 = vmatprep.subr.mxu0 0.0
  %408 = vmatpush2.xpose.msra.mxu0 0.0
  %409 = vmatprep.subr.mxu0 0.0
  %410 = vmatpush2.xpose.msra.mxu0 0.0
  %411 = vmatprep.subr.mxu0 0.0
  %412 = vmatpush2.xpose.msra.mxu0 0.0
  %413 = vmatprep.subr.mxu0 0.0
  %414 = vmatpush2.xpose.msra.mxu0 0.0
  %415 = vmatprep.subr.mxu0 0.0
  %416 = vmatpush2.xpose.msra.mxu0 0.0
  %417 = vmatprep.subr.mxu0 0.0
  %418 = vmatpush2.xpose.msra.mxu0 0.0
  %419 = vmatprep.mubr.f32.mxu0 0.0
  %420 = vmatmul.mubr.f32.gmra.mxu0 %v349
  %v421 = vpop.f32.mrf.mxu0
  %v422 = vadd.f32 %v26, %v421
  %v423 = vpop.f32.mrf.mxu0
  %424 = vdwg.mxu0
  %v425 = vsel %vm27, %v422, -inf
  %426 = vmax.xlane.f32.xlu0 %v425
  %v427 = vpop.xlane.xlu0 %426
  %v428 = vsub.f32 %v422, %v427
  %v429 = vmul.f32 %v428, 1.442695
  %v430 = vpow.pop %v429
  %v431 = vsel %vm27, %v430, 0.0
  %432 = vadd.xlane.f32.xlu0 %v431
  %v433 = vpop.xlane.xlu0 %432
  %v434 = vmax.f32 %v433, 1e-30
  %v435 = vrcp.pop %v434
  %v436 = vmul.f32 %v430, %v435
  %vm437 = vcmp.ge.s32.totalorder %v234, 8
  %vm438 = vcmp.lt.s32.totalorder %v234, 16
  %vm439 = vmand %vm437, %vm438
  %v440 = vsel %vm439, 1, 0
  %vm441 = vcmp.eq.s32.totalorder %v440, 1
  %v442 = vsel %vm441, %v336, 0.0
  %v443 = vsel %vm441, %v338, 0.0
  %v445 = vsel %vm27, %v436, 0
  %447 = vmatprep.subr.mxu0 0.0
  %448 = vmatpush1.msra.mxu0 0.0
  %449 = vmatprep.subr.mxu0 0.0
  %450 = vmatpush1.msra.mxu0 0.0
  %451 = vmatprep.subr.mxu0 0.0
  %452 = vmatpush1.msra.mxu0 0.0
  %453 = vmatprep.subr.mxu0 0.0
  %454 = vmatpush1.msra.mxu0 0.0
  %455 = vmatprep.subr.mxu0 0.0
  %456 = vmatpush1.msra.mxu0 0.0
  %457 = vmatprep.subr.mxu0 0.0
  %458 = vmatpush1.msra.mxu0 0.0
  %459 = vmatprep.subr.mxu0 0.0
  %460 = vmatpush1.msra.mxu0 0.0
  %461 = vmatprep.subr.mxu0 0.0
  %462 = vmatpush1.msra.mxu0 0.0
  %463 = vmatprep.subr.mxu0 0.0
  %464 = vmatpush1.msra.mxu0 0.0
  %465 = vmatprep.subr.mxu0 0.0
  %466 = vmatpush1.msra.mxu0 0.0
  %467 = vmatprep.subr.mxu0 0.0
  %468 = vmatpush1.msra.mxu0 0.0
  %469 = vmatprep.subr.mxu0 0.0
  %470 = vmatpush1.msra.mxu0 0.0
  %471 = vmatprep.subr.mxu0 0.0
  %472 = vmatpush1.msra.mxu0 0.0
  %473 = vmatprep.subr.mxu0 0.0
  %474 = vmatpush1.msra.mxu0 0.0
  %475 = vmatprep.subr.mxu0 0.0
  %476 = vmatpush1.msra.mxu0 %v443
  %477 = vmatprep.subr.mxu0 0.0
  %478 = vmatpush1.msra.mxu0 %v442
  %479 = vmatprep.subr.mxu0 0.0
  %480 = vmatpush2.msra.mxu0 0.0
  %481 = vmatprep.subr.mxu0 0.0
  %482 = vmatpush2.msra.mxu0 0.0
  %483 = vmatprep.subr.mxu0 0.0
  %484 = vmatpush2.msra.mxu0 0.0
  %485 = vmatprep.subr.mxu0 0.0
  %486 = vmatpush2.msra.mxu0 0.0
  %487 = vmatprep.subr.mxu0 0.0
  %488 = vmatpush2.msra.mxu0 0.0
  %489 = vmatprep.subr.mxu0 0.0
  %490 = vmatpush2.msra.mxu0 0.0
  %491 = vmatprep.subr.mxu0 0.0
  %492 = vmatpush2.msra.mxu0 0.0
  %493 = vmatprep.subr.mxu0 0.0
  %494 = vmatpush2.msra.mxu0 0.0
  %495 = vmatprep.subr.mxu0 0.0
  %496 = vmatpush2.msra.mxu0 0.0
  %497 = vmatprep.subr.mxu0 0.0
  %498 = vmatpush2.msra.mxu0 0.0
  %499 = vmatprep.subr.mxu0 0.0
  %500 = vmatpush2.msra.mxu0 0.0
  %501 = vmatprep.subr.mxu0 0.0
  %502 = vmatpush2.msra.mxu0 0.0
  %503 = vmatprep.subr.mxu0 0.0
  %504 = vmatpush2.msra.mxu0 0.0
  %505 = vmatprep.subr.mxu0 0.0
  %506 = vmatpush2.msra.mxu0 0.0
  %507 = vmatprep.subr.mxu0 0.0
  %508 = vmatpush2.msra.mxu0 0.0
  %509 = vmatprep.subr.mxu0 0.0
  %510 = vmatpush2.msra.mxu0 0.0
  %511 = vmatprep.mubr.f32.mxu0 0.0
  %512 = vmatmul.mubr.f32.gmra.mxu0 %v445
  %v513 = vpop.f32.mrf.mxu0
  %v514 = vadd.f32 0.0, %v513
  %v515 = vpop.f32.mrf.mxu0
  %516 = vdwg.mxu0
  %v518 = vsel %vm27, %v329, 0
  %520 = vmatprep.subr.mxu0 0.0
  %521 = vmatpush1.msra.mxu0 0.0
  %522 = vmatprep.subr.mxu0 0.0
  %523 = vmatpush1.msra.mxu0 0.0
  %524 = vmatprep.subr.mxu0 0.0
  %525 = vmatpush1.msra.mxu0 0.0
  %526 = vmatprep.subr.mxu0 0.0
  %527 = vmatpush1.msra.mxu0 0.0
  %528 = vmatprep.subr.mxu0 0.0
  %529 = vmatpush1.msra.mxu0 0.0
  %530 = vmatprep.subr.mxu0 0.0
  %531 = vmatpush1.msra.mxu0 0.0
  %532 = vmatprep.subr.mxu0 0.0
  %533 = vmatpush1.msra.mxu0 0.0
  %534 = vmatprep.subr.mxu0 0.0
  %535 = vmatpush1.msra.mxu0 0.0
  %536 = vmatprep.subr.mxu0 0.0
  %537 = vmatpush1.msra.mxu0 0.0
  %538 = vmatprep.subr.mxu0 0.0
  %539 = vmatpush1.msra.mxu0 0.0
  %540 = vmatprep.subr.mxu0 0.0
  %541 = vmatpush1.msra.mxu0 0.0
  %542 = vmatprep.subr.mxu0 0.0
  %543 = vmatpush1.msra.mxu0 0.0
  %544 = vmatprep.subr.mxu0 0.0
  %545 = vmatpush1.msra.mxu0 0.0
  %546 = vmatprep.subr.mxu0 0.0
  %547 = vmatpush1.msra.mxu0 0.0
  %548 = vmatprep.subr.mxu0 0.0
  %549 = vmatpush1.msra.mxu0 %v342
  %550 = vmatprep.subr.mxu0 0.0
  %551 = vmatpush1.msra.mxu0 %v341
  %552 = vmatprep.subr.mxu0 0.0
  %553 = vmatpush2.msra.mxu0 0.0
  %554 = vmatprep.subr.mxu0 0.0
  %555 = vmatpush2.msra.mxu0 0.0
  %556 = vmatprep.subr.mxu0 0.0
  %557 = vmatpush2.msra.mxu0 0.0
  %558 = vmatprep.subr.mxu0 0.0
  %559 = vmatpush2.msra.mxu0 0.0
  %560 = vmatprep.subr.mxu0 0.0
  %561 = vmatpush2.msra.mxu0 0.0
  %562 = vmatprep.subr.mxu0 0.0
  %563 = vmatpush2.msra.mxu0 0.0
  %564 = vmatprep.subr.mxu0 0.0
  %565 = vmatpush2.msra.mxu0 0.0
  %566 = vmatprep.subr.mxu0 0.0
  %567 = vmatpush2.msra.mxu0 0.0
  %568 = vmatprep.subr.mxu0 0.0
  %569 = vmatpush2.msra.mxu0 0.0
  %570 = vmatprep.subr.mxu0 0.0
  %571 = vmatpush2.msra.mxu0 0.0
  %572 = vmatprep.subr.mxu0 0.0
  %573 = vmatpush2.msra.mxu0 0.0
  %574 = vmatprep.subr.mxu0 0.0
  %575 = vmatpush2.msra.mxu0 0.0
  %576 = vmatprep.subr.mxu0 0.0
  %577 = vmatpush2.msra.mxu0 0.0
  %578 = vmatprep.subr.mxu0 0.0
  %579 = vmatpush2.msra.mxu0 0.0
  %580 = vmatprep.subr.mxu0 0.0
  %581 = vmatpush2.msra.mxu0 0.0
  %582 = vmatprep.subr.mxu0 0.0
  %583 = vmatpush2.msra.mxu0 0.0
  %584 = vmatprep.mubr.f32.mxu0 0.0
  %585 = vmatmul.mubr.f32.gmra.mxu0 %v518
  %v586 = vpop.f32.mrf.mxu0
  %v587 = vadd.f32 %v514, %v586
  %v588 = vpop.f32.mrf.mxu0
  %589 = vdwg.mxu0
  %590 = vrot.lane.b32.xlu0 %v230, 112
  %v591 = vpop.permute.xlu0 %590
  %592 = vrot.lane.b32.xlu0 %v147, 80
  %v593 = vpop.permute.xlu0 %592
  %594 = vrot.lane.b32.xlu0 %v153, 80
  %v595 = vpop.permute.xlu0 %594
  %v596 = vsel %vm36, %v591, 0
  %v598 = vsel %vm36, %v593, 0
  %v600 = vsel %vm36, %v595, 0
  %602 = vmatprep.subr.mxu0 0.0
  %603 = vmatpush1.xpose.msra.mxu0 0.0
  %604 = vmatprep.subr.mxu0 0.0
  %605 = vmatpush1.xpose.msra.mxu0 0.0
  %606 = vmatprep.subr.mxu0 0.0
  %607 = vmatpush1.xpose.msra.mxu0 0.0
  %608 = vmatprep.subr.mxu0 0.0
  %609 = vmatpush1.xpose.msra.mxu0 0.0
  %610 = vmatprep.subr.mxu0 0.0
  %611 = vmatpush1.xpose.msra.mxu0 0.0
  %612 = vmatprep.subr.mxu0 0.0
  %613 = vmatpush1.xpose.msra.mxu0 0.0
  %614 = vmatprep.subr.mxu0 0.0
  %615 = vmatpush1.xpose.msra.mxu0 0.0
  %616 = vmatprep.subr.mxu0 0.0
  %617 = vmatpush1.xpose.msra.mxu0 0.0
  %618 = vmatprep.subr.mxu0 0.0
  %619 = vmatpush1.xpose.msra.mxu0 0.0
  %620 = vmatprep.subr.mxu0 0.0
  %621 = vmatpush1.xpose.msra.mxu0 0.0
  %622 = vmatprep.subr.mxu0 0.0
  %623 = vmatpush1.xpose.msra.mxu0 0.0
  %624 = vmatprep.subr.mxu0 0.0
  %625 = vmatpush1.xpose.msra.mxu0 0.0
  %626 = vmatprep.subr.mxu0 0.0
  %627 = vmatpush1.xpose.msra.mxu0 0.0
  %628 = vmatprep.subr.mxu0 0.0
  %629 = vmatpush1.xpose.msra.mxu0 0.0
  %630 = vmatprep.subr.mxu0 0.0
  %631 = vmatpush1.xpose.msra.mxu0 %v600
  %632 = vmatprep.subr.mxu0 0.0
  %633 = vmatpush1.xpose.msra.mxu0 %v598
  %634 = vmatprep.subr.mxu0 0.0
  %635 = vmatpush2.xpose.msra.mxu0 0.0
  %636 = vmatprep.subr.mxu0 0.0
  %637 = vmatpush2.xpose.msra.mxu0 0.0
  %638 = vmatprep.subr.mxu0 0.0
  %639 = vmatpush2.xpose.msra.mxu0 0.0
  %640 = vmatprep.subr.mxu0 0.0
  %641 = vmatpush2.xpose.msra.mxu0 0.0
  %642 = vmatprep.subr.mxu0 0.0
  %643 = vmatpush2.xpose.msra.mxu0 0.0
  %644 = vmatprep.subr.mxu0 0.0
  %645 = vmatpush2.xpose.msra.mxu0 0.0
  %646 = vmatprep.subr.mxu0 0.0
  %647 = vmatpush2.xpose.msra.mxu0 0.0
  %648 = vmatprep.subr.mxu0 0.0
  %649 = vmatpush2.xpose.msra.mxu0 0.0
  %650 = vmatprep.subr.mxu0 0.0
  %651 = vmatpush2.xpose.msra.mxu0 0.0
  %652 = vmatprep.subr.mxu0 0.0
  %653 = vmatpush2.xpose.msra.mxu0 0.0
  %654 = vmatprep.subr.mxu0 0.0
  %655 = vmatpush2.xpose.msra.mxu0 0.0
  %656 = vmatprep.subr.mxu0 0.0
  %657 = vmatpush2.xpose.msra.mxu0 0.0
  %658 = vmatprep.subr.mxu0 0.0
  %659 = vmatpush2.xpose.msra.mxu0 0.0
  %660 = vmatprep.subr.mxu0 0.0
  %661 = vmatpush2.xpose.msra.mxu0 0.0
  %662 = vmatprep.subr.mxu0 0.0
  %663 = vmatpush2.xpose.msra.mxu0 0.0
  %664 = vmatprep.subr.mxu0 0.0
  %665 = vmatpush2.xpose.msra.mxu0 0.0
  %666 = vmatprep.mubr.f32.mxu0 0.0
  %667 = vmatmul.mubr.f32.gmra.mxu0 %v596
  %v668 = vpop.f32.mrf.mxu0
  %v669 = vadd.f32 %v26, %v668
  %v670 = vpop.f32.mrf.mxu0
  %671 = vdwg.mxu0
  %v672 = vsel %vm27, %v669, -inf
  %673 = vmax.xlane.f32.xlu0 %v672
  %v674 = vpop.xlane.xlu0 %673
  %v675 = vsub.f32 %v669, %v674
  %v676 = vmul.f32 %v675, 1.442695
  %v677 = vpow.pop %v676
  %v678 = vsel %vm27, %v677, 0.0
  %679 = vadd.xlane.f32.xlu0 %v678
  %v680 = vpop.xlane.xlu0 %679
  %v681 = vmax.f32 %v680, 1e-30
  %v682 = vrcp.pop %v681
  %v683 = vmul.f32 %v677, %v682
  %vm684 = vcmp.ge.s32.totalorder %v234, 16
  %vm685 = vcmp.lt.s32.totalorder %v234, 24
  %vm686 = vmand %vm684, %vm685
  %v687 = vsel %vm686, 1, 0
  %vm688 = vcmp.eq.s32.totalorder %v687, 1
  %v689 = vsel %vm688, %v336, 0.0
  %v690 = vsel %vm688, %v338, 0.0
  %v692 = vsel %vm27, %v683, 0
  %694 = vmatprep.subr.mxu0 0.0
  %695 = vmatpush1.msra.mxu0 0.0
  %696 = vmatprep.subr.mxu0 0.0
  %697 = vmatpush1.msra.mxu0 0.0
  %698 = vmatprep.subr.mxu0 0.0
  %699 = vmatpush1.msra.mxu0 0.0
  %700 = vmatprep.subr.mxu0 0.0
  %701 = vmatpush1.msra.mxu0 0.0
  %702 = vmatprep.subr.mxu0 0.0
  %703 = vmatpush1.msra.mxu0 0.0
  %704 = vmatprep.subr.mxu0 0.0
  %705 = vmatpush1.msra.mxu0 0.0
  %706 = vmatprep.subr.mxu0 0.0
  %707 = vmatpush1.msra.mxu0 0.0
  %708 = vmatprep.subr.mxu0 0.0
  %709 = vmatpush1.msra.mxu0 0.0
  %710 = vmatprep.subr.mxu0 0.0
  %711 = vmatpush1.msra.mxu0 0.0
  %712 = vmatprep.subr.mxu0 0.0
  %713 = vmatpush1.msra.mxu0 0.0
  %714 = vmatprep.subr.mxu0 0.0
  %715 = vmatpush1.msra.mxu0 0.0
  %716 = vmatprep.subr.mxu0 0.0
  %717 = vmatpush1.msra.mxu0 0.0
  %718 = vmatprep.subr.mxu0 0.0
  %719 = vmatpush1.msra.mxu0 0.0
  %720 = vmatprep.subr.mxu0 0.0
  %721 = vmatpush1.msra.mxu0 0.0
  %722 = vmatprep.subr.mxu0 0.0
  %723 = vmatpush1.msra.mxu0 %v690
  %724 = vmatprep.subr.mxu0 0.0
  %725 = vmatpush1.msra.mxu0 %v689
  %726 = vmatprep.subr.mxu0 0.0
  %727 = vmatpush2.msra.mxu0 0.0
  %728 = vmatprep.subr.mxu0 0.0
  %729 = vmatpush2.msra.mxu0 0.0
  %730 = vmatprep.subr.mxu0 0.0
  %731 = vmatpush2.msra.mxu0 0.0
  %732 = vmatprep.subr.mxu0 0.0
  %733 = vmatpush2.msra.mxu0 0.0
  %734 = vmatprep.subr.mxu0 0.0
  %735 = vmatpush2.msra.mxu0 0.0
  %736 = vmatprep.subr.mxu0 0.0
  %737 = vmatpush2.msra.mxu0 0.0
  %738 = vmatprep.subr.mxu0 0.0
  %739 = vmatpush2.msra.mxu0 0.0
  %740 = vmatprep.subr.mxu0 0.0
  %741 = vmatpush2.msra.mxu0 0.0
  %742 = vmatprep.subr.mxu0 0.0
  %743 = vmatpush2.msra.mxu0 0.0
  %744 = vmatprep.subr.mxu0 0.0
  %745 = vmatpush2.msra.mxu0 0.0
  %746 = vmatprep.subr.mxu0 0.0
  %747 = vmatpush2.msra.mxu0 0.0
  %748 = vmatprep.subr.mxu0 0.0
  %749 = vmatpush2.msra.mxu0 0.0
  %750 = vmatprep.subr.mxu0 0.0
  %751 = vmatpush2.msra.mxu0 0.0
  %752 = vmatprep.subr.mxu0 0.0
  %753 = vmatpush2.msra.mxu0 0.0
  %754 = vmatprep.subr.mxu0 0.0
  %755 = vmatpush2.msra.mxu0 0.0
  %756 = vmatprep.subr.mxu0 0.0
  %757 = vmatpush2.msra.mxu0 0.0
  %758 = vmatprep.mubr.f32.mxu0 0.0
  %759 = vmatmul.mubr.f32.gmra.mxu0 %v692
  %v760 = vpop.f32.mrf.mxu0
  %v761 = vadd.f32 0.0, %v760
  %v762 = vpop.f32.mrf.mxu0
  %763 = vdwg.mxu0
  %v764 = vadd.f32 %v587, %v761
  %765 = vrot.lane.b32.xlu0 %v230, 104
  %v766 = vpop.permute.xlu0 %765
  %767 = vrot.lane.b32.xlu0 %v147, 72
  %v768 = vpop.permute.xlu0 %767
  %769 = vrot.lane.b32.xlu0 %v153, 72
  %v770 = vpop.permute.xlu0 %769
  %v771 = vsel %vm36, %v766, 0
  %v773 = vsel %vm36, %v768, 0
  %v775 = vsel %vm36, %v770, 0
  %777 = vmatprep.subr.mxu0 0.0
  %778 = vmatpush1.xpose.msra.mxu0 0.0
  %779 = vmatprep.subr.mxu0 0.0
  %780 = vmatpush1.xpose.msra.mxu0 0.0
  %781 = vmatprep.subr.mxu0 0.0
  %782 = vmatpush1.xpose.msra.mxu0 0.0
  %783 = vmatprep.subr.mxu0 0.0
  %784 = vmatpush1.xpose.msra.mxu0 0.0
  %785 = vmatprep.subr.mxu0 0.0
  %786 = vmatpush1.xpose.msra.mxu0 0.0
  %787 = vmatprep.subr.mxu0 0.0
  %788 = vmatpush1.xpose.msra.mxu0 0.0
  %789 = vmatprep.subr.mxu0 0.0
  %790 = vmatpush1.xpose.msra.mxu0 0.0
  %791 = vmatprep.subr.mxu0 0.0
  %792 = vmatpush1.xpose.msra.mxu0 0.0
  %793 = vmatprep.subr.mxu0 0.0
  %794 = vmatpush1.xpose.msra.mxu0 0.0
  %795 = vmatprep.subr.mxu0 0.0
  %796 = vmatpush1.xpose.msra.mxu0 0.0
  %797 = vmatprep.subr.mxu0 0.0
  %798 = vmatpush1.xpose.msra.mxu0 0.0
  %799 = vmatprep.subr.mxu0 0.0
  %800 = vmatpush1.xpose.msra.mxu0 0.0
  %801 = vmatprep.subr.mxu0 0.0
  %802 = vmatpush1.xpose.msra.mxu0 0.0
  %803 = vmatprep.subr.mxu0 0.0
  %804 = vmatpush1.xpose.msra.mxu0 0.0
  %805 = vmatprep.subr.mxu0 0.0
  %806 = vmatpush1.xpose.msra.mxu0 %v775
  %807 = vmatprep.subr.mxu0 0.0
  %808 = vmatpush1.xpose.msra.mxu0 %v773
  %809 = vmatprep.subr.mxu0 0.0
  %810 = vmatpush2.xpose.msra.mxu0 0.0
  %811 = vmatprep.subr.mxu0 0.0
  %812 = vmatpush2.xpose.msra.mxu0 0.0
  %813 = vmatprep.subr.mxu0 0.0
  %814 = vmatpush2.xpose.msra.mxu0 0.0
  %815 = vmatprep.subr.mxu0 0.0
  %816 = vmatpush2.xpose.msra.mxu0 0.0
  %817 = vmatprep.subr.mxu0 0.0
  %818 = vmatpush2.xpose.msra.mxu0 0.0
  %819 = vmatprep.subr.mxu0 0.0
  %820 = vmatpush2.xpose.msra.mxu0 0.0
  %821 = vmatprep.subr.mxu0 0.0
  %822 = vmatpush2.xpose.msra.mxu0 0.0
  %823 = vmatprep.subr.mxu0 0.0
  %824 = vmatpush2.xpose.msra.mxu0 0.0
  %825 = vmatprep.subr.mxu0 0.0
  %826 = vmatpush2.xpose.msra.mxu0 0.0
  %827 = vmatprep.subr.mxu0 0.0
  %828 = vmatpush2.xpose.msra.mxu0 0.0
  %829 = vmatprep.subr.mxu0 0.0
  %830 = vmatpush2.xpose.msra.mxu0 0.0
  %831 = vmatprep.subr.mxu0 0.0
  %832 = vmatpush2.xpose.msra.mxu0 0.0
  %833 = vmatprep.subr.mxu0 0.0
  %834 = vmatpush2.xpose.msra.mxu0 0.0
  %835 = vmatprep.subr.mxu0 0.0
  %836 = vmatpush2.xpose.msra.mxu0 0.0
  %837 = vmatprep.subr.mxu0 0.0
  %838 = vmatpush2.xpose.msra.mxu0 0.0
  %839 = vmatprep.subr.mxu0 0.0
  %840 = vmatpush2.xpose.msra.mxu0 0.0
  %841 = vmatprep.mubr.f32.mxu0 0.0
  %842 = vmatmul.mubr.f32.gmra.mxu0 %v771
  %v843 = vpop.f32.mrf.mxu0
  %v844 = vadd.f32 %v26, %v843
  %v845 = vpop.f32.mrf.mxu0
  %846 = vdwg.mxu0
  %v847 = vsel %vm27, %v844, -inf
  %848 = vmax.xlane.f32.xlu0 %v847
  %v849 = vpop.xlane.xlu0 %848
  %v850 = vsub.f32 %v844, %v849
  %v851 = vmul.f32 %v850, 1.442695
  %v852 = vpow.pop %v851
  %v853 = vsel %vm27, %v852, 0.0
  %854 = vadd.xlane.f32.xlu0 %v853
  %v855 = vpop.xlane.xlu0 %854
  %v856 = vmax.f32 %v855, 1e-30
  %v857 = vrcp.pop %v856
  %v858 = vmul.f32 %v852, %v857
  %vm859 = vcmp.ge.s32.totalorder %v234, 24
  %vm860 = vcmp.lt.s32.totalorder %v234, 32
  %vm861 = vmand %vm859, %vm860
  %v862 = vsel %vm861, 1, 0
  %vm863 = vcmp.eq.s32.totalorder %v862, 1
  %v864 = vsel %vm863, %v336, 0.0
  %v865 = vsel %vm863, %v338, 0.0
  %v867 = vsel %vm27, %v858, 0
  %869 = vmatprep.subr.mxu0 0.0
  %870 = vmatpush1.msra.mxu0 0.0
  %871 = vmatprep.subr.mxu0 0.0
  %872 = vmatpush1.msra.mxu0 0.0
  %873 = vmatprep.subr.mxu0 0.0
  %874 = vmatpush1.msra.mxu0 0.0
  %875 = vmatprep.subr.mxu0 0.0
  %876 = vmatpush1.msra.mxu0 0.0
  %877 = vmatprep.subr.mxu0 0.0
  %878 = vmatpush1.msra.mxu0 0.0
  %879 = vmatprep.subr.mxu0 0.0
  %880 = vmatpush1.msra.mxu0 0.0
  %881 = vmatprep.subr.mxu0 0.0
  %882 = vmatpush1.msra.mxu0 0.0
  %883 = vmatprep.subr.mxu0 0.0
  %884 = vmatpush1.msra.mxu0 0.0
  %885 = vmatprep.subr.mxu0 0.0
  %886 = vmatpush1.msra.mxu0 0.0
  %887 = vmatprep.subr.mxu0 0.0
  %888 = vmatpush1.msra.mxu0 0.0
  %889 = vmatprep.subr.mxu0 0.0
  %890 = vmatpush1.msra.mxu0 0.0
  %891 = vmatprep.subr.mxu0 0.0
  %892 = vmatpush1.msra.mxu0 0.0
  %893 = vmatprep.subr.mxu0 0.0
  %894 = vmatpush1.msra.mxu0 0.0
  %895 = vmatprep.subr.mxu0 0.0
  %896 = vmatpush1.msra.mxu0 0.0
  %897 = vmatprep.subr.mxu0 0.0
  %898 = vmatpush1.msra.mxu0 %v865
  %899 = vmatprep.subr.mxu0 0.0
  %900 = vmatpush1.msra.mxu0 %v864
  %901 = vmatprep.subr.mxu0 0.0
  %902 = vmatpush2.msra.mxu0 0.0
  %903 = vmatprep.subr.mxu0 0.0
  %904 = vmatpush2.msra.mxu0 0.0
  %905 = vmatprep.subr.mxu0 0.0
  %906 = vmatpush2.msra.mxu0 0.0
  %907 = vmatprep.subr.mxu0 0.0
  %908 = vmatpush2.msra.mxu0 0.0
  %909 = vmatprep.subr.mxu0 0.0
  %910 = vmatpush2.msra.mxu0 0.0
  %911 = vmatprep.subr.mxu0 0.0
  %912 = vmatpush2.msra.mxu0 0.0
  %913 = vmatprep.subr.mxu0 0.0
  %914 = vmatpush2.msra.mxu0 0.0
  %915 = vmatprep.subr.mxu0 0.0
  %916 = vmatpush2.msra.mxu0 0.0
  %917 = vmatprep.subr.mxu0 0.0
  %918 = vmatpush2.msra.mxu0 0.0
  %919 = vmatprep.subr.mxu0 0.0
  %920 = vmatpush2.msra.mxu0 0.0
  %921 = vmatprep.subr.mxu0 0.0
  %922 = vmatpush2.msra.mxu0 0.0
  %923 = vmatprep.subr.mxu0 0.0
  %924 = vmatpush2.msra.mxu0 0.0
  %925 = vmatprep.subr.mxu0 0.0
  %926 = vmatpush2.msra.mxu0 0.0
  %927 = vmatprep.subr.mxu0 0.0
  %928 = vmatpush2.msra.mxu0 0.0
  %929 = vmatprep.subr.mxu0 0.0
  %930 = vmatpush2.msra.mxu0 0.0
  %931 = vmatprep.subr.mxu0 0.0
  %932 = vmatpush2.msra.mxu0 0.0
  %933 = vmatprep.mubr.f32.mxu0 0.0
  %934 = vmatmul.mubr.f32.gmra.mxu0 %v867
  %v935 = vpop.f32.mrf.mxu0
  %v936 = vadd.f32 0.0, %v935
  %v937 = vpop.f32.mrf.mxu0
  %938 = vdwg.mxu0
  %v939 = vadd.f32 %v764, %v936
  %v940 = vmul.f32 %v939, %v31
  %941 = vrot.lane.b32.xlu0 %v230, 96
  %v942 = vpop.permute.xlu0 %941
  %v943 = vsel %vm36, %v147, 0
  %v945 = vsel %vm36, %v153, 0
  %v947 = vsel %vm36, %v942, 0
  %949 = vmatprep.subr.mxu0 0.0
  %950 = vmatpush1.xpose.msra.mxu0 0.0
  %951 = vmatprep.subr.mxu0 0.0
  %952 = vmatpush1.xpose.msra.mxu0 0.0
  %953 = vmatprep.subr.mxu0 0.0
  %954 = vmatpush1.xpose.msra.mxu0 0.0
  %955 = vmatprep.subr.mxu0 0.0
  %956 = vmatpush1.xpose.msra.mxu0 0.0
  %957 = vmatprep.subr.mxu0 0.0
  %958 = vmatpush1.xpose.msra.mxu0 0.0
  %959 = vmatprep.subr.mxu0 0.0
  %960 = vmatpush1.xpose.msra.mxu0 0.0
  %961 = vmatprep.subr.mxu0 0.0
  %962 = vmatpush1.xpose.msra.mxu0 0.0
  %963 = vmatprep.subr.mxu0 0.0
  %964 = vmatpush1.xpose.msra.mxu0 0.0
  %965 = vmatprep.subr.mxu0 0.0
  %966 = vmatpush1.xpose.msra.mxu0 0.0
  %967 = vmatprep.subr.mxu0 0.0
  %968 = vmatpush1.xpose.msra.mxu0 0.0
  %969 = vmatprep.subr.mxu0 0.0
  %970 = vmatpush1.xpose.msra.mxu0 0.0
  %971 = vmatprep.subr.mxu0 0.0
  %972 = vmatpush1.xpose.msra.mxu0 0.0
  %973 = vmatprep.subr.mxu0 0.0
  %974 = vmatpush1.xpose.msra.mxu0 0.0
  %975 = vmatprep.subr.mxu0 0.0
  %976 = vmatpush1.xpose.msra.mxu0 0.0
  %977 = vmatprep.subr.mxu0 0.0
  %978 = vmatpush1.xpose.msra.mxu0 0.0
  %979 = vmatprep.subr.mxu0 0.0
  %980 = vmatpush1.xpose.msra.mxu0 %v947
  %981 = vmatprep.subr.mxu0 0.0
  %982 = vmatpush2.xpose.msra.mxu0 0.0
  %983 = vmatprep.subr.mxu0 0.0
  %984 = vmatpush2.xpose.msra.mxu0 0.0
  %985 = vmatprep.subr.mxu0 0.0
  %986 = vmatpush2.xpose.msra.mxu0 0.0
  %987 = vmatprep.subr.mxu0 0.0
  %988 = vmatpush2.xpose.msra.mxu0 0.0
  %989 = vmatprep.subr.mxu0 0.0
  %990 = vmatpush2.xpose.msra.mxu0 0.0
  %991 = vmatprep.subr.mxu0 0.0
  %992 = vmatpush2.xpose.msra.mxu0 0.0
  %993 = vmatprep.subr.mxu0 0.0
  %994 = vmatpush2.xpose.msra.mxu0 0.0
  %995 = vmatprep.subr.mxu0 0.0
  %996 = vmatpush2.xpose.msra.mxu0 0.0
  %997 = vmatprep.subr.mxu0 0.0
  %998 = vmatpush2.xpose.msra.mxu0 0.0
  %999 = vmatprep.subr.mxu0 0.0
  %1000 = vmatpush2.xpose.msra.mxu0 0.0
  %1001 = vmatprep.subr.mxu0 0.0
  %1002 = vmatpush2.xpose.msra.mxu0 0.0
  %1003 = vmatprep.subr.mxu0 0.0
  %1004 = vmatpush2.xpose.msra.mxu0 0.0
  %1005 = vmatprep.subr.mxu0 0.0
  %1006 = vmatpush2.xpose.msra.mxu0 0.0
  %1007 = vmatprep.subr.mxu0 0.0
  %1008 = vmatpush2.xpose.msra.mxu0 0.0
  %1009 = vmatprep.subr.mxu0 0.0
  %1010 = vmatpush2.xpose.msra.mxu0 0.0
  %1011 = vmatprep.subr.mxu0 0.0
  %1012 = vmatpush2.xpose.msra.mxu0 0.0
  %1013 = vmatprep.mubr.f32.mxu0 0.0
  %1014 = vmatmul.mubr.f32.gmra.mxu0 %v943
  %v1015 = vpop.f32.mrf.mxu0
  %v1016 = vadd.f32 %v34, %v1015
  %v1017 = vpop.f32.mrf.mxu0
  %1018 = vmatprep.mubr.f32.mxu0 0.0
  %1019 = vmatmul.mubr.f32.gmra.mxu0 %v945
  %v1020 = vpop.f32.mrf.mxu0
  %v1021 = vadd.f32 %v35, %v1020
  %v1022 = vpop.f32.mrf.mxu0
  %1023 = vdwg.mxu0
  %v1024 = vsel %vm36, %v1016, -inf
  %1025 = vmax.xlane.f32.xlu0 %v1024
  %v1026 = vpop.xlane.xlu0 %1025
  %v1027 = vsel %vm36, %v1021, -inf
  %1028 = vmax.xlane.f32.xlu0 %v1027
  %v1029 = vpop.xlane.xlu0 %1028
  %v1030 = vsub.f32 %v1016, %v1026
  %v1031 = vsub.f32 %v1021, %v1029
  %v1032 = vmul.f32 %v1030, 1.442695
  %v1033 = vpow.pop %v1032
  %v1034 = vmul.f32 %v1031, 1.442695
  %v1035 = vpow.pop %v1034
  %v1036 = vsel %vm36, %v1033, 0.0
  %1037 = vadd.xlane.f32.xlu0 %v1036
  %v1038 = vpop.xlane.xlu0 %1037
  %v1039 = vsel %vm36, %v1035, 0.0
  %1040 = vadd.xlane.f32.xlu0 %v1039
  %v1041 = vpop.xlane.xlu0 %1040
  %v1042 = vmax.f32 %v1038, 1e-30
  %v1043 = vmax.f32 %v1041, 1e-30
  %v1044 = vrcp.pop %v1042
  %v1045 = vrcp.pop %v1043
  %v1046 = vmul.f32 %v1033, %v1044
  %v1047 = vmul.f32 %v1035, %v1045
  %1048 = vrot.lane.b32.xlu0 %v230, 64
  %v1049 = vpop.permute.xlu0 %1048
  %v1051 = vsel %vm334, %v1049, 0.0
  %1052 = vrot.lane.b32.xlu0 %v147, 120
  %v1053 = vpop.permute.xlu0 %1052
  %1054 = vrot.lane.b32.xlu0 %v153, 120
  %v1055 = vpop.permute.xlu0 %1054
  %1056 = vrot.lane.b32.xlu0 %v230, 88
  %v1057 = vpop.permute.xlu0 %1056
  %v1058 = vsel %vm36, %v1053, 0
  %v1060 = vsel %vm36, %v1055, 0
  %v1062 = vsel %vm36, %v1057, 0
  %1064 = vmatprep.subr.mxu0 0.0
  %1065 = vmatpush1.xpose.msra.mxu0 0.0
  %1066 = vmatprep.subr.mxu0 0.0
  %1067 = vmatpush1.xpose.msra.mxu0 0.0
  %1068 = vmatprep.subr.mxu0 0.0
  %1069 = vmatpush1.xpose.msra.mxu0 0.0
  %1070 = vmatprep.subr.mxu0 0.0
  %1071 = vmatpush1.xpose.msra.mxu0 0.0
  %1072 = vmatprep.subr.mxu0 0.0
  %1073 = vmatpush1.xpose.msra.mxu0 0.0
  %1074 = vmatprep.subr.mxu0 0.0
  %1075 = vmatpush1.xpose.msra.mxu0 0.0
  %1076 = vmatprep.subr.mxu0 0.0
  %1077 = vmatpush1.xpose.msra.mxu0 0.0
  %1078 = vmatprep.subr.mxu0 0.0
  %1079 = vmatpush1.xpose.msra.mxu0 0.0
  %1080 = vmatprep.subr.mxu0 0.0
  %1081 = vmatpush1.xpose.msra.mxu0 0.0
  %1082 = vmatprep.subr.mxu0 0.0
  %1083 = vmatpush1.xpose.msra.mxu0 0.0
  %1084 = vmatprep.subr.mxu0 0.0
  %1085 = vmatpush1.xpose.msra.mxu0 0.0
  %1086 = vmatprep.subr.mxu0 0.0
  %1087 = vmatpush1.xpose.msra.mxu0 0.0
  %1088 = vmatprep.subr.mxu0 0.0
  %1089 = vmatpush1.xpose.msra.mxu0 0.0
  %1090 = vmatprep.subr.mxu0 0.0
  %1091 = vmatpush1.xpose.msra.mxu0 0.0
  %1092 = vmatprep.subr.mxu0 0.0
  %1093 = vmatpush1.xpose.msra.mxu0 0.0
  %1094 = vmatprep.subr.mxu0 0.0
  %1095 = vmatpush1.xpose.msra.mxu0 %v1062
  %1096 = vmatprep.subr.mxu0 0.0
  %1097 = vmatpush2.xpose.msra.mxu0 0.0
  %1098 = vmatprep.subr.mxu0 0.0
  %1099 = vmatpush2.xpose.msra.mxu0 0.0
  %1100 = vmatprep.subr.mxu0 0.0
  %1101 = vmatpush2.xpose.msra.mxu0 0.0
  %1102 = vmatprep.subr.mxu0 0.0
  %1103 = vmatpush2.xpose.msra.mxu0 0.0
  %1104 = vmatprep.subr.mxu0 0.0
  %1105 = vmatpush2.xpose.msra.mxu0 0.0
  %1106 = vmatprep.subr.mxu0 0.0
  %1107 = vmatpush2.xpose.msra.mxu0 0.0
  %1108 = vmatprep.subr.mxu0 0.0
  %1109 = vmatpush2.xpose.msra.mxu0 0.0
  %1110 = vmatprep.subr.mxu0 0.0
  %1111 = vmatpush2.xpose.msra.mxu0 0.0
  %1112 = vmatprep.subr.mxu0 0.0
  %1113 = vmatpush2.xpose.msra.mxu0 0.0
  %1114 = vmatprep.subr.mxu0 0.0
  %1115 = vmatpush2.xpose.msra.mxu0 0.0
  %1116 = vmatprep.subr.mxu0 0.0
  %1117 = vmatpush2.xpose.msra.mxu0 0.0
  %1118 = vmatprep.subr.mxu0 0.0
  %1119 = vmatpush2.xpose.msra.mxu0 0.0
  %1120 = vmatprep.subr.mxu0 0.0
  %1121 = vmatpush2.xpose.msra.mxu0 0.0
  %1122 = vmatprep.subr.mxu0 0.0
  %1123 = vmatpush2.xpose.msra.mxu0 0.0
  %1124 = vmatprep.subr.mxu0 0.0
  %1125 = vmatpush2.xpose.msra.mxu0 0.0
  %1126 = vmatprep.subr.mxu0 0.0
  %1127 = vmatpush2.xpose.msra.mxu0 0.0
  %1128 = vmatprep.mubr.f32.mxu0 0.0
  %1129 = vmatmul.mubr.f32.gmra.mxu0 %v1058
  %v1130 = vpop.f32.mrf.mxu0
  %v1131 = vadd.f32 %v34, %v1130
  %v1132 = vpop.f32.mrf.mxu0
  %1133 = vmatprep.mubr.f32.mxu0 0.0
  %1134 = vmatmul.mubr.f32.gmra.mxu0 %v1060
  %v1135 = vpop.f32.mrf.mxu0
  %v1136 = vadd.f32 %v35, %v1135
  %v1137 = vpop.f32.mrf.mxu0
  %1138 = vdwg.mxu0
  %v1139 = vsel %vm36, %v1131, -inf
  %1140 = vmax.xlane.f32.xlu0 %v1139
  %v1141 = vpop.xlane.xlu0 %1140
  %v1142 = vsel %vm36, %v1136, -inf
  %1143 = vmax.xlane.f32.xlu0 %v1142
  %v1144 = vpop.xlane.xlu0 %1143
  %v1145 = vsub.f32 %v1131, %v1141
  %v1146 = vsub.f32 %v1136, %v1144
  %v1147 = vmul.f32 %v1145, 1.442695
  %v1148 = vpow.pop %v1147
  %v1149 = vmul.f32 %v1146, 1.442695
  %v1150 = vpow.pop %v1149
  %v1151 = vsel %vm36, %v1148, 0.0
  %1152 = vadd.xlane.f32.xlu0 %v1151
  %v1153 = vpop.xlane.xlu0 %1152
  %v1154 = vsel %vm36, %v1150, 0.0
  %1155 = vadd.xlane.f32.xlu0 %v1154
  %v1156 = vpop.xlane.xlu0 %1155
  %v1157 = vmax.f32 %v1153, 1e-30
  %v1158 = vmax.f32 %v1156, 1e-30
  %v1159 = vrcp.pop %v1157
  %v1160 = vrcp.pop %v1158
  %v1161 = vmul.f32 %v1148, %v1159
  %v1162 = vmul.f32 %v1150, %v1160
  %v1163 = vsel %vm441, %v1049, 0.0
  %v1165 = vsel %vm36, %v1161, 0
  %v1168 = vsel %vm36, %v1162, 0
  %1170 = vmatprep.subr.mxu0 0.0
  %1171 = vmatpush1.msra.mxu0 0.0
  %1172 = vmatprep.subr.mxu0 0.0
  %1173 = vmatpush1.msra.mxu0 0.0
  %1174 = vmatprep.subr.mxu0 0.0
  %1175 = vmatpush1.msra.mxu0 0.0
  %1176 = vmatprep.subr.mxu0 0.0
  %1177 = vmatpush1.msra.mxu0 0.0
  %1178 = vmatprep.subr.mxu0 0.0
  %1179 = vmatpush1.msra.mxu0 0.0
  %1180 = vmatprep.subr.mxu0 0.0
  %1181 = vmatpush1.msra.mxu0 0.0
  %1182 = vmatprep.subr.mxu0 0.0
  %1183 = vmatpush1.msra.mxu0 0.0
  %1184 = vmatprep.subr.mxu0 0.0
  %1185 = vmatpush1.msra.mxu0 0.0
  %1186 = vmatprep.subr.mxu0 0.0
  %1187 = vmatpush1.msra.mxu0 0.0
  %1188 = vmatprep.subr.mxu0 0.0
  %1189 = vmatpush1.msra.mxu0 0.0
  %1190 = vmatprep.subr.mxu0 0.0
  %1191 = vmatpush1.msra.mxu0 0.0
  %1192 = vmatprep.subr.mxu0 0.0
  %1193 = vmatpush1.msra.mxu0 0.0
  %1194 = vmatprep.subr.mxu0 0.0
  %1195 = vmatpush1.msra.mxu0 0.0
  %1196 = vmatprep.subr.mxu0 0.0
  %1197 = vmatpush1.msra.mxu0 0.0
  %1198 = vmatprep.subr.mxu0 0.0
  %1199 = vmatpush1.msra.mxu0 0.0
  %1200 = vmatprep.subr.mxu0 0.0
  %1201 = vmatpush1.msra.mxu0 %v1163
  %1202 = vmatprep.subr.mxu0 0.0
  %1203 = vmatpush2.msra.mxu0 0.0
  %1204 = vmatprep.subr.mxu0 0.0
  %1205 = vmatpush2.msra.mxu0 0.0
  %1206 = vmatprep.subr.mxu0 0.0
  %1207 = vmatpush2.msra.mxu0 0.0
  %1208 = vmatprep.subr.mxu0 0.0
  %1209 = vmatpush2.msra.mxu0 0.0
  %1210 = vmatprep.subr.mxu0 0.0
  %1211 = vmatpush2.msra.mxu0 0.0
  %1212 = vmatprep.subr.mxu0 0.0
  %1213 = vmatpush2.msra.mxu0 0.0
  %1214 = vmatprep.subr.mxu0 0.0
  %1215 = vmatpush2.msra.mxu0 0.0
  %1216 = vmatprep.subr.mxu0 0.0
  %1217 = vmatpush2.msra.mxu0 0.0
  %1218 = vmatprep.subr.mxu0 0.0
  %1219 = vmatpush2.msra.mxu0 0.0
  %1220 = vmatprep.subr.mxu0 0.0
  %1221 = vmatpush2.msra.mxu0 0.0
  %1222 = vmatprep.subr.mxu0 0.0
  %1223 = vmatpush2.msra.mxu0 0.0
  %1224 = vmatprep.subr.mxu0 0.0
  %1225 = vmatpush2.msra.mxu0 0.0
  %1226 = vmatprep.subr.mxu0 0.0
  %1227 = vmatpush2.msra.mxu0 0.0
  %1228 = vmatprep.subr.mxu0 0.0
  %1229 = vmatpush2.msra.mxu0 0.0
  %1230 = vmatprep.subr.mxu0 0.0
  %1231 = vmatpush2.msra.mxu0 0.0
  %1232 = vmatprep.subr.mxu0 0.0
  %1233 = vmatpush2.msra.mxu0 0.0
  %1234 = vmatprep.mubr.f32.mxu0 0.0
  %1235 = vmatmul.mubr.f32.gmra.mxu0 %v1165
  %v1236 = vpop.f32.mrf.mxu0
  %v1237 = vadd.f32 0.0, %v1236
  %v1238 = vpop.f32.mrf.mxu0
  %1239 = vmatprep.mubr.f32.mxu0 0.0
  %1240 = vmatmul.mubr.f32.gmra.mxu0 %v1168
  %v1241 = vpop.f32.mrf.mxu0
  %v1242 = vadd.f32 0.0, %v1241
  %v1243 = vpop.f32.mrf.mxu0
  %1244 = vdwg.mxu0
  %v1246 = vsel %vm36, %v1046, 0
  %v1249 = vsel %vm36, %v1047, 0
  %1251 = vmatprep.subr.mxu0 0.0
  %1252 = vmatpush1.msra.mxu0 0.0
  %1253 = vmatprep.subr.mxu0 0.0
  %1254 = vmatpush1.msra.mxu0 0.0
  %1255 = vmatprep.subr.mxu0 0.0
  %1256 = vmatpush1.msra.mxu0 0.0
  %1257 = vmatprep.subr.mxu0 0.0
  %1258 = vmatpush1.msra.mxu0 0.0
  %1259 = vmatprep.subr.mxu0 0.0
  %1260 = vmatpush1.msra.mxu0 0.0
  %1261 = vmatprep.subr.mxu0 0.0
  %1262 = vmatpush1.msra.mxu0 0.0
  %1263 = vmatprep.subr.mxu0 0.0
  %1264 = vmatpush1.msra.mxu0 0.0
  %1265 = vmatprep.subr.mxu0 0.0
  %1266 = vmatpush1.msra.mxu0 0.0
  %1267 = vmatprep.subr.mxu0 0.0
  %1268 = vmatpush1.msra.mxu0 0.0
  %1269 = vmatprep.subr.mxu0 0.0
  %1270 = vmatpush1.msra.mxu0 0.0
  %1271 = vmatprep.subr.mxu0 0.0
  %1272 = vmatpush1.msra.mxu0 0.0
  %1273 = vmatprep.subr.mxu0 0.0
  %1274 = vmatpush1.msra.mxu0 0.0
  %1275 = vmatprep.subr.mxu0 0.0
  %1276 = vmatpush1.msra.mxu0 0.0
  %1277 = vmatprep.subr.mxu0 0.0
  %1278 = vmatpush1.msra.mxu0 0.0
  %1279 = vmatprep.subr.mxu0 0.0
  %1280 = vmatpush1.msra.mxu0 0.0
  %1281 = vmatprep.subr.mxu0 0.0
  %1282 = vmatpush1.msra.mxu0 %v1051
  %1283 = vmatprep.subr.mxu0 0.0
  %1284 = vmatpush2.msra.mxu0 0.0
  %1285 = vmatprep.subr.mxu0 0.0
  %1286 = vmatpush2.msra.mxu0 0.0
  %1287 = vmatprep.subr.mxu0 0.0
  %1288 = vmatpush2.msra.mxu0 0.0
  %1289 = vmatprep.subr.mxu0 0.0
  %1290 = vmatpush2.msra.mxu0 0.0
  %1291 = vmatprep.subr.mxu0 0.0
  %1292 = vmatpush2.msra.mxu0 0.0
  %1293 = vmatprep.subr.mxu0 0.0
  %1294 = vmatpush2.msra.mxu0 0.0
  %1295 = vmatprep.subr.mxu0 0.0
  %1296 = vmatpush2.msra.mxu0 0.0
  %1297 = vmatprep.subr.mxu0 0.0
  %1298 = vmatpush2.msra.mxu0 0.0
  %1299 = vmatprep.subr.mxu0 0.0
  %1300 = vmatpush2.msra.mxu0 0.0
  %1301 = vmatprep.subr.mxu0 0.0
  %1302 = vmatpush2.msra.mxu0 0.0
  %1303 = vmatprep.subr.mxu0 0.0
  %1304 = vmatpush2.msra.mxu0 0.0
  %1305 = vmatprep.subr.mxu0 0.0
  %1306 = vmatpush2.msra.mxu0 0.0
  %1307 = vmatprep.subr.mxu0 0.0
  %1308 = vmatpush2.msra.mxu0 0.0
  %1309 = vmatprep.subr.mxu0 0.0
  %1310 = vmatpush2.msra.mxu0 0.0
  %1311 = vmatprep.subr.mxu0 0.0
  %1312 = vmatpush2.msra.mxu0 0.0
  %1313 = vmatprep.subr.mxu0 0.0
  %1314 = vmatpush2.msra.mxu0 0.0
  %1315 = vmatprep.mubr.f32.mxu0 0.0
  %1316 = vmatmul.mubr.f32.gmra.mxu0 %v1246
  %v1317 = vpop.f32.mrf.mxu0
  %v1318 = vadd.f32 %v1237, %v1317
  %v1319 = vpop.f32.mrf.mxu0
  %1320 = vmatprep.mubr.f32.mxu0 0.0
  %1321 = vmatmul.mubr.f32.gmra.mxu0 %v1249
  %v1322 = vpop.f32.mrf.mxu0
  %v1323 = vadd.f32 %v1242, %v1322
  %v1324 = vpop.f32.mrf.mxu0
  %1325 = vdwg.mxu0
  %1326 = vrot.lane.b32.xlu0 %v147, 112
  %v1327 = vpop.permute.xlu0 %1326
  %1328 = vrot.lane.b32.xlu0 %v153, 112
  %v1329 = vpop.permute.xlu0 %1328
  %1330 = vrot.lane.b32.xlu0 %v230, 80
  %v1331 = vpop.permute.xlu0 %1330
  %v1332 = vsel %vm36, %v1327, 0
  %v1334 = vsel %vm36, %v1329, 0
  %v1336 = vsel %vm36, %v1331, 0
  %1338 = vmatprep.subr.mxu0 0.0
  %1339 = vmatpush1.xpose.msra.mxu0 0.0
  %1340 = vmatprep.subr.mxu0 0.0
  %1341 = vmatpush1.xpose.msra.mxu0 0.0
  %1342 = vmatprep.subr.mxu0 0.0
  %1343 = vmatpush1.xpose.msra.mxu0 0.0
  %1344 = vmatprep.subr.mxu0 0.0
  %1345 = vmatpush1.xpose.msra.mxu0 0.0
  %1346 = vmatprep.subr.mxu0 0.0
  %1347 = vmatpush1.xpose.msra.mxu0 0.0
  %1348 = vmatprep.subr.mxu0 0.0
  %1349 = vmatpush1.xpose.msra.mxu0 0.0
  %1350 = vmatprep.subr.mxu0 0.0
  %1351 = vmatpush1.xpose.msra.mxu0 0.0
  %1352 = vmatprep.subr.mxu0 0.0
  %1353 = vmatpush1.xpose.msra.mxu0 0.0
  %1354 = vmatprep.subr.mxu0 0.0
  %1355 = vmatpush1.xpose.msra.mxu0 0.0
  %1356 = vmatprep.subr.mxu0 0.0
  %1357 = vmatpush1.xpose.msra.mxu0 0.0
  %1358 = vmatprep.subr.mxu0 0.0
  %1359 = vmatpush1.xpose.msra.mxu0 0.0
  %1360 = vmatprep.subr.mxu0 0.0
  %1361 = vmatpush1.xpose.msra.mxu0 0.0
  %1362 = vmatprep.subr.mxu0 0.0
  %1363 = vmatpush1.xpose.msra.mxu0 0.0
  %1364 = vmatprep.subr.mxu0 0.0
  %1365 = vmatpush1.xpose.msra.mxu0 0.0
  %1366 = vmatprep.subr.mxu0 0.0
  %1367 = vmatpush1.xpose.msra.mxu0 0.0
  %1368 = vmatprep.subr.mxu0 0.0
  %1369 = vmatpush1.xpose.msra.mxu0 %v1336
  %1370 = vmatprep.subr.mxu0 0.0
  %1371 = vmatpush2.xpose.msra.mxu0 0.0
  %1372 = vmatprep.subr.mxu0 0.0
  %1373 = vmatpush2.xpose.msra.mxu0 0.0
  %1374 = vmatprep.subr.mxu0 0.0
  %1375 = vmatpush2.xpose.msra.mxu0 0.0
  %1376 = vmatprep.subr.mxu0 0.0
  %1377 = vmatpush2.xpose.msra.mxu0 0.0
  %1378 = vmatprep.subr.mxu0 0.0
  %1379 = vmatpush2.xpose.msra.mxu0 0.0
  %1380 = vmatprep.subr.mxu0 0.0
  %1381 = vmatpush2.xpose.msra.mxu0 0.0
  %1382 = vmatprep.subr.mxu0 0.0
  %1383 = vmatpush2.xpose.msra.mxu0 0.0
  %1384 = vmatprep.subr.mxu0 0.0
  %1385 = vmatpush2.xpose.msra.mxu0 0.0
  %1386 = vmatprep.subr.mxu0 0.0
  %1387 = vmatpush2.xpose.msra.mxu0 0.0
  %1388 = vmatprep.subr.mxu0 0.0
  %1389 = vmatpush2.xpose.msra.mxu0 0.0
  %1390 = vmatprep.subr.mxu0 0.0
  %1391 = vmatpush2.xpose.msra.mxu0 0.0
  %1392 = vmatprep.subr.mxu0 0.0
  %1393 = vmatpush2.xpose.msra.mxu0 0.0
  %1394 = vmatprep.subr.mxu0 0.0
  %1395 = vmatpush2.xpose.msra.mxu0 0.0
  %1396 = vmatprep.subr.mxu0 0.0
  %1397 = vmatpush2.xpose.msra.mxu0 0.0
  %1398 = vmatprep.subr.mxu0 0.0
  %1399 = vmatpush2.xpose.msra.mxu0 0.0
  %1400 = vmatprep.subr.mxu0 0.0
  %1401 = vmatpush2.xpose.msra.mxu0 0.0
  %1402 = vmatprep.mubr.f32.mxu0 0.0
  %1403 = vmatmul.mubr.f32.gmra.mxu0 %v1332
  %v1404 = vpop.f32.mrf.mxu0
  %v1405 = vadd.f32 %v34, %v1404
  %v1406 = vpop.f32.mrf.mxu0
  %1407 = vmatprep.mubr.f32.mxu0 0.0
  %1408 = vmatmul.mubr.f32.gmra.mxu0 %v1334
  %v1409 = vpop.f32.mrf.mxu0
  %v1410 = vadd.f32 %v35, %v1409
  %v1411 = vpop.f32.mrf.mxu0
  %1412 = vdwg.mxu0
  %v1413 = vsel %vm36, %v1405, -inf
  %1414 = vmax.xlane.f32.xlu0 %v1413
  %v1415 = vpop.xlane.xlu0 %1414
  %v1416 = vsel %vm36, %v1410, -inf
  %1417 = vmax.xlane.f32.xlu0 %v1416
  %v1418 = vpop.xlane.xlu0 %1417
  %v1419 = vsub.f32 %v1405, %v1415
  %v1420 = vsub.f32 %v1410, %v1418
  %v1421 = vmul.f32 %v1419, 1.442695
  %v1422 = vpow.pop %v1421
  %v1423 = vmul.f32 %v1420, 1.442695
  %v1424 = vpow.pop %v1423
  %v1425 = vsel %vm36, %v1422, 0.0
  %1426 = vadd.xlane.f32.xlu0 %v1425
  %v1427 = vpop.xlane.xlu0 %1426
  %v1428 = vsel %vm36, %v1424, 0.0
  %1429 = vadd.xlane.f32.xlu0 %v1428
  %v1430 = vpop.xlane.xlu0 %1429
  %v1431 = vmax.f32 %v1427, 1e-30
  %v1432 = vmax.f32 %v1430, 1e-30
  %v1433 = vrcp.pop %v1431
  %v1434 = vrcp.pop %v1432
  %v1435 = vmul.f32 %v1422, %v1433
  %v1436 = vmul.f32 %v1424, %v1434
  %v1437 = vsel %vm688, %v1049, 0.0
  %v1439 = vsel %vm36, %v1435, 0
  %v1442 = vsel %vm36, %v1436, 0
  %1444 = vmatprep.subr.mxu0 0.0
  %1445 = vmatpush1.msra.mxu0 0.0
  %1446 = vmatprep.subr.mxu0 0.0
  %1447 = vmatpush1.msra.mxu0 0.0
  %1448 = vmatprep.subr.mxu0 0.0
  %1449 = vmatpush1.msra.mxu0 0.0
  %1450 = vmatprep.subr.mxu0 0.0
  %1451 = vmatpush1.msra.mxu0 0.0
  %1452 = vmatprep.subr.mxu0 0.0
  %1453 = vmatpush1.msra.mxu0 0.0
  %1454 = vmatprep.subr.mxu0 0.0
  %1455 = vmatpush1.msra.mxu0 0.0
  %1456 = vmatprep.subr.mxu0 0.0
  %1457 = vmatpush1.msra.mxu0 0.0
  %1458 = vmatprep.subr.mxu0 0.0
  %1459 = vmatpush1.msra.mxu0 0.0
  %1460 = vmatprep.subr.mxu0 0.0
  %1461 = vmatpush1.msra.mxu0 0.0
  %1462 = vmatprep.subr.mxu0 0.0
  %1463 = vmatpush1.msra.mxu0 0.0
  %1464 = vmatprep.subr.mxu0 0.0
  %1465 = vmatpush1.msra.mxu0 0.0
  %1466 = vmatprep.subr.mxu0 0.0
  %1467 = vmatpush1.msra.mxu0 0.0
  %1468 = vmatprep.subr.mxu0 0.0
  %1469 = vmatpush1.msra.mxu0 0.0
  %1470 = vmatprep.subr.mxu0 0.0
  %1471 = vmatpush1.msra.mxu0 0.0
  %1472 = vmatprep.subr.mxu0 0.0
  %1473 = vmatpush1.msra.mxu0 0.0
  %1474 = vmatprep.subr.mxu0 0.0
  %1475 = vmatpush1.msra.mxu0 %v1437
  %1476 = vmatprep.subr.mxu0 0.0
  %1477 = vmatpush2.msra.mxu0 0.0
  %1478 = vmatprep.subr.mxu0 0.0
  %1479 = vmatpush2.msra.mxu0 0.0
  %1480 = vmatprep.subr.mxu0 0.0
  %1481 = vmatpush2.msra.mxu0 0.0
  %1482 = vmatprep.subr.mxu0 0.0
  %1483 = vmatpush2.msra.mxu0 0.0
  %1484 = vmatprep.subr.mxu0 0.0
  %1485 = vmatpush2.msra.mxu0 0.0
  %1486 = vmatprep.subr.mxu0 0.0
  %1487 = vmatpush2.msra.mxu0 0.0
  %1488 = vmatprep.subr.mxu0 0.0
  %1489 = vmatpush2.msra.mxu0 0.0
  %1490 = vmatprep.subr.mxu0 0.0
  %1491 = vmatpush2.msra.mxu0 0.0
  %1492 = vmatprep.subr.mxu0 0.0
  %1493 = vmatpush2.msra.mxu0 0.0
  %1494 = vmatprep.subr.mxu0 0.0
  %1495 = vmatpush2.msra.mxu0 0.0
  %1496 = vmatprep.subr.mxu0 0.0
  %1497 = vmatpush2.msra.mxu0 0.0
  %1498 = vmatprep.subr.mxu0 0.0
  %1499 = vmatpush2.msra.mxu0 0.0
  %1500 = vmatprep.subr.mxu0 0.0
  %1501 = vmatpush2.msra.mxu0 0.0
  %1502 = vmatprep.subr.mxu0 0.0
  %1503 = vmatpush2.msra.mxu0 0.0
  %1504 = vmatprep.subr.mxu0 0.0
  %1505 = vmatpush2.msra.mxu0 0.0
  %1506 = vmatprep.subr.mxu0 0.0
  %1507 = vmatpush2.msra.mxu0 0.0
  %1508 = vmatprep.mubr.f32.mxu0 0.0
  %1509 = vmatmul.mubr.f32.gmra.mxu0 %v1439
  %v1510 = vpop.f32.mrf.mxu0
  %v1511 = vadd.f32 0.0, %v1510
  %v1512 = vpop.f32.mrf.mxu0
  %1513 = vmatprep.mubr.f32.mxu0 0.0
  %1514 = vmatmul.mubr.f32.gmra.mxu0 %v1442
  %v1515 = vpop.f32.mrf.mxu0
  %v1516 = vadd.f32 0.0, %v1515
  %v1517 = vpop.f32.mrf.mxu0
  %1518 = vdwg.mxu0
  %v1519 = vadd.f32 %v1318, %v1511
  %v1520 = vadd.f32 %v1323, %v1516
  %1521 = vrot.lane.b32.xlu0 %v147, 104
  %v1522 = vpop.permute.xlu0 %1521
  %1523 = vrot.lane.b32.xlu0 %v153, 104
  %v1524 = vpop.permute.xlu0 %1523
  %1525 = vrot.lane.b32.xlu0 %v230, 72
  %v1526 = vpop.permute.xlu0 %1525
  %v1527 = vsel %vm36, %v1522, 0
  %v1529 = vsel %vm36, %v1524, 0
  %v1531 = vsel %vm36, %v1526, 0
  %1533 = vmatprep.subr.mxu0 0.0
  %1534 = vmatpush1.xpose.msra.mxu0 0.0
  %1535 = vmatprep.subr.mxu0 0.0
  %1536 = vmatpush1.xpose.msra.mxu0 0.0
  %1537 = vmatprep.subr.mxu0 0.0
  %1538 = vmatpush1.xpose.msra.mxu0 0.0
  %1539 = vmatprep.subr.mxu0 0.0
  %1540 = vmatpush1.xpose.msra.mxu0 0.0
  %1541 = vmatprep.subr.mxu0 0.0
  %1542 = vmatpush1.xpose.msra.mxu0 0.0
  %1543 = vmatprep.subr.mxu0 0.0
  %1544 = vmatpush1.xpose.msra.mxu0 0.0
  %1545 = vmatprep.subr.mxu0 0.0
  %1546 = vmatpush1.xpose.msra.mxu0 0.0
  %1547 = vmatprep.subr.mxu0 0.0
  %1548 = vmatpush1.xpose.msra.mxu0 0.0
  %1549 = vmatprep.subr.mxu0 0.0
  %1550 = vmatpush1.xpose.msra.mxu0 0.0
  %1551 = vmatprep.subr.mxu0 0.0
  %1552 = vmatpush1.xpose.msra.mxu0 0.0
  %1553 = vmatprep.subr.mxu0 0.0
  %1554 = vmatpush1.xpose.msra.mxu0 0.0
  %1555 = vmatprep.subr.mxu0 0.0
  %1556 = vmatpush1.xpose.msra.mxu0 0.0
  %1557 = vmatprep.subr.mxu0 0.0
  %1558 = vmatpush1.xpose.msra.mxu0 0.0
  %1559 = vmatprep.subr.mxu0 0.0
  %1560 = vmatpush1.xpose.msra.mxu0 0.0
  %1561 = vmatprep.subr.mxu0 0.0
  %1562 = vmatpush1.xpose.msra.mxu0 0.0
  %1563 = vmatprep.subr.mxu0 0.0
  %1564 = vmatpush1.xpose.msra.mxu0 %v1531
  %1565 = vmatprep.subr.mxu0 0.0
  %1566 = vmatpush2.xpose.msra.mxu0 0.0
  %1567 = vmatprep.subr.mxu0 0.0
  %1568 = vmatpush2.xpose.msra.mxu0 0.0
  %1569 = vmatprep.subr.mxu0 0.0
  %1570 = vmatpush2.xpose.msra.mxu0 0.0
  %1571 = vmatprep.subr.mxu0 0.0
  %1572 = vmatpush2.xpose.msra.mxu0 0.0
  %1573 = vmatprep.subr.mxu0 0.0
  %1574 = vmatpush2.xpose.msra.mxu0 0.0
  %1575 = vmatprep.subr.mxu0 0.0
  %1576 = vmatpush2.xpose.msra.mxu0 0.0
  %1577 = vmatprep.subr.mxu0 0.0
  %1578 = vmatpush2.xpose.msra.mxu0 0.0
  %1579 = vmatprep.subr.mxu0 0.0
  %1580 = vmatpush2.xpose.msra.mxu0 0.0
  %1581 = vmatprep.subr.mxu0 0.0
  %1582 = vmatpush2.xpose.msra.mxu0 0.0
  %1583 = vmatprep.subr.mxu0 0.0
  %1584 = vmatpush2.xpose.msra.mxu0 0.0
  %1585 = vmatprep.subr.mxu0 0.0
  %1586 = vmatpush2.xpose.msra.mxu0 0.0
  %1587 = vmatprep.subr.mxu0 0.0
  %1588 = vmatpush2.xpose.msra.mxu0 0.0
  %1589 = vmatprep.subr.mxu0 0.0
  %1590 = vmatpush2.xpose.msra.mxu0 0.0
  %1591 = vmatprep.subr.mxu0 0.0
  %1592 = vmatpush2.xpose.msra.mxu0 0.0
  %1593 = vmatprep.subr.mxu0 0.0
  %1594 = vmatpush2.xpose.msra.mxu0 0.0
  %1595 = vmatprep.subr.mxu0 0.0
  %1596 = vmatpush2.xpose.msra.mxu0 0.0
  %1597 = vmatprep.mubr.f32.mxu0 0.0
  %1598 = vmatmul.mubr.f32.gmra.mxu0 %v1527
  %v1599 = vpop.f32.mrf.mxu0
  %v1600 = vadd.f32 %v34, %v1599
  %v1601 = vpop.f32.mrf.mxu0
  %1602 = vmatprep.mubr.f32.mxu0 0.0
  %1603 = vmatmul.mubr.f32.gmra.mxu0 %v1529
  %v1604 = vpop.f32.mrf.mxu0
  %v1605 = vadd.f32 %v35, %v1604
  %v1606 = vpop.f32.mrf.mxu0
  %1607 = vdwg.mxu0
  %v1608 = vsel %vm36, %v1600, -inf
  %1609 = vmax.xlane.f32.xlu0 %v1608
  %v1610 = vpop.xlane.xlu0 %1609
  %v1611 = vsel %vm36, %v1605, -inf
  %1612 = vmax.xlane.f32.xlu0 %v1611
  %v1613 = vpop.xlane.xlu0 %1612
  %v1614 = vsub.f32 %v1600, %v1610
  %v1615 = vsub.f32 %v1605, %v1613
  %v1616 = vmul.f32 %v1614, 1.442695
  %v1617 = vpow.pop %v1616
  %v1618 = vmul.f32 %v1615, 1.442695
  %v1619 = vpow.pop %v1618
  %v1620 = vsel %vm36, %v1617, 0.0
  %1621 = vadd.xlane.f32.xlu0 %v1620
  %v1622 = vpop.xlane.xlu0 %1621
  %v1623 = vsel %vm36, %v1619, 0.0
  %1624 = vadd.xlane.f32.xlu0 %v1623
  %v1625 = vpop.xlane.xlu0 %1624
  %v1626 = vmax.f32 %v1622, 1e-30
  %v1627 = vmax.f32 %v1625, 1e-30
  %v1628 = vrcp.pop %v1626
  %v1629 = vrcp.pop %v1627
  %v1630 = vmul.f32 %v1617, %v1628
  %v1631 = vmul.f32 %v1619, %v1629
  %v1632 = vsel %vm863, %v1049, 0.0
  %v1634 = vsel %vm36, %v1630, 0
  %v1637 = vsel %vm36, %v1631, 0
  %1639 = vmatprep.subr.mxu0 0.0
  %1640 = vmatpush1.msra.mxu0 0.0
  %1641 = vmatprep.subr.mxu0 0.0
  %1642 = vmatpush1.msra.mxu0 0.0
  %1643 = vmatprep.subr.mxu0 0.0
  %1644 = vmatpush1.msra.mxu0 0.0
  %1645 = vmatprep.subr.mxu0 0.0
  %1646 = vmatpush1.msra.mxu0 0.0
  %1647 = vmatprep.subr.mxu0 0.0
  %1648 = vmatpush1.msra.mxu0 0.0
  %1649 = vmatprep.subr.mxu0 0.0
  %1650 = vmatpush1.msra.mxu0 0.0
  %1651 = vmatprep.subr.mxu0 0.0
  %1652 = vmatpush1.msra.mxu0 0.0
  %1653 = vmatprep.subr.mxu0 0.0
  %1654 = vmatpush1.msra.mxu0 0.0
  %1655 = vmatprep.subr.mxu0 0.0
  %1656 = vmatpush1.msra.mxu0 0.0
  %1657 = vmatprep.subr.mxu0 0.0
  %1658 = vmatpush1.msra.mxu0 0.0
  %1659 = vmatprep.subr.mxu0 0.0
  %1660 = vmatpush1.msra.mxu0 0.0
  %1661 = vmatprep.subr.mxu0 0.0
  %1662 = vmatpush1.msra.mxu0 0.0
  %1663 = vmatprep.subr.mxu0 0.0
  %1664 = vmatpush1.msra.mxu0 0.0
  %1665 = vmatprep.subr.mxu0 0.0
  %1666 = vmatpush1.msra.mxu0 0.0
  %1667 = vmatprep.subr.mxu0 0.0
  %1668 = vmatpush1.msra.mxu0 0.0
  %1669 = vmatprep.subr.mxu0 0.0
  %1670 = vmatpush1.msra.mxu0 %v1632
  %1671 = vmatprep.subr.mxu0 0.0
  %1672 = vmatpush2.msra.mxu0 0.0
  %1673 = vmatprep.subr.mxu0 0.0
  %1674 = vmatpush2.msra.mxu0 0.0
  %1675 = vmatprep.subr.mxu0 0.0
  %1676 = vmatpush2.msra.mxu0 0.0
  %1677 = vmatprep.subr.mxu0 0.0
  %1678 = vmatpush2.msra.mxu0 0.0
  %1679 = vmatprep.subr.mxu0 0.0
  %1680 = vmatpush2.msra.mxu0 0.0
  %1681 = vmatprep.subr.mxu0 0.0
  %1682 = vmatpush2.msra.mxu0 0.0
  %1683 = vmatprep.subr.mxu0 0.0
  %1684 = vmatpush2.msra.mxu0 0.0
  %1685 = vmatprep.subr.mxu0 0.0
  %1686 = vmatpush2.msra.mxu0 0.0
  %1687 = vmatprep.subr.mxu0 0.0
  %1688 = vmatpush2.msra.mxu0 0.0
  %1689 = vmatprep.subr.mxu0 0.0
  %1690 = vmatpush2.msra.mxu0 0.0
  %1691 = vmatprep.subr.mxu0 0.0
  %1692 = vmatpush2.msra.mxu0 0.0
  %1693 = vmatprep.subr.mxu0 0.0
  %1694 = vmatpush2.msra.mxu0 0.0
  %1695 = vmatprep.subr.mxu0 0.0
  %1696 = vmatpush2.msra.mxu0 0.0
  %1697 = vmatprep.subr.mxu0 0.0
  %1698 = vmatpush2.msra.mxu0 0.0
  %1699 = vmatprep.subr.mxu0 0.0
  %1700 = vmatpush2.msra.mxu0 0.0
  %1701 = vmatprep.subr.mxu0 0.0
  %1702 = vmatpush2.msra.mxu0 0.0
  %1703 = vmatprep.mubr.f32.mxu0 0.0
  %1704 = vmatmul.mubr.f32.gmra.mxu0 %v1634
  %v1705 = vpop.f32.mrf.mxu0
  %v1706 = vadd.f32 0.0, %v1705
  %v1707 = vpop.f32.mrf.mxu0
  %1708 = vmatprep.mubr.f32.mxu0 0.0
  %1709 = vmatmul.mubr.f32.gmra.mxu0 %v1637
  %v1710 = vpop.f32.mrf.mxu0
  %v1711 = vadd.f32 0.0, %v1710
  %v1712 = vpop.f32.mrf.mxu0
  %1713 = vdwg.mxu0
  %v1714 = vadd.f32 %v1519, %v1706
  %v1715 = vadd.f32 %v1520, %v1711
  %v1716 = vmul.f32 %v1714, %v43
  %v1717 = vmul.f32 %v1715, %v44
  %1718 = vrot.lane.b32.xlu0 %v147, 32
  %v1719 = vpop.permute.xlu0 %1718
  %1720 = vrot.lane.b32.xlu0 %v153, 32
  %v1721 = vpop.permute.xlu0 %1720
  %v1722 = vsel %vm36, %v1719, 0
  %v1724 = vsel %vm36, %v1721, 0
  %1726 = vmatprep.subr.mxu0 0.0
  %1727 = vmatpush1.xpose.msra.mxu0 0.0
  %1728 = vmatprep.subr.mxu0 0.0
  %1729 = vmatpush1.xpose.msra.mxu0 0.0
  %1730 = vmatprep.subr.mxu0 0.0
  %1731 = vmatpush1.xpose.msra.mxu0 0.0
  %1732 = vmatprep.subr.mxu0 0.0
  %1733 = vmatpush1.xpose.msra.mxu0 0.0
  %1734 = vmatprep.subr.mxu0 0.0
  %1735 = vmatpush1.xpose.msra.mxu0 0.0
  %1736 = vmatprep.subr.mxu0 0.0
  %1737 = vmatpush1.xpose.msra.mxu0 0.0
  %1738 = vmatprep.subr.mxu0 0.0
  %1739 = vmatpush1.xpose.msra.mxu0 0.0
  %1740 = vmatprep.subr.mxu0 0.0
  %1741 = vmatpush1.xpose.msra.mxu0 0.0
  %1742 = vmatprep.subr.mxu0 0.0
  %1743 = vmatpush1.xpose.msra.mxu0 0.0
  %1744 = vmatprep.subr.mxu0 0.0
  %1745 = vmatpush1.xpose.msra.mxu0 0.0
  %1746 = vmatprep.subr.mxu0 0.0
  %1747 = vmatpush1.xpose.msra.mxu0 0.0
  %1748 = vmatprep.subr.mxu0 0.0
  %1749 = vmatpush1.xpose.msra.mxu0 0.0
  %1750 = vmatprep.subr.mxu0 0.0
  %1751 = vmatpush1.xpose.msra.mxu0 0.0
  %1752 = vmatprep.subr.mxu0 0.0
  %1753 = vmatpush1.xpose.msra.mxu0 0.0
  %1754 = vmatprep.subr.mxu0 0.0
  %1755 = vmatpush1.xpose.msra.mxu0 %v1724
  %1756 = vmatprep.subr.mxu0 0.0
  %1757 = vmatpush1.xpose.msra.mxu0 %v1722
  %1758 = vmatprep.subr.mxu0 0.0
  %1759 = vmatpush2.xpose.msra.mxu0 0.0
  %1760 = vmatprep.subr.mxu0 0.0
  %1761 = vmatpush2.xpose.msra.mxu0 0.0
  %1762 = vmatprep.subr.mxu0 0.0
  %1763 = vmatpush2.xpose.msra.mxu0 0.0
  %1764 = vmatprep.subr.mxu0 0.0
  %1765 = vmatpush2.xpose.msra.mxu0 0.0
  %1766 = vmatprep.subr.mxu0 0.0
  %1767 = vmatpush2.xpose.msra.mxu0 0.0
  %1768 = vmatprep.subr.mxu0 0.0
  %1769 = vmatpush2.xpose.msra.mxu0 0.0
  %1770 = vmatprep.subr.mxu0 0.0
  %1771 = vmatpush2.xpose.msra.mxu0 0.0
  %1772 = vmatprep.subr.mxu0 0.0
  %1773 = vmatpush2.xpose.msra.mxu0 0.0
  %1774 = vmatprep.subr.mxu0 0.0
  %1775 = vmatpush2.xpose.msra.mxu0 0.0
  %1776 = vmatprep.subr.mxu0 0.0
  %1777 = vmatpush2.xpose.msra.mxu0 0.0
  %1778 = vmatprep.subr.mxu0 0.0
  %1779 = vmatpush2.xpose.msra.mxu0 0.0
  %1780 = vmatprep.subr.mxu0 0.0
  %1781 = vmatpush2.xpose.msra.mxu0 0.0
  %1782 = vmatprep.subr.mxu0 0.0
  %1783 = vmatpush2.xpose.msra.mxu0 0.0
  %1784 = vmatprep.subr.mxu0 0.0
  %1785 = vmatpush2.xpose.msra.mxu0 0.0
  %1786 = vmatprep.subr.mxu0 0.0
  %1787 = vmatpush2.xpose.msra.mxu0 0.0
  %1788 = vmatprep.subr.mxu0 0.0
  %1789 = vmatpush2.xpose.msra.mxu0 0.0
  %1790 = vmatprep.mubr.f32.mxu0 0.0
  %1791 = vmatmul.mubr.f32.gmra.mxu0 %v943
  %v1792 = vpop.f32.mrf.mxu0
  %v1793 = vadd.f32 %v47, %v1792
  %v1794 = vpop.f32.mrf.mxu0
  %1795 = vmatprep.mubr.f32.mxu0 0.0
  %1796 = vmatmul.mubr.f32.gmra.mxu0 %v945
  %v1797 = vpop.f32.mrf.mxu0
  %v1798 = vadd.f32 %v48, %v1797
  %v1799 = vpop.f32.mrf.mxu0
  %1800 = vdwg.mxu0
  %v1801 = vsel %vm27, %v1793, -inf
  %1802 = vmax.xlane.f32.xlu0 %v1801
  %v1803 = vpop.xlane.xlu0 %1802
  %v1804 = vsel %vm27, %v1798, -inf
  %1805 = vmax.xlane.f32.xlu0 %v1804
  %v1806 = vpop.xlane.xlu0 %1805
  %v1807 = vsub.f32 %v1793, %v1803
  %v1808 = vsub.f32 %v1798, %v1806
  %v1809 = vmul.f32 %v1807, 1.442695
  %v1810 = vpow.pop %v1809
  %v1811 = vmul.f32 %v1808, 1.442695
  %v1812 = vpow.pop %v1811
  %v1813 = vsel %vm27, %v1810, 0.0
  %1814 = vadd.xlane.f32.xlu0 %v1813
  %v1815 = vpop.xlane.xlu0 %1814
  %v1816 = vsel %vm27, %v1812, 0.0
  %1817 = vadd.xlane.f32.xlu0 %v1816
  %v1818 = vpop.xlane.xlu0 %1817
  %v1819 = vmax.f32 %v1815, 1e-30
  %v1820 = vmax.f32 %v1818, 1e-30
  %v1821 = vrcp.pop %v1819
  %v1822 = vrcp.pop %v1820
  %v1823 = vmul.f32 %v1810, %v1821
  %v1824 = vmul.f32 %v1812, %v1822
  %v1825 = vsel %vm334, %v149, 0.0
  %v1826 = vsel %vm334, %v155, 0.0
  %1827 = vrot.lane.b32.xlu0 %v147, 24
  %v1828 = vpop.permute.xlu0 %1827
  %1829 = vrot.lane.b32.xlu0 %v153, 24
  %v1830 = vpop.permute.xlu0 %1829
  %v1831 = vsel %vm36, %v1828, 0
  %v1833 = vsel %vm36, %v1830, 0
  %1835 = vmatprep.subr.mxu0 0.0
  %1836 = vmatpush1.xpose.msra.mxu0 0.0
  %1837 = vmatprep.subr.mxu0 0.0
  %1838 = vmatpush1.xpose.msra.mxu0 0.0
  %1839 = vmatprep.subr.mxu0 0.0
  %1840 = vmatpush1.xpose.msra.mxu0 0.0
  %1841 = vmatprep.subr.mxu0 0.0
  %1842 = vmatpush1.xpose.msra.mxu0 0.0
  %1843 = vmatprep.subr.mxu0 0.0
  %1844 = vmatpush1.xpose.msra.mxu0 0.0
  %1845 = vmatprep.subr.mxu0 0.0
  %1846 = vmatpush1.xpose.msra.mxu0 0.0
  %1847 = vmatprep.subr.mxu0 0.0
  %1848 = vmatpush1.xpose.msra.mxu0 0.0
  %1849 = vmatprep.subr.mxu0 0.0
  %1850 = vmatpush1.xpose.msra.mxu0 0.0
  %1851 = vmatprep.subr.mxu0 0.0
  %1852 = vmatpush1.xpose.msra.mxu0 0.0
  %1853 = vmatprep.subr.mxu0 0.0
  %1854 = vmatpush1.xpose.msra.mxu0 0.0
  %1855 = vmatprep.subr.mxu0 0.0
  %1856 = vmatpush1.xpose.msra.mxu0 0.0
  %1857 = vmatprep.subr.mxu0 0.0
  %1858 = vmatpush1.xpose.msra.mxu0 0.0
  %1859 = vmatprep.subr.mxu0 0.0
  %1860 = vmatpush1.xpose.msra.mxu0 0.0
  %1861 = vmatprep.subr.mxu0 0.0
  %1862 = vmatpush1.xpose.msra.mxu0 0.0
  %1863 = vmatprep.subr.mxu0 0.0
  %1864 = vmatpush1.xpose.msra.mxu0 %v1833
  %1865 = vmatprep.subr.mxu0 0.0
  %1866 = vmatpush1.xpose.msra.mxu0 %v1831
  %1867 = vmatprep.subr.mxu0 0.0
  %1868 = vmatpush2.xpose.msra.mxu0 0.0
  %1869 = vmatprep.subr.mxu0 0.0
  %1870 = vmatpush2.xpose.msra.mxu0 0.0
  %1871 = vmatprep.subr.mxu0 0.0
  %1872 = vmatpush2.xpose.msra.mxu0 0.0
  %1873 = vmatprep.subr.mxu0 0.0
  %1874 = vmatpush2.xpose.msra.mxu0 0.0
  %1875 = vmatprep.subr.mxu0 0.0
  %1876 = vmatpush2.xpose.msra.mxu0 0.0
  %1877 = vmatprep.subr.mxu0 0.0
  %1878 = vmatpush2.xpose.msra.mxu0 0.0
  %1879 = vmatprep.subr.mxu0 0.0
  %1880 = vmatpush2.xpose.msra.mxu0 0.0
  %1881 = vmatprep.subr.mxu0 0.0
  %1882 = vmatpush2.xpose.msra.mxu0 0.0
  %1883 = vmatprep.subr.mxu0 0.0
  %1884 = vmatpush2.xpose.msra.mxu0 0.0
  %1885 = vmatprep.subr.mxu0 0.0
  %1886 = vmatpush2.xpose.msra.mxu0 0.0
  %1887 = vmatprep.subr.mxu0 0.0
  %1888 = vmatpush2.xpose.msra.mxu0 0.0
  %1889 = vmatprep.subr.mxu0 0.0
  %1890 = vmatpush2.xpose.msra.mxu0 0.0
  %1891 = vmatprep.subr.mxu0 0.0
  %1892 = vmatpush2.xpose.msra.mxu0 0.0
  %1893 = vmatprep.subr.mxu0 0.0
  %1894 = vmatpush2.xpose.msra.mxu0 0.0
  %1895 = vmatprep.subr.mxu0 0.0
  %1896 = vmatpush2.xpose.msra.mxu0 0.0
  %1897 = vmatprep.subr.mxu0 0.0
  %1898 = vmatpush2.xpose.msra.mxu0 0.0
  %1899 = vmatprep.mubr.f32.mxu0 0.0
  %1900 = vmatmul.mubr.f32.gmra.mxu0 %v1058
  %v1901 = vpop.f32.mrf.mxu0
  %v1902 = vadd.f32 %v47, %v1901
  %v1903 = vpop.f32.mrf.mxu0
  %1904 = vmatprep.mubr.f32.mxu0 0.0
  %1905 = vmatmul.mubr.f32.gmra.mxu0 %v1060
  %v1906 = vpop.f32.mrf.mxu0
  %v1907 = vadd.f32 %v48, %v1906
  %v1908 = vpop.f32.mrf.mxu0
  %1909 = vdwg.mxu0
  %v1910 = vsel %vm27, %v1902, -inf
  %1911 = vmax.xlane.f32.xlu0 %v1910
  %v1912 = vpop.xlane.xlu0 %1911
  %v1913 = vsel %vm27, %v1907, -inf
  %1914 = vmax.xlane.f32.xlu0 %v1913
  %v1915 = vpop.xlane.xlu0 %1914
  %v1916 = vsub.f32 %v1902, %v1912
  %v1917 = vsub.f32 %v1907, %v1915
  %v1918 = vmul.f32 %v1916, 1.442695
  %v1919 = vpow.pop %v1918
  %v1920 = vmul.f32 %v1917, 1.442695
  %v1921 = vpow.pop %v1920
  %v1922 = vsel %vm27, %v1919, 0.0
  %1923 = vadd.xlane.f32.xlu0 %v1922
  %v1924 = vpop.xlane.xlu0 %1923
  %v1925 = vsel %vm27, %v1921, 0.0
  %1926 = vadd.xlane.f32.xlu0 %v1925
  %v1927 = vpop.xlane.xlu0 %1926
  %v1928 = vmax.f32 %v1924, 1e-30
  %v1929 = vmax.f32 %v1927, 1e-30
  %v1930 = vrcp.pop %v1928
  %v1931 = vrcp.pop %v1929
  %v1932 = vmul.f32 %v1919, %v1930
  %v1933 = vmul.f32 %v1921, %v1931
  %v1934 = vsel %vm441, %v149, 0.0
  %v1935 = vsel %vm441, %v155, 0.0
  %v1937 = vsel %vm27, %v1932, 0
  %v1940 = vsel %vm27, %v1933, 0
  %1942 = vmatprep.subr.mxu0 0.0
  %1943 = vmatpush1.msra.mxu0 0.0
  %1944 = vmatprep.subr.mxu0 0.0
  %1945 = vmatpush1.msra.mxu0 0.0
  %1946 = vmatprep.subr.mxu0 0.0
  %1947 = vmatpush1.msra.mxu0 0.0
  %1948 = vmatprep.subr.mxu0 0.0
  %1949 = vmatpush1.msra.mxu0 0.0
  %1950 = vmatprep.subr.mxu0 0.0
  %1951 = vmatpush1.msra.mxu0 0.0
  %1952 = vmatprep.subr.mxu0 0.0
  %1953 = vmatpush1.msra.mxu0 0.0
  %1954 = vmatprep.subr.mxu0 0.0
  %1955 = vmatpush1.msra.mxu0 0.0
  %1956 = vmatprep.subr.mxu0 0.0
  %1957 = vmatpush1.msra.mxu0 0.0
  %1958 = vmatprep.subr.mxu0 0.0
  %1959 = vmatpush1.msra.mxu0 0.0
  %1960 = vmatprep.subr.mxu0 0.0
  %1961 = vmatpush1.msra.mxu0 0.0
  %1962 = vmatprep.subr.mxu0 0.0
  %1963 = vmatpush1.msra.mxu0 0.0
  %1964 = vmatprep.subr.mxu0 0.0
  %1965 = vmatpush1.msra.mxu0 0.0
  %1966 = vmatprep.subr.mxu0 0.0
  %1967 = vmatpush1.msra.mxu0 0.0
  %1968 = vmatprep.subr.mxu0 0.0
  %1969 = vmatpush1.msra.mxu0 0.0
  %1970 = vmatprep.subr.mxu0 0.0
  %1971 = vmatpush1.msra.mxu0 %v1935
  %1972 = vmatprep.subr.mxu0 0.0
  %1973 = vmatpush1.msra.mxu0 %v1934
  %1974 = vmatprep.subr.mxu0 0.0
  %1975 = vmatpush2.msra.mxu0 0.0
  %1976 = vmatprep.subr.mxu0 0.0
  %1977 = vmatpush2.msra.mxu0 0.0
  %1978 = vmatprep.subr.mxu0 0.0
  %1979 = vmatpush2.msra.mxu0 0.0
  %1980 = vmatprep.subr.mxu0 0.0
  %1981 = vmatpush2.msra.mxu0 0.0
  %1982 = vmatprep.subr.mxu0 0.0
  %1983 = vmatpush2.msra.mxu0 0.0
  %1984 = vmatprep.subr.mxu0 0.0
  %1985 = vmatpush2.msra.mxu0 0.0
  %1986 = vmatprep.subr.mxu0 0.0
  %1987 = vmatpush2.msra.mxu0 0.0
  %1988 = vmatprep.subr.mxu0 0.0
  %1989 = vmatpush2.msra.mxu0 0.0
  %1990 = vmatprep.subr.mxu0 0.0
  %1991 = vmatpush2.msra.mxu0 0.0
  %1992 = vmatprep.subr.mxu0 0.0
  %1993 = vmatpush2.msra.mxu0 0.0
  %1994 = vmatprep.subr.mxu0 0.0
  %1995 = vmatpush2.msra.mxu0 0.0
  %1996 = vmatprep.subr.mxu0 0.0
  %1997 = vmatpush2.msra.mxu0 0.0
  %1998 = vmatprep.subr.mxu0 0.0
  %1999 = vmatpush2.msra.mxu0 0.0
  %2000 = vmatprep.subr.mxu0 0.0
  %2001 = vmatpush2.msra.mxu0 0.0
  %2002 = vmatprep.subr.mxu0 0.0
  %2003 = vmatpush2.msra.mxu0 0.0
  %2004 = vmatprep.subr.mxu0 0.0
  %2005 = vmatpush2.msra.mxu0 0.0
  %2006 = vmatprep.mubr.f32.mxu0 0.0
  %2007 = vmatmul.mubr.f32.gmra.mxu0 %v1937
  %v2008 = vpop.f32.mrf.mxu0
  %v2009 = vadd.f32 0.0, %v2008
  %v2010 = vpop.f32.mrf.mxu0
  %2011 = vmatprep.mubr.f32.mxu0 0.0
  %2012 = vmatmul.mubr.f32.gmra.mxu0 %v1940
  %v2013 = vpop.f32.mrf.mxu0
  %v2014 = vadd.f32 0.0, %v2013
  %v2015 = vpop.f32.mrf.mxu0
  %2016 = vdwg.mxu0
  %v2018 = vsel %vm27, %v1823, 0
  %v2021 = vsel %vm27, %v1824, 0
  %2023 = vmatprep.subr.mxu0 0.0
  %2024 = vmatpush1.msra.mxu0 0.0
  %2025 = vmatprep.subr.mxu0 0.0
  %2026 = vmatpush1.msra.mxu0 0.0
  %2027 = vmatprep.subr.mxu0 0.0
  %2028 = vmatpush1.msra.mxu0 0.0
  %2029 = vmatprep.subr.mxu0 0.0
  %2030 = vmatpush1.msra.mxu0 0.0
  %2031 = vmatprep.subr.mxu0 0.0
  %2032 = vmatpush1.msra.mxu0 0.0
  %2033 = vmatprep.subr.mxu0 0.0
  %2034 = vmatpush1.msra.mxu0 0.0
  %2035 = vmatprep.subr.mxu0 0.0
  %2036 = vmatpush1.msra.mxu0 0.0
  %2037 = vmatprep.subr.mxu0 0.0
  %2038 = vmatpush1.msra.mxu0 0.0
  %2039 = vmatprep.subr.mxu0 0.0
  %2040 = vmatpush1.msra.mxu0 0.0
  %2041 = vmatprep.subr.mxu0 0.0
  %2042 = vmatpush1.msra.mxu0 0.0
  %2043 = vmatprep.subr.mxu0 0.0
  %2044 = vmatpush1.msra.mxu0 0.0
  %2045 = vmatprep.subr.mxu0 0.0
  %2046 = vmatpush1.msra.mxu0 0.0
  %2047 = vmatprep.subr.mxu0 0.0
  %2048 = vmatpush1.msra.mxu0 0.0
  %2049 = vmatprep.subr.mxu0 0.0
  %2050 = vmatpush1.msra.mxu0 0.0
  %2051 = vmatprep.subr.mxu0 0.0
  %2052 = vmatpush1.msra.mxu0 %v1826
  %2053 = vmatprep.subr.mxu0 0.0
  %2054 = vmatpush1.msra.mxu0 %v1825
  %2055 = vmatprep.subr.mxu0 0.0
  %2056 = vmatpush2.msra.mxu0 0.0
  %2057 = vmatprep.subr.mxu0 0.0
  %2058 = vmatpush2.msra.mxu0 0.0
  %2059 = vmatprep.subr.mxu0 0.0
  %2060 = vmatpush2.msra.mxu0 0.0
  %2061 = vmatprep.subr.mxu0 0.0
  %2062 = vmatpush2.msra.mxu0 0.0
  %2063 = vmatprep.subr.mxu0 0.0
  %2064 = vmatpush2.msra.mxu0 0.0
  %2065 = vmatprep.subr.mxu0 0.0
  %2066 = vmatpush2.msra.mxu0 0.0
  %2067 = vmatprep.subr.mxu0 0.0
  %2068 = vmatpush2.msra.mxu0 0.0
  %2069 = vmatprep.subr.mxu0 0.0
  %2070 = vmatpush2.msra.mxu0 0.0
  %2071 = vmatprep.subr.mxu0 0.0
  %2072 = vmatpush2.msra.mxu0 0.0
  %2073 = vmatprep.subr.mxu0 0.0
  %2074 = vmatpush2.msra.mxu0 0.0
  %2075 = vmatprep.subr.mxu0 0.0
  %2076 = vmatpush2.msra.mxu0 0.0
  %2077 = vmatprep.subr.mxu0 0.0
  %2078 = vmatpush2.msra.mxu0 0.0
  %2079 = vmatprep.subr.mxu0 0.0
  %2080 = vmatpush2.msra.mxu0 0.0
  %2081 = vmatprep.subr.mxu0 0.0
  %2082 = vmatpush2.msra.mxu0 0.0
  %2083 = vmatprep.subr.mxu0 0.0
  %2084 = vmatpush2.msra.mxu0 0.0
  %2085 = vmatprep.subr.mxu0 0.0
  %2086 = vmatpush2.msra.mxu0 0.0
  %2087 = vmatprep.mubr.f32.mxu0 0.0
  %2088 = vmatmul.mubr.f32.gmra.mxu0 %v2018
  %v2089 = vpop.f32.mrf.mxu0
  %v2090 = vadd.f32 %v2009, %v2089
  %v2091 = vpop.f32.mrf.mxu0
  %2092 = vmatprep.mubr.f32.mxu0 0.0
  %2093 = vmatmul.mubr.f32.gmra.mxu0 %v2021
  %v2094 = vpop.f32.mrf.mxu0
  %v2095 = vadd.f32 %v2014, %v2094
  %v2096 = vpop.f32.mrf.mxu0
  %2097 = vdwg.mxu0
  %2098 = vrot.lane.b32.xlu0 %v147, 16
  %v2099 = vpop.permute.xlu0 %2098
  %2100 = vrot.lane.b32.xlu0 %v153, 16
  %v2101 = vpop.permute.xlu0 %2100
  %v2102 = vsel %vm36, %v2099, 0
  %v2104 = vsel %vm36, %v2101, 0
  %2106 = vmatprep.subr.mxu0 0.0
  %2107 = vmatpush1.xpose.msra.mxu0 0.0
  %2108 = vmatprep.subr.mxu0 0.0
  %2109 = vmatpush1.xpose.msra.mxu0 0.0
  %2110 = vmatprep.subr.mxu0 0.0
  %2111 = vmatpush1.xpose.msra.mxu0 0.0
  %2112 = vmatprep.subr.mxu0 0.0
  %2113 = vmatpush1.xpose.msra.mxu0 0.0
  %2114 = vmatprep.subr.mxu0 0.0
  %2115 = vmatpush1.xpose.msra.mxu0 0.0
  %2116 = vmatprep.subr.mxu0 0.0
  %2117 = vmatpush1.xpose.msra.mxu0 0.0
  %2118 = vmatprep.subr.mxu0 0.0
  %2119 = vmatpush1.xpose.msra.mxu0 0.0
  %2120 = vmatprep.subr.mxu0 0.0
  %2121 = vmatpush1.xpose.msra.mxu0 0.0
  %2122 = vmatprep.subr.mxu0 0.0
  %2123 = vmatpush1.xpose.msra.mxu0 0.0
  %2124 = vmatprep.subr.mxu0 0.0
  %2125 = vmatpush1.xpose.msra.mxu0 0.0
  %2126 = vmatprep.subr.mxu0 0.0
  %2127 = vmatpush1.xpose.msra.mxu0 0.0
  %2128 = vmatprep.subr.mxu0 0.0
  %2129 = vmatpush1.xpose.msra.mxu0 0.0
  %2130 = vmatprep.subr.mxu0 0.0
  %2131 = vmatpush1.xpose.msra.mxu0 0.0
  %2132 = vmatprep.subr.mxu0 0.0
  %2133 = vmatpush1.xpose.msra.mxu0 0.0
  %2134 = vmatprep.subr.mxu0 0.0
  %2135 = vmatpush1.xpose.msra.mxu0 %v2104
  %2136 = vmatprep.subr.mxu0 0.0
  %2137 = vmatpush1.xpose.msra.mxu0 %v2102
  %2138 = vmatprep.subr.mxu0 0.0
  %2139 = vmatpush2.xpose.msra.mxu0 0.0
  %2140 = vmatprep.subr.mxu0 0.0
  %2141 = vmatpush2.xpose.msra.mxu0 0.0
  %2142 = vmatprep.subr.mxu0 0.0
  %2143 = vmatpush2.xpose.msra.mxu0 0.0
  %2144 = vmatprep.subr.mxu0 0.0
  %2145 = vmatpush2.xpose.msra.mxu0 0.0
  %2146 = vmatprep.subr.mxu0 0.0
  %2147 = vmatpush2.xpose.msra.mxu0 0.0
  %2148 = vmatprep.subr.mxu0 0.0
  %2149 = vmatpush2.xpose.msra.mxu0 0.0
  %2150 = vmatprep.subr.mxu0 0.0
  %2151 = vmatpush2.xpose.msra.mxu0 0.0
  %2152 = vmatprep.subr.mxu0 0.0
  %2153 = vmatpush2.xpose.msra.mxu0 0.0
  %2154 = vmatprep.subr.mxu0 0.0
  %2155 = vmatpush2.xpose.msra.mxu0 0.0
  %2156 = vmatprep.subr.mxu0 0.0
  %2157 = vmatpush2.xpose.msra.mxu0 0.0
  %2158 = vmatprep.subr.mxu0 0.0
  %2159 = vmatpush2.xpose.msra.mxu0 0.0
  %2160 = vmatprep.subr.mxu0 0.0
  %2161 = vmatpush2.xpose.msra.mxu0 0.0
  %2162 = vmatprep.subr.mxu0 0.0
  %2163 = vmatpush2.xpose.msra.mxu0 0.0
  %2164 = vmatprep.subr.mxu0 0.0
  %2165 = vmatpush2.xpose.msra.mxu0 0.0
  %2166 = vmatprep.subr.mxu0 0.0
  %2167 = vmatpush2.xpose.msra.mxu0 0.0
  %2168 = vmatprep.subr.mxu0 0.0
  %2169 = vmatpush2.xpose.msra.mxu0 0.0
  %2170 = vmatprep.mubr.f32.mxu0 0.0
  %2171 = vmatmul.mubr.f32.gmra.mxu0 %v1332
  %v2172 = vpop.f32.mrf.mxu0
  %v2173 = vadd.f32 %v47, %v2172
  %v2174 = vpop.f32.mrf.mxu0
  %2175 = vmatprep.mubr.f32.mxu0 0.0
  %2176 = vmatmul.mubr.f32.gmra.mxu0 %v1334
  %v2177 = vpop.f32.mrf.mxu0
  %v2178 = vadd.f32 %v48, %v2177
  %v2179 = vpop.f32.mrf.mxu0
  %2180 = vdwg.mxu0
  %v2181 = vsel %vm27, %v2173, -inf
  %2182 = vmax.xlane.f32.xlu0 %v2181
  %v2183 = vpop.xlane.xlu0 %2182
  %v2184 = vsel %vm27, %v2178, -inf
  %2185 = vmax.xlane.f32.xlu0 %v2184
  %v2186 = vpop.xlane.xlu0 %2185
  %v2187 = vsub.f32 %v2173, %v2183
  %v2188 = vsub.f32 %v2178, %v2186
  %v2189 = vmul.f32 %v2187, 1.442695
  %v2190 = vpow.pop %v2189
  %v2191 = vmul.f32 %v2188, 1.442695
  %v2192 = vpow.pop %v2191
  %v2193 = vsel %vm27, %v2190, 0.0
  %2194 = vadd.xlane.f32.xlu0 %v2193
  %v2195 = vpop.xlane.xlu0 %2194
  %v2196 = vsel %vm27, %v2192, 0.0
  %2197 = vadd.xlane.f32.xlu0 %v2196
  %v2198 = vpop.xlane.xlu0 %2197
  %v2199 = vmax.f32 %v2195, 1e-30
  %v2200 = vmax.f32 %v2198, 1e-30
  %v2201 = vrcp.pop %v2199
  %v2202 = vrcp.pop %v2200
  %v2203 = vmul.f32 %v2190, %v2201
  %v2204 = vmul.f32 %v2192, %v2202
  %v2205 = vsel %vm688, %v149, 0.0
  %v2206 = vsel %vm688, %v155, 0.0
  %v2208 = vsel %vm27, %v2203, 0
  %v2211 = vsel %vm27, %v2204, 0
  %2213 = vmatprep.subr.mxu0 0.0
  %2214 = vmatpush1.msra.mxu0 0.0
  %2215 = vmatprep.subr.mxu0 0.0
  %2216 = vmatpush1.msra.mxu0 0.0
  %2217 = vmatprep.subr.mxu0 0.0
  %2218 = vmatpush1.msra.mxu0 0.0
  %2219 = vmatprep.subr.mxu0 0.0
  %2220 = vmatpush1.msra.mxu0 0.0
  %2221 = vmatprep.subr.mxu0 0.0
  %2222 = vmatpush1.msra.mxu0 0.0
  %2223 = vmatprep.subr.mxu0 0.0
  %2224 = vmatpush1.msra.mxu0 0.0
  %2225 = vmatprep.subr.mxu0 0.0
  %2226 = vmatpush1.msra.mxu0 0.0
  %2227 = vmatprep.subr.mxu0 0.0
  %2228 = vmatpush1.msra.mxu0 0.0
  %2229 = vmatprep.subr.mxu0 0.0
  %2230 = vmatpush1.msra.mxu0 0.0
  %2231 = vmatprep.subr.mxu0 0.0
  %2232 = vmatpush1.msra.mxu0 0.0
  %2233 = vmatprep.subr.mxu0 0.0
  %2234 = vmatpush1.msra.mxu0 0.0
  %2235 = vmatprep.subr.mxu0 0.0
  %2236 = vmatpush1.msra.mxu0 0.0
  %2237 = vmatprep.subr.mxu0 0.0
  %2238 = vmatpush1.msra.mxu0 0.0
  %2239 = vmatprep.subr.mxu0 0.0
  %2240 = vmatpush1.msra.mxu0 0.0
  %2241 = vmatprep.subr.mxu0 0.0
  %2242 = vmatpush1.msra.mxu0 %v2206
  %2243 = vmatprep.subr.mxu0 0.0
  %2244 = vmatpush1.msra.mxu0 %v2205
  %2245 = vmatprep.subr.mxu0 0.0
  %2246 = vmatpush2.msra.mxu0 0.0
  %2247 = vmatprep.subr.mxu0 0.0
  %2248 = vmatpush2.msra.mxu0 0.0
  %2249 = vmatprep.subr.mxu0 0.0
  %2250 = vmatpush2.msra.mxu0 0.0
  %2251 = vmatprep.subr.mxu0 0.0
  %2252 = vmatpush2.msra.mxu0 0.0
  %2253 = vmatprep.subr.mxu0 0.0
  %2254 = vmatpush2.msra.mxu0 0.0
  %2255 = vmatprep.subr.mxu0 0.0
  %2256 = vmatpush2.msra.mxu0 0.0
  %2257 = vmatprep.subr.mxu0 0.0
  %2258 = vmatpush2.msra.mxu0 0.0
  %2259 = vmatprep.subr.mxu0 0.0
  %2260 = vmatpush2.msra.mxu0 0.0
  %2261 = vmatprep.subr.mxu0 0.0
  %2262 = vmatpush2.msra.mxu0 0.0
  %2263 = vmatprep.subr.mxu0 0.0
  %2264 = vmatpush2.msra.mxu0 0.0
  %2265 = vmatprep.subr.mxu0 0.0
  %2266 = vmatpush2.msra.mxu0 0.0
  %2267 = vmatprep.subr.mxu0 0.0
  %2268 = vmatpush2.msra.mxu0 0.0
  %2269 = vmatprep.subr.mxu0 0.0
  %2270 = vmatpush2.msra.mxu0 0.0
  %2271 = vmatprep.subr.mxu0 0.0
  %2272 = vmatpush2.msra.mxu0 0.0
  %2273 = vmatprep.subr.mxu0 0.0
  %2274 = vmatpush2.msra.mxu0 0.0
  %2275 = vmatprep.subr.mxu0 0.0
  %2276 = vmatpush2.msra.mxu0 0.0
  %2277 = vmatprep.mubr.f32.mxu0 0.0
  %2278 = vmatmul.mubr.f32.gmra.mxu0 %v2208
  %v2279 = vpop.f32.mrf.mxu0
  %v2280 = vadd.f32 0.0, %v2279
  %v2281 = vpop.f32.mrf.mxu0
  %2282 = vmatprep.mubr.f32.mxu0 0.0
  %2283 = vmatmul.mubr.f32.gmra.mxu0 %v2211
  %v2284 = vpop.f32.mrf.mxu0
  %v2285 = vadd.f32 0.0, %v2284
  %v2286 = vpop.f32.mrf.mxu0
  %2287 = vdwg.mxu0
  %v2288 = vadd.f32 %v2090, %v2280
  %v2289 = vadd.f32 %v2095, %v2285
  %2290 = vrot.lane.b32.xlu0 %v147, 8
  %v2291 = vpop.permute.xlu0 %2290
  %2292 = vrot.lane.b32.xlu0 %v153, 8
  %v2293 = vpop.permute.xlu0 %2292
  %v2294 = vsel %vm36, %v2291, 0
  %v2296 = vsel %vm36, %v2293, 0
  %2298 = vmatprep.subr.mxu0 0.0
  %2299 = vmatpush1.xpose.msra.mxu0 0.0
  %2300 = vmatprep.subr.mxu0 0.0
  %2301 = vmatpush1.xpose.msra.mxu0 0.0
  %2302 = vmatprep.subr.mxu0 0.0
  %2303 = vmatpush1.xpose.msra.mxu0 0.0
  %2304 = vmatprep.subr.mxu0 0.0
  %2305 = vmatpush1.xpose.msra.mxu0 0.0
  %2306 = vmatprep.subr.mxu0 0.0
  %2307 = vmatpush1.xpose.msra.mxu0 0.0
  %2308 = vmatprep.subr.mxu0 0.0
  %2309 = vmatpush1.xpose.msra.mxu0 0.0
  %2310 = vmatprep.subr.mxu0 0.0
  %2311 = vmatpush1.xpose.msra.mxu0 0.0
  %2312 = vmatprep.subr.mxu0 0.0
  %2313 = vmatpush1.xpose.msra.mxu0 0.0
  %2314 = vmatprep.subr.mxu0 0.0
  %2315 = vmatpush1.xpose.msra.mxu0 0.0
  %2316 = vmatprep.subr.mxu0 0.0
  %2317 = vmatpush1.xpose.msra.mxu0 0.0
  %2318 = vmatprep.subr.mxu0 0.0
  %2319 = vmatpush1.xpose.msra.mxu0 0.0
  %2320 = vmatprep.subr.mxu0 0.0
  %2321 = vmatpush1.xpose.msra.mxu0 0.0
  %2322 = vmatprep.subr.mxu0 0.0
  %2323 = vmatpush1.xpose.msra.mxu0 0.0
  %2324 = vmatprep.subr.mxu0 0.0
  %2325 = vmatpush1.xpose.msra.mxu0 0.0
  %2326 = vmatprep.subr.mxu0 0.0
  %2327 = vmatpush1.xpose.msra.mxu0 %v2296
  %2328 = vmatprep.subr.mxu0 0.0
  %2329 = vmatpush1.xpose.msra.mxu0 %v2294
  %2330 = vmatprep.subr.mxu0 0.0
  %2331 = vmatpush2.xpose.msra.mxu0 0.0
  %2332 = vmatprep.subr.mxu0 0.0
  %2333 = vmatpush2.xpose.msra.mxu0 0.0
  %2334 = vmatprep.subr.mxu0 0.0
  %2335 = vmatpush2.xpose.msra.mxu0 0.0
  %2336 = vmatprep.subr.mxu0 0.0
  %2337 = vmatpush2.xpose.msra.mxu0 0.0
  %2338 = vmatprep.subr.mxu0 0.0
  %2339 = vmatpush2.xpose.msra.mxu0 0.0
  %2340 = vmatprep.subr.mxu0 0.0
  %2341 = vmatpush2.xpose.msra.mxu0 0.0
  %2342 = vmatprep.subr.mxu0 0.0
  %2343 = vmatpush2.xpose.msra.mxu0 0.0
  %2344 = vmatprep.subr.mxu0 0.0
  %2345 = vmatpush2.xpose.msra.mxu0 0.0
  %2346 = vmatprep.subr.mxu0 0.0
  %2347 = vmatpush2.xpose.msra.mxu0 0.0
  %2348 = vmatprep.subr.mxu0 0.0
  %2349 = vmatpush2.xpose.msra.mxu0 0.0
  %2350 = vmatprep.subr.mxu0 0.0
  %2351 = vmatpush2.xpose.msra.mxu0 0.0
  %2352 = vmatprep.subr.mxu0 0.0
  %2353 = vmatpush2.xpose.msra.mxu0 0.0
  %2354 = vmatprep.subr.mxu0 0.0
  %2355 = vmatpush2.xpose.msra.mxu0 0.0
  %2356 = vmatprep.subr.mxu0 0.0
  %2357 = vmatpush2.xpose.msra.mxu0 0.0
  %2358 = vmatprep.subr.mxu0 0.0
  %2359 = vmatpush2.xpose.msra.mxu0 0.0
  %2360 = vmatprep.subr.mxu0 0.0
  %2361 = vmatpush2.xpose.msra.mxu0 0.0
  %2362 = vmatprep.mubr.f32.mxu0 0.0
  %2363 = vmatmul.mubr.f32.gmra.mxu0 %v1527
  %v2364 = vpop.f32.mrf.mxu0
  %v2365 = vadd.f32 %v47, %v2364
  %v2366 = vpop.f32.mrf.mxu0
  %2367 = vmatprep.mubr.f32.mxu0 0.0
  %2368 = vmatmul.mubr.f32.gmra.mxu0 %v1529
  %v2369 = vpop.f32.mrf.mxu0
  %v2370 = vadd.f32 %v48, %v2369
  %v2371 = vpop.f32.mrf.mxu0
  %2372 = vdwg.mxu0
  %v2373 = vsel %vm27, %v2365, -inf
  %2374 = vmax.xlane.f32.xlu0 %v2373
  %v2375 = vpop.xlane.xlu0 %2374
  %v2376 = vsel %vm27, %v2370, -inf
  %2377 = vmax.xlane.f32.xlu0 %v2376
  %v2378 = vpop.xlane.xlu0 %2377
  %v2379 = vsub.f32 %v2365, %v2375
  %v2380 = vsub.f32 %v2370, %v2378
  %v2381 = vmul.f32 %v2379, 1.442695
  %v2382 = vpow.pop %v2381
  %v2383 = vmul.f32 %v2380, 1.442695
  %v2384 = vpow.pop %v2383
  %v2385 = vsel %vm27, %v2382, 0.0
  %2386 = vadd.xlane.f32.xlu0 %v2385
  %v2387 = vpop.xlane.xlu0 %2386
  %v2388 = vsel %vm27, %v2384, 0.0
  %2389 = vadd.xlane.f32.xlu0 %v2388
  %v2390 = vpop.xlane.xlu0 %2389
  %v2391 = vmax.f32 %v2387, 1e-30
  %v2392 = vmax.f32 %v2390, 1e-30
  %v2393 = vrcp.pop %v2391
  %v2394 = vrcp.pop %v2392
  %v2395 = vmul.f32 %v2382, %v2393
  %v2396 = vmul.f32 %v2384, %v2394
  %v2397 = vsel %vm863, %v149, 0.0
  %v2398 = vsel %vm863, %v155, 0.0
  %v2400 = vsel %vm27, %v2395, 0
  %v2403 = vsel %vm27, %v2396, 0
  %2405 = vmatprep.subr.mxu0 0.0
  %2406 = vmatpush1.msra.mxu0 0.0
  %2407 = vmatprep.subr.mxu0 0.0
  %2408 = vmatpush1.msra.mxu0 0.0
  %2409 = vmatprep.subr.mxu0 0.0
  %2410 = vmatpush1.msra.mxu0 0.0
  %2411 = vmatprep.subr.mxu0 0.0
  %2412 = vmatpush1.msra.mxu0 0.0
  %2413 = vmatprep.subr.mxu0 0.0
  %2414 = vmatpush1.msra.mxu0 0.0
  %2415 = vmatprep.subr.mxu0 0.0
  %2416 = vmatpush1.msra.mxu0 0.0
  %2417 = vmatprep.subr.mxu0 0.0
  %2418 = vmatpush1.msra.mxu0 0.0
  %2419 = vmatprep.subr.mxu0 0.0
  %2420 = vmatpush1.msra.mxu0 0.0
  %2421 = vmatprep.subr.mxu0 0.0
  %2422 = vmatpush1.msra.mxu0 0.0
  %2423 = vmatprep.subr.mxu0 0.0
  %2424 = vmatpush1.msra.mxu0 0.0
  %2425 = vmatprep.subr.mxu0 0.0
  %2426 = vmatpush1.msra.mxu0 0.0
  %2427 = vmatprep.subr.mxu0 0.0
  %2428 = vmatpush1.msra.mxu0 0.0
  %2429 = vmatprep.subr.mxu0 0.0
  %2430 = vmatpush1.msra.mxu0 0.0
  %2431 = vmatprep.subr.mxu0 0.0
  %2432 = vmatpush1.msra.mxu0 0.0
  %2433 = vmatprep.subr.mxu0 0.0
  %2434 = vmatpush1.msra.mxu0 %v2398
  %2435 = vmatprep.subr.mxu0 0.0
  %2436 = vmatpush1.msra.mxu0 %v2397
  %2437 = vmatprep.subr.mxu0 0.0
  %2438 = vmatpush2.msra.mxu0 0.0
  %2439 = vmatprep.subr.mxu0 0.0
  %2440 = vmatpush2.msra.mxu0 0.0
  %2441 = vmatprep.subr.mxu0 0.0
  %2442 = vmatpush2.msra.mxu0 0.0
  %2443 = vmatprep.subr.mxu0 0.0
  %2444 = vmatpush2.msra.mxu0 0.0
  %2445 = vmatprep.subr.mxu0 0.0
  %2446 = vmatpush2.msra.mxu0 0.0
  %2447 = vmatprep.subr.mxu0 0.0
  %2448 = vmatpush2.msra.mxu0 0.0
  %2449 = vmatprep.subr.mxu0 0.0
  %2450 = vmatpush2.msra.mxu0 0.0
  %2451 = vmatprep.subr.mxu0 0.0
  %2452 = vmatpush2.msra.mxu0 0.0
  %2453 = vmatprep.subr.mxu0 0.0
  %2454 = vmatpush2.msra.mxu0 0.0
  %2455 = vmatprep.subr.mxu0 0.0
  %2456 = vmatpush2.msra.mxu0 0.0
  %2457 = vmatprep.subr.mxu0 0.0
  %2458 = vmatpush2.msra.mxu0 0.0
  %2459 = vmatprep.subr.mxu0 0.0
  %2460 = vmatpush2.msra.mxu0 0.0
  %2461 = vmatprep.subr.mxu0 0.0
  %2462 = vmatpush2.msra.mxu0 0.0
  %2463 = vmatprep.subr.mxu0 0.0
  %2464 = vmatpush2.msra.mxu0 0.0
  %2465 = vmatprep.subr.mxu0 0.0
  %2466 = vmatpush2.msra.mxu0 0.0
  %2467 = vmatprep.subr.mxu0 0.0
  %2468 = vmatpush2.msra.mxu0 0.0
  %2469 = vmatprep.mubr.f32.mxu0 0.0
  %2470 = vmatmul.mubr.f32.gmra.mxu0 %v2400
  %v2471 = vpop.f32.mrf.mxu0
  %v2472 = vadd.f32 0.0, %v2471
  %v2473 = vpop.f32.mrf.mxu0
  %2474 = vmatprep.mubr.f32.mxu0 0.0
  %2475 = vmatmul.mubr.f32.gmra.mxu0 %v2403
  %v2476 = vpop.f32.mrf.mxu0
  %v2477 = vadd.f32 0.0, %v2476
  %v2478 = vpop.f32.mrf.mxu0
  %2479 = vdwg.mxu0
  %v2480 = vadd.f32 %v2288, %v2472
  %v2481 = vadd.f32 %v2289, %v2477
  %v2482 = vmul.f32 %v2480, %v55
  %v2483 = vmul.f32 %v2481, %v56
  %v2484 = vadd.f32 %v1716, %v2482
  %v2485 = vadd.f32 %v1717, %v2483
  %v2486 = vmul.f32 %v2484, 0.5
  %v2487 = vmul.f32 %v2485, 0.5
  %v2488 = vmul.f32 %v2484, 0.70710677
  %v2489 = vmul.f32 %v2485, 0.70710677
  %v2490 = vand.u32 2147483647, %v2488
  %v2491 = vand.u32 2147483647, %v2489
  %v2492 = vmul.f32 %v2490, 0.3275911
  %v2493 = vmul.f32 %v2491, 0.3275911
  %v2494 = vadd.f32 %v2492, 1.0
  %v2495 = vadd.f32 %v2493, 1.0
  %v2496 = vrcp.pop %v2494
  %v2497 = vmul.f32 1.0, %v2496
  %v2498 = vrcp.pop %v2495
  %v2499 = vmul.f32 1.0, %v2498
  %v2500 = vmul.f32 %v2497, 1.0614054
  %v2501 = vmul.f32 %v2499, 1.0614054
  %v2502 = vsub.f32 %v2500, 1.4531521
  %v2503 = vsub.f32 %v2501, 1.4531521
  %v2504 = vmul.f32 %v2502, %v2497
  %v2505 = vmul.f32 %v2503, %v2499
  %v2506 = vadd.f32 %v2504, 1.4214138
  %v2507 = vadd.f32 %v2505, 1.4214138
  %v2508 = vmul.f32 %v2506, %v2497
  %v2509 = vmul.f32 %v2507, %v2499
  %v2510 = vsub.f32 %v2508, 0.28449672
  %v2511 = vsub.f32 %v2509, 0.28449672
  %v2512 = vmul.f32 %v2510, %v2497
  %v2513 = vmul.f32 %v2511, %v2499
  %v2514 = vadd.f32 %v2512, 0.2548296
  %v2515 = vadd.f32 %v2513, 0.2548296
  %v2516 = vmul.f32 %v2514, %v2497
  %v2517 = vmul.f32 %v2515, %v2499
  %v2518 = vsub.f32 0.0, %v2490
  %v2519 = vsub.f32 0.0, %v2491
  %v2520 = vmul.f32 %v2518, %v2490
  %v2521 = vmul.f32 %v2519, %v2491
  %v2522 = vmul.f32 %v2520, 1.442695
  %v2523 = vpow.pop %v2522
  %v2524 = vmul.f32 %v2521, 1.442695
  %v2525 = vpow.pop %v2524
  %v2526 = vmul.f32 %v2516, %v2523
  %v2527 = vmul.f32 %v2517, %v2525
  %v2528 = vsub.f32 1.0, %v2526
  %v2529 = vsub.f32 1.0, %v2527
  %vm2530 = vcmp.ge.f32.partialorder %v2488, 0.0
  %vm2531 = vcmp.ge.f32.partialorder %v2489, 0.0
  %v2532 = vsub.f32 0.0, %v2528
  %v2533 = vsub.f32 0.0, %v2529
  %v2534 = vsel %vm2530, %v2528, %v2532
  %v2535 = vsel %vm2531, %v2529, %v2533
  %v2536 = vadd.f32 %v2534, 1.0
  %v2537 = vadd.f32 %v2535, 1.0
  %v2538 = vmul.f32 %v2486, %v2536
  %v2539 = vmul.f32 %v2487, %v2537
  %v2540 = vld [vmem:[%s3 + $0x60] sm:$0xff]
  %v2541 = vld [vmem:[%s3 + $0x70] sm:$0xff]
  %v2542 = vld [vmem:[%s3 + $0x80] sm:$0xff]
  %v2543 = vld [vmem:[%s3 + $0x90] sm:$0xff]
  %v2544 = vld [vmem:[%s3 + $0xa0] ss:$0 sm:$0xff]
  %vm2545 = vcmask 261120
  %v2547 = vsel %vm2545, %v2538, 0
  %v2550 = vsel %vm2545, %v2539, 0
  %2552 = vmatprep.subr.mxu0 0.0
  %2553 = vmatpush1.msra.mxu0 0.0
  %2554 = vmatprep.subr.mxu0 0.0
  %2555 = vmatpush1.msra.mxu0 0.0
  %2556 = vmatprep.subr.mxu0 0.0
  %2557 = vmatpush1.msra.mxu0 0.0
  %2558 = vmatprep.subr.mxu0 0.0
  %2559 = vmatpush1.msra.mxu0 0.0
  %2560 = vmatprep.subr.mxu0 0.0
  %2561 = vmatpush1.msra.mxu0 0.0
  %2562 = vmatprep.subr.mxu0 0.0
  %2563 = vmatpush1.msra.mxu0 0.0
  %2564 = vmatprep.subr.mxu0 0.0
  %2565 = vmatpush1.msra.mxu0 0.0
  %2566 = vmatprep.subr.mxu0 0.0
  %2567 = vmatpush1.msra.mxu0 0.0
  %2568 = vmatprep.subr.mxu0 0.0
  %2569 = vmatpush1.msra.mxu0 0.0
  %2570 = vmatprep.subr.mxu0 0.0
  %2571 = vmatpush1.msra.mxu0 0.0
  %2572 = vmatprep.subr.mxu0 0.0
  %2573 = vmatpush1.msra.mxu0 0.0
  %2574 = vmatprep.subr.mxu0 0.0
  %2575 = vmatpush1.msra.mxu0 0.0
  %2576 = vmatprep.subr.mxu0 0.0
  %2577 = vmatpush1.msra.mxu0 %v2543
  %2578 = vmatprep.subr.mxu0 0.0
  %2579 = vmatpush1.msra.mxu0 %v2542
  %2580 = vmatprep.subr.mxu0 0.0
  %2581 = vmatpush1.msra.mxu0 %v2541
  %2582 = vmatprep.subr.mxu0 0.0
  %2583 = vmatpush1.msra.mxu0 %v2540
  %2584 = vmatprep.subr.mxu0 0.0
  %2585 = vmatpush2.msra.mxu0 0.0
  %2586 = vmatprep.subr.mxu0 0.0
  %2587 = vmatpush2.msra.mxu0 0.0
  %2588 = vmatprep.subr.mxu0 0.0
  %2589 = vmatpush2.msra.mxu0 0.0
  %2590 = vmatprep.subr.mxu0 0.0
  %2591 = vmatpush2.msra.mxu0 0.0
  %2592 = vmatprep.subr.mxu0 0.0
  %2593 = vmatpush2.msra.mxu0 0.0
  %2594 = vmatprep.subr.mxu0 0.0
  %2595 = vmatpush2.msra.mxu0 0.0
  %2596 = vmatprep.subr.mxu0 0.0
  %2597 = vmatpush2.msra.mxu0 0.0
  %2598 = vmatprep.subr.mxu0 0.0
  %2599 = vmatpush2.msra.mxu0 0.0
  %2600 = vmatprep.subr.mxu0 0.0
  %2601 = vmatpush2.msra.mxu0 0.0
  %2602 = vmatprep.subr.mxu0 0.0
  %2603 = vmatpush2.msra.mxu0 0.0
  %2604 = vmatprep.subr.mxu0 0.0
  %2605 = vmatpush2.msra.mxu0 0.0
  %2606 = vmatprep.subr.mxu0 0.0
  %2607 = vmatpush2.msra.mxu0 0.0
  %2608 = vmatprep.subr.mxu0 0.0
  %2609 = vmatpush2.msra.mxu0 0.0
  %2610 = vmatprep.subr.mxu0 0.0
  %2611 = vmatpush2.msra.mxu0 0.0
  %2612 = vmatprep.subr.mxu0 0.0
  %2613 = vmatpush2.msra.mxu0 0.0
  %2614 = vmatprep.subr.mxu0 0.0
  %2615 = vmatpush2.msra.mxu0 0.0
  %2616 = vmatprep.mubr.f32.mxu0 0.0
  %2617 = vmatmul.mubr.f32.gmra.mxu0 %v2547
  %v2618 = vpop.f32.mrf.mxu0
  %v2619 = vadd.f32 %v2544, %v2618
  %v2620 = vpop.f32.mrf.mxu0
  %2621 = vmatprep.mubr.f32.mxu0 0.0
  %2622 = vmatmul.mubr.f32.gmra.mxu0 %v2550
  %v2623 = vpop.f32.mrf.mxu0
  %v2624 = vadd.f32 %v2544, %v2623
  %v2625 = vpop.f32.mrf.mxu0
  %2626 = vdwg.mxu0
  %v2627 = vmul.f32 %v940, 0.5
  %v2628 = vmul.f32 %v940, 0.70710677
  %v2629 = vand.u32 2147483647, %v2628
  %v2630 = vmul.f32 %v2629, 0.3275911
  %v2631 = vadd.f32 %v2630, 1.0
  %v2632 = vrcp.pop %v2631
  %v2633 = vmul.f32 1.0, %v2632
  %v2634 = vmul.f32 %v2633, 1.0614054
  %v2635 = vsub.f32 %v2634, 1.4531521
  %v2636 = vmul.f32 %v2635, %v2633
  %v2637 = vadd.f32 %v2636, 1.4214138
  %v2638 = vmul.f32 %v2637, %v2633
  %v2639 = vsub.f32 %v2638, 0.28449672
  %v2640 = vmul.f32 %v2639, %v2633
  %v2641 = vadd.f32 %v2640, 0.2548296
  %v2642 = vmul.f32 %v2641, %v2633
  %v2643 = vsub.f32 0.0, %v2629
  %v2644 = vmul.f32 %v2643, %v2629
  %v2645 = vmul.f32 %v2644, 1.442695
  %v2646 = vpow.pop %v2645
  %v2647 = vmul.f32 %v2642, %v2646
  %v2648 = vsub.f32 1.0, %v2647
  %vm2649 = vcmp.ge.f32.partialorder %v2628, 0.0
  %v2650 = vsub.f32 0.0, %v2648
  %v2651 = vsel %vm2649, %v2648, %v2650
  %v2652 = vadd.f32 %v2651, 1.0
  %v2653 = vmul.f32 %v2627, %v2652
  %v2654 = vld [vmem:[%s3 + $0xb0] sm:$0xff]
  %v2655 = vld [vmem:[%s3 + $0xc0] sm:$0xff]
  %v2656 = vld [vmem:[%s3 + $0xd0] sm:$0xff]
  %v2657 = vld [vmem:[%s3 + $0xe0] sm:$0xff]
  %v2658 = vld [vmem:[%s3 + $0xf0] ss:$0 sm:$0xff]
  %v2660 = vsel %vm2545, %v2653, 0
  %2662 = vmatprep.subr.mxu0 0.0
  %2663 = vmatpush1.msra.mxu0 0.0
  %2664 = vmatprep.subr.mxu0 0.0
  %2665 = vmatpush1.msra.mxu0 0.0
  %2666 = vmatprep.subr.mxu0 0.0
  %2667 = vmatpush1.msra.mxu0 0.0
  %2668 = vmatprep.subr.mxu0 0.0
  %2669 = vmatpush1.msra.mxu0 0.0
  %2670 = vmatprep.subr.mxu0 0.0
  %2671 = vmatpush1.msra.mxu0 0.0
  %2672 = vmatprep.subr.mxu0 0.0
  %2673 = vmatpush1.msra.mxu0 0.0
  %2674 = vmatprep.subr.mxu0 0.0
  %2675 = vmatpush1.msra.mxu0 0.0
  %2676 = vmatprep.subr.mxu0 0.0
  %2677 = vmatpush1.msra.mxu0 0.0
  %2678 = vmatprep.subr.mxu0 0.0
  %2679 = vmatpush1.msra.mxu0 0.0
  %2680 = vmatprep.subr.mxu0 0.0
  %2681 = vmatpush1.msra.mxu0 0.0
  %2682 = vmatprep.subr.mxu0 0.0
  %2683 = vmatpush1.msra.mxu0 0.0
  %2684 = vmatprep.subr.mxu0 0.0
  %2685 = vmatpush1.msra.mxu0 0.0
  %2686 = vmatprep.subr.mxu0 0.0
  %2687 = vmatpush1.msra.mxu0 %v2657
  %2688 = vmatprep.subr.mxu0 0.0
  %2689 = vmatpush1.msra.mxu0 %v2656
  %2690 = vmatprep.subr.mxu0 0.0
  %2691 = vmatpush1.msra.mxu0 %v2655
  %2692 = vmatprep.subr.mxu0 0.0
  %2693 = vmatpush1.msra.mxu0 %v2654
  %2694 = vmatprep.subr.mxu0 0.0
  %2695 = vmatpush2.msra.mxu0 0.0
  %2696 = vmatprep.subr.mxu0 0.0
  %2697 = vmatpush2.msra.mxu0 0.0
  %2698 = vmatprep.subr.mxu0 0.0
  %2699 = vmatpush2.msra.mxu0 0.0
  %2700 = vmatprep.subr.mxu0 0.0
  %2701 = vmatpush2.msra.mxu0 0.0
  %2702 = vmatprep.subr.mxu0 0.0
  %2703 = vmatpush2.msra.mxu0 0.0
  %2704 = vmatprep.subr.mxu0 0.0
  %2705 = vmatpush2.msra.mxu0 0.0
  %2706 = vmatprep.subr.mxu0 0.0
  %2707 = vmatpush2.msra.mxu0 0.0
  %2708 = vmatprep.subr.mxu0 0.0
  %2709 = vmatpush2.msra.mxu0 0.0
  %2710 = vmatprep.subr.mxu0 0.0
  %2711 = vmatpush2.msra.mxu0 0.0
  %2712 = vmatprep.subr.mxu0 0.0
  %2713 = vmatpush2.msra.mxu0 0.0
  %2714 = vmatprep.subr.mxu0 0.0
  %2715 = vmatpush2.msra.mxu0 0.0
  %2716 = vmatprep.subr.mxu0 0.0
  %2717 = vmatpush2.msra.mxu0 0.0
  %2718 = vmatprep.subr.mxu0 0.0
  %2719 = vmatpush2.msra.mxu0 0.0
  %2720 = vmatprep.subr.mxu0 0.0
  %2721 = vmatpush2.msra.mxu0 0.0
  %2722 = vmatprep.subr.mxu0 0.0
  %2723 = vmatpush2.msra.mxu0 0.0
  %2724 = vmatprep.subr.mxu0 0.0
  %2725 = vmatpush2.msra.mxu0 0.0
  %2726 = vmatprep.mubr.f32.mxu0 0.0
  %2727 = vmatmul.mubr.f32.gmra.mxu0 %v2660
  %v2728 = vpop.f32.mrf.mxu0
  %v2729 = vadd.f32 %v2658, %v2728
  %v2730 = vpop.f32.mrf.mxu0
  %2731 = vdwg.mxu0
  %v2732 = vmax.f32 %v2619, 0.0
  %v2733 = vmax.f32 %v2624, 0.0
  %v2734 = vmax.f32 %v2729, 0.0
  %v2735 = vld [vmem:[%s3 + $0x100] sm:$0xff]
  %v2736 = vld [vmem:[%s3 + $0x110] sm:$0xff]
  %v2737 = vld [vmem:[%s3 + $0x120] sm:$0xff]
  %v2738 = vld [vmem:[%s3 + $0x130] sm:$0xff]
  %v2739 = vld [vmem:[%s3 + $0x140] ss:$0 sm:$0xff]
  %v2741 = vsel %vm2545, %v2732, 0
  %v2744 = vsel %vm2545, %v2733, 0
  %2746 = vmatprep.subr.mxu0 0.0
  %2747 = vmatpush1.msra.mxu0 0.0
  %2748 = vmatprep.subr.mxu0 0.0
  %2749 = vmatpush1.msra.mxu0 0.0
  %2750 = vmatprep.subr.mxu0 0.0
  %2751 = vmatpush1.msra.mxu0 0.0
  %2752 = vmatprep.subr.mxu0 0.0
  %2753 = vmatpush1.msra.mxu0 0.0
  %2754 = vmatprep.subr.mxu0 0.0
  %2755 = vmatpush1.msra.mxu0 0.0
  %2756 = vmatprep.subr.mxu0 0.0
  %2757 = vmatpush1.msra.mxu0 0.0
  %2758 = vmatprep.subr.mxu0 0.0
  %2759 = vmatpush1.msra.mxu0 0.0
  %2760 = vmatprep.subr.mxu0 0.0
  %2761 = vmatpush1.msra.mxu0 0.0
  %2762 = vmatprep.subr.mxu0 0.0
  %2763 = vmatpush1.msra.mxu0 0.0
  %2764 = vmatprep.subr.mxu0 0.0
  %2765 = vmatpush1.msra.mxu0 0.0
  %2766 = vmatprep.subr.mxu0 0.0
  %2767 = vmatpush1.msra.mxu0 0.0
  %2768 = vmatprep.subr.mxu0 0.0
  %2769 = vmatpush1.msra.mxu0 0.0
  %2770 = vmatprep.subr.mxu0 0.0
  %2771 = vmatpush1.msra.mxu0 %v2738
  %2772 = vmatprep.subr.mxu0 0.0
  %2773 = vmatpush1.msra.mxu0 %v2737
  %2774 = vmatprep.subr.mxu0 0.0
  %2775 = vmatpush1.msra.mxu0 %v2736
  %2776 = vmatprep.subr.mxu0 0.0
  %2777 = vmatpush1.msra.mxu0 %v2735
  %2778 = vmatprep.subr.mxu0 0.0
  %2779 = vmatpush2.msra.mxu0 0.0
  %2780 = vmatprep.subr.mxu0 0.0
  %2781 = vmatpush2.msra.mxu0 0.0
  %2782 = vmatprep.subr.mxu0 0.0
  %2783 = vmatpush2.msra.mxu0 0.0
  %2784 = vmatprep.subr.mxu0 0.0
  %2785 = vmatpush2.msra.mxu0 0.0
  %2786 = vmatprep.subr.mxu0 0.0
  %2787 = vmatpush2.msra.mxu0 0.0
  %2788 = vmatprep.subr.mxu0 0.0
  %2789 = vmatpush2.msra.mxu0 0.0
  %2790 = vmatprep.subr.mxu0 0.0
  %2791 = vmatpush2.msra.mxu0 0.0
  %2792 = vmatprep.subr.mxu0 0.0
  %2793 = vmatpush2.msra.mxu0 0.0
  %2794 = vmatprep.subr.mxu0 0.0
  %2795 = vmatpush2.msra.mxu0 0.0
  %2796 = vmatprep.subr.mxu0 0.0
  %2797 = vmatpush2.msra.mxu0 0.0
  %2798 = vmatprep.subr.mxu0 0.0
  %2799 = vmatpush2.msra.mxu0 0.0
  %2800 = vmatprep.subr.mxu0 0.0
  %2801 = vmatpush2.msra.mxu0 0.0
  %2802 = vmatprep.subr.mxu0 0.0
  %2803 = vmatpush2.msra.mxu0 0.0
  %2804 = vmatprep.subr.mxu0 0.0
  %2805 = vmatpush2.msra.mxu0 0.0
  %2806 = vmatprep.subr.mxu0 0.0
  %2807 = vmatpush2.msra.mxu0 0.0
  %2808 = vmatprep.subr.mxu0 0.0
  %2809 = vmatpush2.msra.mxu0 0.0
  %2810 = vmatprep.mubr.f32.mxu0 0.0
  %2811 = vmatmul.mubr.f32.gmra.mxu0 %v2741
  %v2812 = vpop.f32.mrf.mxu0
  %v2813 = vadd.f32 %v2739, %v2812
  %v2814 = vpop.f32.mrf.mxu0
  %2815 = vmatprep.mubr.f32.mxu0 0.0
  %2816 = vmatmul.mubr.f32.gmra.mxu0 %v2744
  %v2817 = vpop.f32.mrf.mxu0
  %v2818 = vadd.f32 %v2739, %v2817
  %v2819 = vpop.f32.mrf.mxu0
  %2820 = vdwg.mxu0
  %v2821 = vld [vmem:[%s3 + $0x150] sm:$0xff]
  %v2822 = vld [vmem:[%s3 + $0x160] sm:$0xff]
  %v2823 = vld [vmem:[%s3 + $0x170] sm:$0xff]
  %v2824 = vld [vmem:[%s3 + $0x180] sm:$0xff]
  %v2825 = vld [vmem:[%s3 + $0x190] ss:$0 sm:$0xff]
  %v2827 = vsel %vm2545, %v2734, 0
  %2829 = vmatprep.subr.mxu0 0.0
  %2830 = vmatpush1.msra.mxu0 0.0
  %2831 = vmatprep.subr.mxu0 0.0
  %2832 = vmatpush1.msra.mxu0 0.0
  %2833 = vmatprep.subr.mxu0 0.0
  %2834 = vmatpush1.msra.mxu0 0.0
  %2835 = vmatprep.subr.mxu0 0.0
  %2836 = vmatpush1.msra.mxu0 0.0
  %2837 = vmatprep.subr.mxu0 0.0
  %2838 = vmatpush1.msra.mxu0 0.0
  %2839 = vmatprep.subr.mxu0 0.0
  %2840 = vmatpush1.msra.mxu0 0.0
  %2841 = vmatprep.subr.mxu0 0.0
  %2842 = vmatpush1.msra.mxu0 0.0
  %2843 = vmatprep.subr.mxu0 0.0
  %2844 = vmatpush1.msra.mxu0 0.0
  %2845 = vmatprep.subr.mxu0 0.0
  %2846 = vmatpush1.msra.mxu0 0.0
  %2847 = vmatprep.subr.mxu0 0.0
  %2848 = vmatpush1.msra.mxu0 0.0
  %2849 = vmatprep.subr.mxu0 0.0
  %2850 = vmatpush1.msra.mxu0 0.0
  %2851 = vmatprep.subr.mxu0 0.0
  %2852 = vmatpush1.msra.mxu0 0.0
  %2853 = vmatprep.subr.mxu0 0.0
  %2854 = vmatpush1.msra.mxu0 %v2824
  %2855 = vmatprep.subr.mxu0 0.0
  %2856 = vmatpush1.msra.mxu0 %v2823
  %2857 = vmatprep.subr.mxu0 0.0
  %2858 = vmatpush1.msra.mxu0 %v2822
  %2859 = vmatprep.subr.mxu0 0.0
  %2860 = vmatpush1.msra.mxu0 %v2821
  %2861 = vmatprep.subr.mxu0 0.0
  %2862 = vmatpush2.msra.mxu0 0.0
  %2863 = vmatprep.subr.mxu0 0.0
  %2864 = vmatpush2.msra.mxu0 0.0
  %2865 = vmatprep.subr.mxu0 0.0
  %2866 = vmatpush2.msra.mxu0 0.0
  %2867 = vmatprep.subr.mxu0 0.0
  %2868 = vmatpush2.msra.mxu0 0.0
  %2869 = vmatprep.subr.mxu0 0.0
  %2870 = vmatpush2.msra.mxu0 0.0
  %2871 = vmatprep.subr.mxu0 0.0
  %2872 = vmatpush2.msra.mxu0 0.0
  %2873 = vmatprep.subr.mxu0 0.0
  %2874 = vmatpush2.msra.mxu0 0.0
  %2875 = vmatprep.subr.mxu0 0.0
  %2876 = vmatpush2.msra.mxu0 0.0
  %2877 = vmatprep.subr.mxu0 0.0
  %2878 = vmatpush2.msra.mxu0 0.0
  %2879 = vmatprep.subr.mxu0 0.0
  %2880 = vmatpush2.msra.mxu0 0.0
  %2881 = vmatprep.subr.mxu0 0.0
  %2882 = vmatpush2.msra.mxu0 0.0
  %2883 = vmatprep.subr.mxu0 0.0
  %2884 = vmatpush2.msra.mxu0 0.0
  %2885 = vmatprep.subr.mxu0 0.0
  %2886 = vmatpush2.msra.mxu0 0.0
  %2887 = vmatprep.subr.mxu0 0.0
  %2888 = vmatpush2.msra.mxu0 0.0
  %2889 = vmatprep.subr.mxu0 0.0
  %2890 = vmatpush2.msra.mxu0 0.0
  %2891 = vmatprep.subr.mxu0 0.0
  %2892 = vmatpush2.msra.mxu0 0.0
  %2893 = vmatprep.mubr.f32.mxu0 0.0
  %2894 = vmatmul.mubr.f32.gmra.mxu0 %v2827
  %v2895 = vpop.f32.mrf.mxu0
  %v2896 = vadd.f32 %v2825, %v2895
  %v2897 = vpop.f32.mrf.mxu0
  %2898 = vdwg.mxu0
  %v2900 = vsel %vm36, %v2813, 0
  %v2903 = vsel %vm36, %v2818, 0
  %v2906 = vsel %vm36, %v2896, 0
  %2908 = vmatprep.subr.mxu0 0.0
  %2909 = vmatpush1.xpose.msra.mxu0 0.0
  %2910 = vmatprep.subr.mxu0 0.0
  %2911 = vmatpush1.xpose.msra.mxu0 0.0
  %2912 = vmatprep.subr.mxu0 0.0
  %2913 = vmatpush1.xpose.msra.mxu0 0.0
  %2914 = vmatprep.subr.mxu0 0.0
  %2915 = vmatpush1.xpose.msra.mxu0 0.0
  %2916 = vmatprep.subr.mxu0 0.0
  %2917 = vmatpush1.xpose.msra.mxu0 0.0
  %2918 = vmatprep.subr.mxu0 0.0
  %2919 = vmatpush1.xpose.msra.mxu0 0.0
  %2920 = vmatprep.subr.mxu0 0.0
  %2921 = vmatpush1.xpose.msra.mxu0 0.0
  %2922 = vmatprep.subr.mxu0 0.0
  %2923 = vmatpush1.xpose.msra.mxu0 0.0
  %2924 = vmatprep.subr.mxu0 0.0
  %2925 = vmatpush1.xpose.msra.mxu0 0.0
  %2926 = vmatprep.subr.mxu0 0.0
  %2927 = vmatpush1.xpose.msra.mxu0 0.0
  %2928 = vmatprep.subr.mxu0 0.0
  %2929 = vmatpush1.xpose.msra.mxu0 0.0
  %2930 = vmatprep.subr.mxu0 0.0
  %2931 = vmatpush1.xpose.msra.mxu0 0.0
  %2932 = vmatprep.subr.mxu0 0.0
  %2933 = vmatpush1.xpose.msra.mxu0 0.0
  %2934 = vmatprep.subr.mxu0 0.0
  %2935 = vmatpush1.xpose.msra.mxu0 0.0
  %2936 = vmatprep.subr.mxu0 0.0
  %2937 = vmatpush1.xpose.msra.mxu0 0.0
  %2938 = vmatprep.subr.mxu0 0.0
  %2939 = vmatpush1.xpose.msra.mxu0 %v2906
  %2940 = vmatprep.subr.mxu0 0.0
  %2941 = vmatpush2.xpose.msra.mxu0 0.0
  %2942 = vmatprep.subr.mxu0 0.0
  %2943 = vmatpush2.xpose.msra.mxu0 0.0
  %2944 = vmatprep.subr.mxu0 0.0
  %2945 = vmatpush2.xpose.msra.mxu0 0.0
  %2946 = vmatprep.subr.mxu0 0.0
  %2947 = vmatpush2.xpose.msra.mxu0 0.0
  %2948 = vmatprep.subr.mxu0 0.0
  %2949 = vmatpush2.xpose.msra.mxu0 0.0
  %2950 = vmatprep.subr.mxu0 0.0
  %2951 = vmatpush2.xpose.msra.mxu0 0.0
  %2952 = vmatprep.subr.mxu0 0.0
  %2953 = vmatpush2.xpose.msra.mxu0 0.0
  %2954 = vmatprep.subr.mxu0 0.0
  %2955 = vmatpush2.xpose.msra.mxu0 0.0
  %2956 = vmatprep.subr.mxu0 0.0
  %2957 = vmatpush2.xpose.msra.mxu0 0.0
  %2958 = vmatprep.subr.mxu0 0.0
  %2959 = vmatpush2.xpose.msra.mxu0 0.0
  %2960 = vmatprep.subr.mxu0 0.0
  %2961 = vmatpush2.xpose.msra.mxu0 0.0
  %2962 = vmatprep.subr.mxu0 0.0
  %2963 = vmatpush2.xpose.msra.mxu0 0.0
  %2964 = vmatprep.subr.mxu0 0.0
  %2965 = vmatpush2.xpose.msra.mxu0 0.0
  %2966 = vmatprep.subr.mxu0 0.0
  %2967 = vmatpush2.xpose.msra.mxu0 0.0
  %2968 = vmatprep.subr.mxu0 0.0
  %2969 = vmatpush2.xpose.msra.mxu0 0.0
  %2970 = vmatprep.subr.mxu0 0.0
  %2971 = vmatpush2.xpose.msra.mxu0 0.0
  %2972 = vmatprep.mubr.f32.mxu0 0.0
  %2973 = vmatmul.mubr.f32.gmra.mxu0 %v2900
  %v2974 = vpop.f32.mrf.mxu0
  %v2975 = vadd.f32 %v34, %v2974
  %v2976 = vpop.f32.mrf.mxu0
  %2977 = vmatprep.mubr.f32.mxu0 0.0
  %2978 = vmatmul.mubr.f32.gmra.mxu0 %v2903
  %v2979 = vpop.f32.mrf.mxu0
  %v2980 = vadd.f32 %v35, %v2979
  %v2981 = vpop.f32.mrf.mxu0
  %2982 = vdwg.mxu0
  %v2983 = vsel %vm36, %v2975, -inf
  %2984 = vmax.xlane.f32.xlu0 %v2983
  %v2985 = vpop.xlane.xlu0 %2984
  %v2986 = vsel %vm36, %v2980, -inf
  %2987 = vmax.xlane.f32.xlu0 %v2986
  %v2988 = vpop.xlane.xlu0 %2987
  %v2989 = vsub.f32 %v2975, %v2985
  %v2990 = vsub.f32 %v2980, %v2988
  %v2991 = vmul.f32 %v2989, 1.442695
  %v2992 = vpow.pop %v2991
  %v2993 = vmul.f32 %v2990, 1.442695
  %v2994 = vpow.pop %v2993
  %v2995 = vsel %vm36, %v2992, 0.0
  %2996 = vadd.xlane.f32.xlu0 %v2995
  %v2997 = vpop.xlane.xlu0 %2996
  %v2998 = vsel %vm36, %v2994, 0.0
  %2999 = vadd.xlane.f32.xlu0 %v2998
  %v3000 = vpop.xlane.xlu0 %2999
  %v3001 = vmax.f32 %v2997, 1e-30
  %v3002 = vmax.f32 %v3000, 1e-30
  %v3003 = vrcp.pop %v3001
  %v3004 = vrcp.pop %v3002
  %v3005 = vmul.f32 %v2992, %v3003
  %v3006 = vmul.f32 %v2994, %v3004
  %3007 = vrot.lane.b32.xlu0 %v2896, 96
  %v3008 = vpop.permute.xlu0 %3007
  %v3010 = vsel %vm334, %v3008, 0.0
  %3011 = vrot.lane.b32.xlu0 %v2813, 120
  %v3012 = vpop.permute.xlu0 %3011
  %3013 = vrot.lane.b32.xlu0 %v2818, 120
  %v3014 = vpop.permute.xlu0 %3013
  %3015 = vrot.lane.b32.xlu0 %v2896, 120
  %v3016 = vpop.permute.xlu0 %3015
  %v3017 = vsel %vm36, %v3012, 0
  %v3019 = vsel %vm36, %v3014, 0
  %v3021 = vsel %vm36, %v3016, 0
  %3023 = vmatprep.subr.mxu0 0.0
  %3024 = vmatpush1.xpose.msra.mxu0 0.0
  %3025 = vmatprep.subr.mxu0 0.0
  %3026 = vmatpush1.xpose.msra.mxu0 0.0
  %3027 = vmatprep.subr.mxu0 0.0
  %3028 = vmatpush1.xpose.msra.mxu0 0.0
  %3029 = vmatprep.subr.mxu0 0.0
  %3030 = vmatpush1.xpose.msra.mxu0 0.0
  %3031 = vmatprep.subr.mxu0 0.0
  %3032 = vmatpush1.xpose.msra.mxu0 0.0
  %3033 = vmatprep.subr.mxu0 0.0
  %3034 = vmatpush1.xpose.msra.mxu0 0.0
  %3035 = vmatprep.subr.mxu0 0.0
  %3036 = vmatpush1.xpose.msra.mxu0 0.0
  %3037 = vmatprep.subr.mxu0 0.0
  %3038 = vmatpush1.xpose.msra.mxu0 0.0
  %3039 = vmatprep.subr.mxu0 0.0
  %3040 = vmatpush1.xpose.msra.mxu0 0.0
  %3041 = vmatprep.subr.mxu0 0.0
  %3042 = vmatpush1.xpose.msra.mxu0 0.0
  %3043 = vmatprep.subr.mxu0 0.0
  %3044 = vmatpush1.xpose.msra.mxu0 0.0
  %3045 = vmatprep.subr.mxu0 0.0
  %3046 = vmatpush1.xpose.msra.mxu0 0.0
  %3047 = vmatprep.subr.mxu0 0.0
  %3048 = vmatpush1.xpose.msra.mxu0 0.0
  %3049 = vmatprep.subr.mxu0 0.0
  %3050 = vmatpush1.xpose.msra.mxu0 0.0
  %3051 = vmatprep.subr.mxu0 0.0
  %3052 = vmatpush1.xpose.msra.mxu0 0.0
  %3053 = vmatprep.subr.mxu0 0.0
  %3054 = vmatpush1.xpose.msra.mxu0 %v3021
  %3055 = vmatprep.subr.mxu0 0.0
  %3056 = vmatpush2.xpose.msra.mxu0 0.0
  %3057 = vmatprep.subr.mxu0 0.0
  %3058 = vmatpush2.xpose.msra.mxu0 0.0
  %3059 = vmatprep.subr.mxu0 0.0
  %3060 = vmatpush2.xpose.msra.mxu0 0.0
  %3061 = vmatprep.subr.mxu0 0.0
  %3062 = vmatpush2.xpose.msra.mxu0 0.0
  %3063 = vmatprep.subr.mxu0 0.0
  %3064 = vmatpush2.xpose.msra.mxu0 0.0
  %3065 = vmatprep.subr.mxu0 0.0
  %3066 = vmatpush2.xpose.msra.mxu0 0.0
  %3067 = vmatprep.subr.mxu0 0.0
  %3068 = vmatpush2.xpose.msra.mxu0 0.0
  %3069 = vmatprep.subr.mxu0 0.0
  %3070 = vmatpush2.xpose.msra.mxu0 0.0
  %3071 = vmatprep.subr.mxu0 0.0
  %3072 = vmatpush2.xpose.msra.mxu0 0.0
  %3073 = vmatprep.subr.mxu0 0.0
  %3074 = vmatpush2.xpose.msra.mxu0 0.0
  %3075 = vmatprep.subr.mxu0 0.0
  %3076 = vmatpush2.xpose.msra.mxu0 0.0
  %3077 = vmatprep.subr.mxu0 0.0
  %3078 = vmatpush2.xpose.msra.mxu0 0.0
  %3079 = vmatprep.subr.mxu0 0.0
  %3080 = vmatpush2.xpose.msra.mxu0 0.0
  %3081 = vmatprep.subr.mxu0 0.0
  %3082 = vmatpush2.xpose.msra.mxu0 0.0
  %3083 = vmatprep.subr.mxu0 0.0
  %3084 = vmatpush2.xpose.msra.mxu0 0.0
  %3085 = vmatprep.subr.mxu0 0.0
  %3086 = vmatpush2.xpose.msra.mxu0 0.0
  %3087 = vmatprep.mubr.f32.mxu0 0.0
  %3088 = vmatmul.mubr.f32.gmra.mxu0 %v3017
  %v3089 = vpop.f32.mrf.mxu0
  %v3090 = vadd.f32 %v34, %v3089
  %v3091 = vpop.f32.mrf.mxu0
  %3092 = vmatprep.mubr.f32.mxu0 0.0
  %3093 = vmatmul.mubr.f32.gmra.mxu0 %v3019
  %v3094 = vpop.f32.mrf.mxu0
  %v3095 = vadd.f32 %v35, %v3094
  %v3096 = vpop.f32.mrf.mxu0
  %3097 = vdwg.mxu0
  %v3098 = vsel %vm36, %v3090, -inf
  %3099 = vmax.xlane.f32.xlu0 %v3098
  %v3100 = vpop.xlane.xlu0 %3099
  %v3101 = vsel %vm36, %v3095, -inf
  %3102 = vmax.xlane.f32.xlu0 %v3101
  %v3103 = vpop.xlane.xlu0 %3102
  %v3104 = vsub.f32 %v3090, %v3100
  %v3105 = vsub.f32 %v3095, %v3103
  %v3106 = vmul.f32 %v3104, 1.442695
  %v3107 = vpow.pop %v3106
  %v3108 = vmul.f32 %v3105, 1.442695
  %v3109 = vpow.pop %v3108
  %v3110 = vsel %vm36, %v3107, 0.0
  %3111 = vadd.xlane.f32.xlu0 %v3110
  %v3112 = vpop.xlane.xlu0 %3111
  %v3113 = vsel %vm36, %v3109, 0.0
  %3114 = vadd.xlane.f32.xlu0 %v3113
  %v3115 = vpop.xlane.xlu0 %3114
  %v3116 = vmax.f32 %v3112, 1e-30
  %v3117 = vmax.f32 %v3115, 1e-30
  %v3118 = vrcp.pop %v3116
  %v3119 = vrcp.pop %v3117
  %v3120 = vmul.f32 %v3107, %v3118
  %v3121 = vmul.f32 %v3109, %v3119
  %v3122 = vsel %vm441, %v3008, 0.0
  %v3124 = vsel %vm36, %v3120, 0
  %v3127 = vsel %vm36, %v3121, 0
  %3129 = vmatprep.subr.mxu0 0.0
  %3130 = vmatpush1.msra.mxu0 0.0
  %3131 = vmatprep.subr.mxu0 0.0
  %3132 = vmatpush1.msra.mxu0 0.0
  %3133 = vmatprep.subr.mxu0 0.0
  %3134 = vmatpush1.msra.mxu0 0.0
  %3135 = vmatprep.subr.mxu0 0.0
  %3136 = vmatpush1.msra.mxu0 0.0
  %3137 = vmatprep.subr.mxu0 0.0
  %3138 = vmatpush1.msra.mxu0 0.0
  %3139 = vmatprep.subr.mxu0 0.0
  %3140 = vmatpush1.msra.mxu0 0.0
  %3141 = vmatprep.subr.mxu0 0.0
  %3142 = vmatpush1.msra.mxu0 0.0
  %3143 = vmatprep.subr.mxu0 0.0
  %3144 = vmatpush1.msra.mxu0 0.0
  %3145 = vmatprep.subr.mxu0 0.0
  %3146 = vmatpush1.msra.mxu0 0.0
  %3147 = vmatprep.subr.mxu0 0.0
  %3148 = vmatpush1.msra.mxu0 0.0
  %3149 = vmatprep.subr.mxu0 0.0
  %3150 = vmatpush1.msra.mxu0 0.0
  %3151 = vmatprep.subr.mxu0 0.0
  %3152 = vmatpush1.msra.mxu0 0.0
  %3153 = vmatprep.subr.mxu0 0.0
  %3154 = vmatpush1.msra.mxu0 0.0
  %3155 = vmatprep.subr.mxu0 0.0
  %3156 = vmatpush1.msra.mxu0 0.0
  %3157 = vmatprep.subr.mxu0 0.0
  %3158 = vmatpush1.msra.mxu0 0.0
  %3159 = vmatprep.subr.mxu0 0.0
  %3160 = vmatpush1.msra.mxu0 %v3122
  %3161 = vmatprep.subr.mxu0 0.0
  %3162 = vmatpush2.msra.mxu0 0.0
  %3163 = vmatprep.subr.mxu0 0.0
  %3164 = vmatpush2.msra.mxu0 0.0
  %3165 = vmatprep.subr.mxu0 0.0
  %3166 = vmatpush2.msra.mxu0 0.0
  %3167 = vmatprep.subr.mxu0 0.0
  %3168 = vmatpush2.msra.mxu0 0.0
  %3169 = vmatprep.subr.mxu0 0.0
  %3170 = vmatpush2.msra.mxu0 0.0
  %3171 = vmatprep.subr.mxu0 0.0
  %3172 = vmatpush2.msra.mxu0 0.0
  %3173 = vmatprep.subr.mxu0 0.0
  %3174 = vmatpush2.msra.mxu0 0.0
  %3175 = vmatprep.subr.mxu0 0.0
  %3176 = vmatpush2.msra.mxu0 0.0
  %3177 = vmatprep.subr.mxu0 0.0
  %3178 = vmatpush2.msra.mxu0 0.0
  %3179 = vmatprep.subr.mxu0 0.0
  %3180 = vmatpush2.msra.mxu0 0.0
  %3181 = vmatprep.subr.mxu0 0.0
  %3182 = vmatpush2.msra.mxu0 0.0
  %3183 = vmatprep.subr.mxu0 0.0
  %3184 = vmatpush2.msra.mxu0 0.0
  %3185 = vmatprep.subr.mxu0 0.0
  %3186 = vmatpush2.msra.mxu0 0.0
  %3187 = vmatprep.subr.mxu0 0.0
  %3188 = vmatpush2.msra.mxu0 0.0
  %3189 = vmatprep.subr.mxu0 0.0
  %3190 = vmatpush2.msra.mxu0 0.0
  %3191 = vmatprep.subr.mxu0 0.0
  %3192 = vmatpush2.msra.mxu0 0.0
  %3193 = vmatprep.mubr.f32.mxu0 0.0
  %3194 = vmatmul.mubr.f32.gmra.mxu0 %v3124
  %v3195 = vpop.f32.mrf.mxu0
  %v3196 = vadd.f32 0.0, %v3195
  %v3197 = vpop.f32.mrf.mxu0
  %3198 = vmatprep.mubr.f32.mxu0 0.0
  %3199 = vmatmul.mubr.f32.gmra.mxu0 %v3127
  %v3200 = vpop.f32.mrf.mxu0
  %v3201 = vadd.f32 0.0, %v3200
  %v3202 = vpop.f32.mrf.mxu0
  %3203 = vdwg.mxu0
  %v3205 = vsel %vm36, %v3005, 0
  %v3208 = vsel %vm36, %v3006, 0
  %3210 = vmatprep.subr.mxu0 0.0
  %3211 = vmatpush1.msra.mxu0 0.0
  %3212 = vmatprep.subr.mxu0 0.0
  %3213 = vmatpush1.msra.mxu0 0.0
  %3214 = vmatprep.subr.mxu0 0.0
  %3215 = vmatpush1.msra.mxu0 0.0
  %3216 = vmatprep.subr.mxu0 0.0
  %3217 = vmatpush1.msra.mxu0 0.0
  %3218 = vmatprep.subr.mxu0 0.0
  %3219 = vmatpush1.msra.mxu0 0.0
  %3220 = vmatprep.subr.mxu0 0.0
  %3221 = vmatpush1.msra.mxu0 0.0
  %3222 = vmatprep.subr.mxu0 0.0
  %3223 = vmatpush1.msra.mxu0 0.0
  %3224 = vmatprep.subr.mxu0 0.0
  %3225 = vmatpush1.msra.mxu0 0.0
  %3226 = vmatprep.subr.mxu0 0.0
  %3227 = vmatpush1.msra.mxu0 0.0
  %3228 = vmatprep.subr.mxu0 0.0
  %3229 = vmatpush1.msra.mxu0 0.0
  %3230 = vmatprep.subr.mxu0 0.0
  %3231 = vmatpush1.msra.mxu0 0.0
  %3232 = vmatprep.subr.mxu0 0.0
  %3233 = vmatpush1.msra.mxu0 0.0
  %3234 = vmatprep.subr.mxu0 0.0
  %3235 = vmatpush1.msra.mxu0 0.0
  %3236 = vmatprep.subr.mxu0 0.0
  %3237 = vmatpush1.msra.mxu0 0.0
  %3238 = vmatprep.subr.mxu0 0.0
  %3239 = vmatpush1.msra.mxu0 0.0
  %3240 = vmatprep.subr.mxu0 0.0
  %3241 = vmatpush1.msra.mxu0 %v3010
  %3242 = vmatprep.subr.mxu0 0.0
  %3243 = vmatpush2.msra.mxu0 0.0
  %3244 = vmatprep.subr.mxu0 0.0
  %3245 = vmatpush2.msra.mxu0 0.0
  %3246 = vmatprep.subr.mxu0 0.0
  %3247 = vmatpush2.msra.mxu0 0.0
  %3248 = vmatprep.subr.mxu0 0.0
  %3249 = vmatpush2.msra.mxu0 0.0
  %3250 = vmatprep.subr.mxu0 0.0
  %3251 = vmatpush2.msra.mxu0 0.0
  %3252 = vmatprep.subr.mxu0 0.0
  %3253 = vmatpush2.msra.mxu0 0.0
  %3254 = vmatprep.subr.mxu0 0.0
  %3255 = vmatpush2.msra.mxu0 0.0
  %3256 = vmatprep.subr.mxu0 0.0
  %3257 = vmatpush2.msra.mxu0 0.0
  %3258 = vmatprep.subr.mxu0 0.0
  %3259 = vmatpush2.msra.mxu0 0.0
  %3260 = vmatprep.subr.mxu0 0.0
  %3261 = vmatpush2.msra.mxu0 0.0
  %3262 = vmatprep.subr.mxu0 0.0
  %3263 = vmatpush2.msra.mxu0 0.0
  %3264 = vmatprep.subr.mxu0 0.0
  %3265 = vmatpush2.msra.mxu0 0.0
  %3266 = vmatprep.subr.mxu0 0.0
  %3267 = vmatpush2.msra.mxu0 0.0
  %3268 = vmatprep.subr.mxu0 0.0
  %3269 = vmatpush2.msra.mxu0 0.0
  %3270 = vmatprep.subr.mxu0 0.0
  %3271 = vmatpush2.msra.mxu0 0.0
  %3272 = vmatprep.subr.mxu0 0.0
  %3273 = vmatpush2.msra.mxu0 0.0
  %3274 = vmatprep.mubr.f32.mxu0 0.0
  %3275 = vmatmul.mubr.f32.gmra.mxu0 %v3205
  %v3276 = vpop.f32.mrf.mxu0
  %v3277 = vadd.f32 %v3196, %v3276
  %v3278 = vpop.f32.mrf.mxu0
  %3279 = vmatprep.mubr.f32.mxu0 0.0
  %3280 = vmatmul.mubr.f32.gmra.mxu0 %v3208
  %v3281 = vpop.f32.mrf.mxu0
  %v3282 = vadd.f32 %v3201, %v3281
  %v3283 = vpop.f32.mrf.mxu0
  %3284 = vdwg.mxu0
  %3285 = vrot.lane.b32.xlu0 %v2813, 112
  %v3286 = vpop.permute.xlu0 %3285
  %3287 = vrot.lane.b32.xlu0 %v2818, 112
  %v3288 = vpop.permute.xlu0 %3287
  %3289 = vrot.lane.b32.xlu0 %v2896, 112
  %v3290 = vpop.permute.xlu0 %3289
  %v3291 = vsel %vm36, %v3286, 0
  %v3293 = vsel %vm36, %v3288, 0
  %v3295 = vsel %vm36, %v3290, 0
  %3297 = vmatprep.subr.mxu0 0.0
  %3298 = vmatpush1.xpose.msra.mxu0 0.0
  %3299 = vmatprep.subr.mxu0 0.0
  %3300 = vmatpush1.xpose.msra.mxu0 0.0
  %3301 = vmatprep.subr.mxu0 0.0
  %3302 = vmatpush1.xpose.msra.mxu0 0.0
  %3303 = vmatprep.subr.mxu0 0.0
  %3304 = vmatpush1.xpose.msra.mxu0 0.0
  %3305 = vmatprep.subr.mxu0 0.0
  %3306 = vmatpush1.xpose.msra.mxu0 0.0
  %3307 = vmatprep.subr.mxu0 0.0
  %3308 = vmatpush1.xpose.msra.mxu0 0.0
  %3309 = vmatprep.subr.mxu0 0.0
  %3310 = vmatpush1.xpose.msra.mxu0 0.0
  %3311 = vmatprep.subr.mxu0 0.0
  %3312 = vmatpush1.xpose.msra.mxu0 0.0
  %3313 = vmatprep.subr.mxu0 0.0
  %3314 = vmatpush1.xpose.msra.mxu0 0.0
  %3315 = vmatprep.subr.mxu0 0.0
  %3316 = vmatpush1.xpose.msra.mxu0 0.0
  %3317 = vmatprep.subr.mxu0 0.0
  %3318 = vmatpush1.xpose.msra.mxu0 0.0
  %3319 = vmatprep.subr.mxu0 0.0
  %3320 = vmatpush1.xpose.msra.mxu0 0.0
  %3321 = vmatprep.subr.mxu0 0.0
  %3322 = vmatpush1.xpose.msra.mxu0 0.0
  %3323 = vmatprep.subr.mxu0 0.0
  %3324 = vmatpush1.xpose.msra.mxu0 0.0
  %3325 = vmatprep.subr.mxu0 0.0
  %3326 = vmatpush1.xpose.msra.mxu0 0.0
  %3327 = vmatprep.subr.mxu0 0.0
  %3328 = vmatpush1.xpose.msra.mxu0 %v3295
  %3329 = vmatprep.subr.mxu0 0.0
  %3330 = vmatpush2.xpose.msra.mxu0 0.0
  %3331 = vmatprep.subr.mxu0 0.0
  %3332 = vmatpush2.xpose.msra.mxu0 0.0
  %3333 = vmatprep.subr.mxu0 0.0
  %3334 = vmatpush2.xpose.msra.mxu0 0.0
  %3335 = vmatprep.subr.mxu0 0.0
  %3336 = vmatpush2.xpose.msra.mxu0 0.0
  %3337 = vmatprep.subr.mxu0 0.0
  %3338 = vmatpush2.xpose.msra.mxu0 0.0
  %3339 = vmatprep.subr.mxu0 0.0
  %3340 = vmatpush2.xpose.msra.mxu0 0.0
  %3341 = vmatprep.subr.mxu0 0.0
  %3342 = vmatpush2.xpose.msra.mxu0 0.0
  %3343 = vmatprep.subr.mxu0 0.0
  %3344 = vmatpush2.xpose.msra.mxu0 0.0
  %3345 = vmatprep.subr.mxu0 0.0
  %3346 = vmatpush2.xpose.msra.mxu0 0.0
  %3347 = vmatprep.subr.mxu0 0.0
  %3348 = vmatpush2.xpose.msra.mxu0 0.0
  %3349 = vmatprep.subr.mxu0 0.0
  %3350 = vmatpush2.xpose.msra.mxu0 0.0
  %3351 = vmatprep.subr.mxu0 0.0
  %3352 = vmatpush2.xpose.msra.mxu0 0.0
  %3353 = vmatprep.subr.mxu0 0.0
  %3354 = vmatpush2.xpose.msra.mxu0 0.0
  %3355 = vmatprep.subr.mxu0 0.0
  %3356 = vmatpush2.xpose.msra.mxu0 0.0
  %3357 = vmatprep.subr.mxu0 0.0
  %3358 = vmatpush2.xpose.msra.mxu0 0.0
  %3359 = vmatprep.subr.mxu0 0.0
  %3360 = vmatpush2.xpose.msra.mxu0 0.0
  %3361 = vmatprep.mubr.f32.mxu0 0.0
  %3362 = vmatmul.mubr.f32.gmra.mxu0 %v3291
  %v3363 = vpop.f32.mrf.mxu0
  %v3364 = vadd.f32 %v34, %v3363
  %v3365 = vpop.f32.mrf.mxu0
  %3366 = vmatprep.mubr.f32.mxu0 0.0
  %3367 = vmatmul.mubr.f32.gmra.mxu0 %v3293
  %v3368 = vpop.f32.mrf.mxu0
  %v3369 = vadd.f32 %v35, %v3368
  %v3370 = vpop.f32.mrf.mxu0
  %3371 = vdwg.mxu0
  %v3372 = vsel %vm36, %v3364, -inf
  %3373 = vmax.xlane.f32.xlu0 %v3372
  %v3374 = vpop.xlane.xlu0 %3373
  %v3375 = vsel %vm36, %v3369, -inf
  %3376 = vmax.xlane.f32.xlu0 %v3375
  %v3377 = vpop.xlane.xlu0 %3376
  %v3378 = vsub.f32 %v3364, %v3374
  %v3379 = vsub.f32 %v3369, %v3377
  %v3380 = vmul.f32 %v3378, 1.442695
  %v3381 = vpow.pop %v3380
  %v3382 = vmul.f32 %v3379, 1.442695
  %v3383 = vpow.pop %v3382
  %v3384 = vsel %vm36, %v3381, 0.0
  %3385 = vadd.xlane.f32.xlu0 %v3384
  %v3386 = vpop.xlane.xlu0 %3385
  %v3387 = vsel %vm36, %v3383, 0.0
  %3388 = vadd.xlane.f32.xlu0 %v3387
  %v3389 = vpop.xlane.xlu0 %3388
  %v3390 = vmax.f32 %v3386, 1e-30
  %v3391 = vmax.f32 %v3389, 1e-30
  %v3392 = vrcp.pop %v3390
  %v3393 = vrcp.pop %v3391
  %v3394 = vmul.f32 %v3381, %v3392
  %v3395 = vmul.f32 %v3383, %v3393
  %v3396 = vsel %vm688, %v3008, 0.0
  %v3398 = vsel %vm36, %v3394, 0
  %v3401 = vsel %vm36, %v3395, 0
  %3403 = vmatprep.subr.mxu0 0.0
  %3404 = vmatpush1.msra.mxu0 0.0
  %3405 = vmatprep.subr.mxu0 0.0
  %3406 = vmatpush1.msra.mxu0 0.0
  %3407 = vmatprep.subr.mxu0 0.0
  %3408 = vmatpush1.msra.mxu0 0.0
  %3409 = vmatprep.subr.mxu0 0.0
  %3410 = vmatpush1.msra.mxu0 0.0
  %3411 = vmatprep.subr.mxu0 0.0
  %3412 = vmatpush1.msra.mxu0 0.0
  %3413 = vmatprep.subr.mxu0 0.0
  %3414 = vmatpush1.msra.mxu0 0.0
  %3415 = vmatprep.subr.mxu0 0.0
  %3416 = vmatpush1.msra.mxu0 0.0
  %3417 = vmatprep.subr.mxu0 0.0
  %3418 = vmatpush1.msra.mxu0 0.0
  %3419 = vmatprep.subr.mxu0 0.0
  %3420 = vmatpush1.msra.mxu0 0.0
  %3421 = vmatprep.subr.mxu0 0.0
  %3422 = vmatpush1.msra.mxu0 0.0
  %3423 = vmatprep.subr.mxu0 0.0
  %3424 = vmatpush1.msra.mxu0 0.0
  %3425 = vmatprep.subr.mxu0 0.0
  %3426 = vmatpush1.msra.mxu0 0.0
  %3427 = vmatprep.subr.mxu0 0.0
  %3428 = vmatpush1.msra.mxu0 0.0
  %3429 = vmatprep.subr.mxu0 0.0
  %3430 = vmatpush1.msra.mxu0 0.0
  %3431 = vmatprep.subr.mxu0 0.0
  %3432 = vmatpush1.msra.mxu0 0.0
  %3433 = vmatprep.subr.mxu0 0.0
  %3434 = vmatpush1.msra.mxu0 %v3396
  %3435 = vmatprep.subr.mxu0 0.0
  %3436 = vmatpush2.msra.mxu0 0.0
  %3437 = vmatprep.subr.mxu0 0.0
  %3438 = vmatpush2.msra.mxu0 0.0
  %3439 = vmatprep.subr.mxu0 0.0
  %3440 = vmatpush2.msra.mxu0 0.0
  %3441 = vmatprep.subr.mxu0 0.0
  %3442 = vmatpush2.msra.mxu0 0.0
  %3443 = vmatprep.subr.mxu0 0.0
  %3444 = vmatpush2.msra.mxu0 0.0
  %3445 = vmatprep.subr.mxu0 0.0
  %3446 = vmatpush2.msra.mxu0 0.0
  %3447 = vmatprep.subr.mxu0 0.0
  %3448 = vmatpush2.msra.mxu0 0.0
  %3449 = vmatprep.subr.mxu0 0.0
  %3450 = vmatpush2.msra.mxu0 0.0
  %3451 = vmatprep.subr.mxu0 0.0
  %3452 = vmatpush2.msra.mxu0 0.0
  %3453 = vmatprep.subr.mxu0 0.0
  %3454 = vmatpush2.msra.mxu0 0.0
  %3455 = vmatprep.subr.mxu0 0.0
  %3456 = vmatpush2.msra.mxu0 0.0
  %3457 = vmatprep.subr.mxu0 0.0
  %3458 = vmatpush2.msra.mxu0 0.0
  %3459 = vmatprep.subr.mxu0 0.0
  %3460 = vmatpush2.msra.mxu0 0.0
  %3461 = vmatprep.subr.mxu0 0.0
  %3462 = vmatpush2.msra.mxu0 0.0
  %3463 = vmatprep.subr.mxu0 0.0
  %3464 = vmatpush2.msra.mxu0 0.0
  %3465 = vmatprep.subr.mxu0 0.0
  %3466 = vmatpush2.msra.mxu0 0.0
  %3467 = vmatprep.mubr.f32.mxu0 0.0
  %3468 = vmatmul.mubr.f32.gmra.mxu0 %v3398
  %v3469 = vpop.f32.mrf.mxu0
  %v3470 = vadd.f32 0.0, %v3469
  %v3471 = vpop.f32.mrf.mxu0
  %3472 = vmatprep.mubr.f32.mxu0 0.0
  %3473 = vmatmul.mubr.f32.gmra.mxu0 %v3401
  %v3474 = vpop.f32.mrf.mxu0
  %v3475 = vadd.f32 0.0, %v3474
  %v3476 = vpop.f32.mrf.mxu0
  %3477 = vdwg.mxu0
  %v3478 = vadd.f32 %v3277, %v3470
  %v3479 = vadd.f32 %v3282, %v3475
  %3480 = vrot.lane.b32.xlu0 %v2813, 104
  %v3481 = vpop.permute.xlu0 %3480
  %3482 = vrot.lane.b32.xlu0 %v2818, 104
  %v3483 = vpop.permute.xlu0 %3482
  %3484 = vrot.lane.b32.xlu0 %v2896, 104
  %v3485 = vpop.permute.xlu0 %3484
  %v3486 = vsel %vm36, %v3481, 0
  %v3488 = vsel %vm36, %v3483, 0
  %v3490 = vsel %vm36, %v3485, 0
  %3492 = vmatprep.subr.mxu0 0.0
  %3493 = vmatpush1.xpose.msra.mxu0 0.0
  %3494 = vmatprep.subr.mxu0 0.0
  %3495 = vmatpush1.xpose.msra.mxu0 0.0
  %3496 = vmatprep.subr.mxu0 0.0
  %3497 = vmatpush1.xpose.msra.mxu0 0.0
  %3498 = vmatprep.subr.mxu0 0.0
  %3499 = vmatpush1.xpose.msra.mxu0 0.0
  %3500 = vmatprep.subr.mxu0 0.0
  %3501 = vmatpush1.xpose.msra.mxu0 0.0
  %3502 = vmatprep.subr.mxu0 0.0
  %3503 = vmatpush1.xpose.msra.mxu0 0.0
  %3504 = vmatprep.subr.mxu0 0.0
  %3505 = vmatpush1.xpose.msra.mxu0 0.0
  %3506 = vmatprep.subr.mxu0 0.0
  %3507 = vmatpush1.xpose.msra.mxu0 0.0
  %3508 = vmatprep.subr.mxu0 0.0
  %3509 = vmatpush1.xpose.msra.mxu0 0.0
  %3510 = vmatprep.subr.mxu0 0.0
  %3511 = vmatpush1.xpose.msra.mxu0 0.0
  %3512 = vmatprep.subr.mxu0 0.0
  %3513 = vmatpush1.xpose.msra.mxu0 0.0
  %3514 = vmatprep.subr.mxu0 0.0
  %3515 = vmatpush1.xpose.msra.mxu0 0.0
  %3516 = vmatprep.subr.mxu0 0.0
  %3517 = vmatpush1.xpose.msra.mxu0 0.0
  %3518 = vmatprep.subr.mxu0 0.0
  %3519 = vmatpush1.xpose.msra.mxu0 0.0
  %3520 = vmatprep.subr.mxu0 0.0
  %3521 = vmatpush1.xpose.msra.mxu0 0.0
  %3522 = vmatprep.subr.mxu0 0.0
  %3523 = vmatpush1.xpose.msra.mxu0 %v3490
  %3524 = vmatprep.subr.mxu0 0.0
  %3525 = vmatpush2.xpose.msra.mxu0 0.0
  %3526 = vmatprep.subr.mxu0 0.0
  %3527 = vmatpush2.xpose.msra.mxu0 0.0
  %3528 = vmatprep.subr.mxu0 0.0
  %3529 = vmatpush2.xpose.msra.mxu0 0.0
  %3530 = vmatprep.subr.mxu0 0.0
  %3531 = vmatpush2.xpose.msra.mxu0 0.0
  %3532 = vmatprep.subr.mxu0 0.0
  %3533 = vmatpush2.xpose.msra.mxu0 0.0
  %3534 = vmatprep.subr.mxu0 0.0
  %3535 = vmatpush2.xpose.msra.mxu0 0.0
  %3536 = vmatprep.subr.mxu0 0.0
  %3537 = vmatpush2.xpose.msra.mxu0 0.0
  %3538 = vmatprep.subr.mxu0 0.0
  %3539 = vmatpush2.xpose.msra.mxu0 0.0
  %3540 = vmatprep.subr.mxu0 0.0
  %3541 = vmatpush2.xpose.msra.mxu0 0.0
  %3542 = vmatprep.subr.mxu0 0.0
  %3543 = vmatpush2.xpose.msra.mxu0 0.0
  %3544 = vmatprep.subr.mxu0 0.0
  %3545 = vmatpush2.xpose.msra.mxu0 0.0
  %3546 = vmatprep.subr.mxu0 0.0
  %3547 = vmatpush2.xpose.msra.mxu0 0.0
  %3548 = vmatprep.subr.mxu0 0.0
  %3549 = vmatpush2.xpose.msra.mxu0 0.0
  %3550 = vmatprep.subr.mxu0 0.0
  %3551 = vmatpush2.xpose.msra.mxu0 0.0
  %3552 = vmatprep.subr.mxu0 0.0
  %3553 = vmatpush2.xpose.msra.mxu0 0.0
  %3554 = vmatprep.subr.mxu0 0.0
  %3555 = vmatpush2.xpose.msra.mxu0 0.0
  %3556 = vmatprep.mubr.f32.mxu0 0.0
  %3557 = vmatmul.mubr.f32.gmra.mxu0 %v3486
  %v3558 = vpop.f32.mrf.mxu0
  %v3559 = vadd.f32 %v34, %v3558
  %v3560 = vpop.f32.mrf.mxu0
  %3561 = vmatprep.mubr.f32.mxu0 0.0
  %3562 = vmatmul.mubr.f32.gmra.mxu0 %v3488
  %v3563 = vpop.f32.mrf.mxu0
  %v3564 = vadd.f32 %v35, %v3563
  %v3565 = vpop.f32.mrf.mxu0
  %3566 = vdwg.mxu0
  %v3567 = vsel %vm36, %v3559, -inf
  %3568 = vmax.xlane.f32.xlu0 %v3567
  %v3569 = vpop.xlane.xlu0 %3568
  %v3570 = vsel %vm36, %v3564, -inf
  %3571 = vmax.xlane.f32.xlu0 %v3570
  %v3572 = vpop.xlane.xlu0 %3571
  %v3573 = vsub.f32 %v3559, %v3569
  %v3574 = vsub.f32 %v3564, %v3572
  %v3575 = vmul.f32 %v3573, 1.442695
  %v3576 = vpow.pop %v3575
  %v3577 = vmul.f32 %v3574, 1.442695
  %v3578 = vpow.pop %v3577
  %v3579 = vsel %vm36, %v3576, 0.0
  %3580 = vadd.xlane.f32.xlu0 %v3579
  %v3581 = vpop.xlane.xlu0 %3580
  %v3582 = vsel %vm36, %v3578, 0.0
  %3583 = vadd.xlane.f32.xlu0 %v3582
  %v3584 = vpop.xlane.xlu0 %3583
  %v3585 = vmax.f32 %v3581, 1e-30
  %v3586 = vmax.f32 %v3584, 1e-30
  %v3587 = vrcp.pop %v3585
  %v3588 = vrcp.pop %v3586
  %v3589 = vmul.f32 %v3576, %v3587
  %v3590 = vmul.f32 %v3578, %v3588
  %v3591 = vsel %vm863, %v3008, 0.0
  %v3593 = vsel %vm36, %v3589, 0
  %v3596 = vsel %vm36, %v3590, 0
  %3598 = vmatprep.subr.mxu0 0.0
  %3599 = vmatpush1.msra.mxu0 0.0
  %3600 = vmatprep.subr.mxu0 0.0
  %3601 = vmatpush1.msra.mxu0 0.0
  %3602 = vmatprep.subr.mxu0 0.0
  %3603 = vmatpush1.msra.mxu0 0.0
  %3604 = vmatprep.subr.mxu0 0.0
  %3605 = vmatpush1.msra.mxu0 0.0
  %3606 = vmatprep.subr.mxu0 0.0
  %3607 = vmatpush1.msra.mxu0 0.0
  %3608 = vmatprep.subr.mxu0 0.0
  %3609 = vmatpush1.msra.mxu0 0.0
  %3610 = vmatprep.subr.mxu0 0.0
  %3611 = vmatpush1.msra.mxu0 0.0
  %3612 = vmatprep.subr.mxu0 0.0
  %3613 = vmatpush1.msra.mxu0 0.0
  %3614 = vmatprep.subr.mxu0 0.0
  %3615 = vmatpush1.msra.mxu0 0.0
  %3616 = vmatprep.subr.mxu0 0.0
  %3617 = vmatpush1.msra.mxu0 0.0
  %3618 = vmatprep.subr.mxu0 0.0
  %3619 = vmatpush1.msra.mxu0 0.0
  %3620 = vmatprep.subr.mxu0 0.0
  %3621 = vmatpush1.msra.mxu0 0.0
  %3622 = vmatprep.subr.mxu0 0.0
  %3623 = vmatpush1.msra.mxu0 0.0
  %3624 = vmatprep.subr.mxu0 0.0
  %3625 = vmatpush1.msra.mxu0 0.0
  %3626 = vmatprep.subr.mxu0 0.0
  %3627 = vmatpush1.msra.mxu0 0.0
  %3628 = vmatprep.subr.mxu0 0.0
  %3629 = vmatpush1.msra.mxu0 %v3591
  %3630 = vmatprep.subr.mxu0 0.0
  %3631 = vmatpush2.msra.mxu0 0.0
  %3632 = vmatprep.subr.mxu0 0.0
  %3633 = vmatpush2.msra.mxu0 0.0
  %3634 = vmatprep.subr.mxu0 0.0
  %3635 = vmatpush2.msra.mxu0 0.0
  %3636 = vmatprep.subr.mxu0 0.0
  %3637 = vmatpush2.msra.mxu0 0.0
  %3638 = vmatprep.subr.mxu0 0.0
  %3639 = vmatpush2.msra.mxu0 0.0
  %3640 = vmatprep.subr.mxu0 0.0
  %3641 = vmatpush2.msra.mxu0 0.0
  %3642 = vmatprep.subr.mxu0 0.0
  %3643 = vmatpush2.msra.mxu0 0.0
  %3644 = vmatprep.subr.mxu0 0.0
  %3645 = vmatpush2.msra.mxu0 0.0
  %3646 = vmatprep.subr.mxu0 0.0
  %3647 = vmatpush2.msra.mxu0 0.0
  %3648 = vmatprep.subr.mxu0 0.0
  %3649 = vmatpush2.msra.mxu0 0.0
  %3650 = vmatprep.subr.mxu0 0.0
  %3651 = vmatpush2.msra.mxu0 0.0
  %3652 = vmatprep.subr.mxu0 0.0
  %3653 = vmatpush2.msra.mxu0 0.0
  %3654 = vmatprep.subr.mxu0 0.0
  %3655 = vmatpush2.msra.mxu0 0.0
  %3656 = vmatprep.subr.mxu0 0.0
  %3657 = vmatpush2.msra.mxu0 0.0
  %3658 = vmatprep.subr.mxu0 0.0
  %3659 = vmatpush2.msra.mxu0 0.0
  %3660 = vmatprep.subr.mxu0 0.0
  %3661 = vmatpush2.msra.mxu0 0.0
  %3662 = vmatprep.mubr.f32.mxu0 0.0
  %3663 = vmatmul.mubr.f32.gmra.mxu0 %v3593
  %v3664 = vpop.f32.mrf.mxu0
  %v3665 = vadd.f32 0.0, %v3664
  %v3666 = vpop.f32.mrf.mxu0
  %3667 = vmatprep.mubr.f32.mxu0 0.0
  %3668 = vmatmul.mubr.f32.gmra.mxu0 %v3596
  %v3669 = vpop.f32.mrf.mxu0
  %v3670 = vadd.f32 0.0, %v3669
  %v3671 = vpop.f32.mrf.mxu0
  %3672 = vdwg.mxu0
  %v3673 = vadd.f32 %v3478, %v3665
  %v3674 = vadd.f32 %v3479, %v3670
  %v3675 = vmul.f32 %v3673, %v43
  %v3676 = vmul.f32 %v3674, %v44
  %3677 = vrot.lane.b32.xlu0 %v2813, 96
  %v3678 = vpop.permute.xlu0 %3677
  %3679 = vrot.lane.b32.xlu0 %v2818, 96
  %v3680 = vpop.permute.xlu0 %3679
  %v3681 = vsel %vm36, %v3678, 0
  %v3683 = vsel %vm36, %v3680, 0
  %3685 = vmatprep.subr.mxu0 0.0
  %3686 = vmatpush1.xpose.msra.mxu0 0.0
  %3687 = vmatprep.subr.mxu0 0.0
  %3688 = vmatpush1.xpose.msra.mxu0 0.0
  %3689 = vmatprep.subr.mxu0 0.0
  %3690 = vmatpush1.xpose.msra.mxu0 0.0
  %3691 = vmatprep.subr.mxu0 0.0
  %3692 = vmatpush1.xpose.msra.mxu0 0.0
  %3693 = vmatprep.subr.mxu0 0.0
  %3694 = vmatpush1.xpose.msra.mxu0 0.0
  %3695 = vmatprep.subr.mxu0 0.0
  %3696 = vmatpush1.xpose.msra.mxu0 0.0
  %3697 = vmatprep.subr.mxu0 0.0
  %3698 = vmatpush1.xpose.msra.mxu0 0.0
  %3699 = vmatprep.subr.mxu0 0.0
  %3700 = vmatpush1.xpose.msra.mxu0 0.0
  %3701 = vmatprep.subr.mxu0 0.0
  %3702 = vmatpush1.xpose.msra.mxu0 0.0
  %3703 = vmatprep.subr.mxu0 0.0
  %3704 = vmatpush1.xpose.msra.mxu0 0.0
  %3705 = vmatprep.subr.mxu0 0.0
  %3706 = vmatpush1.xpose.msra.mxu0 0.0
  %3707 = vmatprep.subr.mxu0 0.0
  %3708 = vmatpush1.xpose.msra.mxu0 0.0
  %3709 = vmatprep.subr.mxu0 0.0
  %3710 = vmatpush1.xpose.msra.mxu0 0.0
  %3711 = vmatprep.subr.mxu0 0.0
  %3712 = vmatpush1.xpose.msra.mxu0 0.0
  %3713 = vmatprep.subr.mxu0 0.0
  %3714 = vmatpush1.xpose.msra.mxu0 %v3683
  %3715 = vmatprep.subr.mxu0 0.0
  %3716 = vmatpush1.xpose.msra.mxu0 %v3681
  %3717 = vmatprep.subr.mxu0 0.0
  %3718 = vmatpush2.xpose.msra.mxu0 0.0
  %3719 = vmatprep.subr.mxu0 0.0
  %3720 = vmatpush2.xpose.msra.mxu0 0.0
  %3721 = vmatprep.subr.mxu0 0.0
  %3722 = vmatpush2.xpose.msra.mxu0 0.0
  %3723 = vmatprep.subr.mxu0 0.0
  %3724 = vmatpush2.xpose.msra.mxu0 0.0
  %3725 = vmatprep.subr.mxu0 0.0
  %3726 = vmatpush2.xpose.msra.mxu0 0.0
  %3727 = vmatprep.subr.mxu0 0.0
  %3728 = vmatpush2.xpose.msra.mxu0 0.0
  %3729 = vmatprep.subr.mxu0 0.0
  %3730 = vmatpush2.xpose.msra.mxu0 0.0
  %3731 = vmatprep.subr.mxu0 0.0
  %3732 = vmatpush2.xpose.msra.mxu0 0.0
  %3733 = vmatprep.subr.mxu0 0.0
  %3734 = vmatpush2.xpose.msra.mxu0 0.0
  %3735 = vmatprep.subr.mxu0 0.0
  %3736 = vmatpush2.xpose.msra.mxu0 0.0
  %3737 = vmatprep.subr.mxu0 0.0
  %3738 = vmatpush2.xpose.msra.mxu0 0.0
  %3739 = vmatprep.subr.mxu0 0.0
  %3740 = vmatpush2.xpose.msra.mxu0 0.0
  %3741 = vmatprep.subr.mxu0 0.0
  %3742 = vmatpush2.xpose.msra.mxu0 0.0
  %3743 = vmatprep.subr.mxu0 0.0
  %3744 = vmatpush2.xpose.msra.mxu0 0.0
  %3745 = vmatprep.subr.mxu0 0.0
  %3746 = vmatpush2.xpose.msra.mxu0 0.0
  %3747 = vmatprep.subr.mxu0 0.0
  %3748 = vmatpush2.xpose.msra.mxu0 0.0
  %3749 = vmatprep.mubr.f32.mxu0 0.0
  %3750 = vmatmul.mubr.f32.gmra.mxu0 %v2900
  %v3751 = vpop.f32.mrf.mxu0
  %v3752 = vadd.f32 %v47, %v3751
  %v3753 = vpop.f32.mrf.mxu0
  %3754 = vmatprep.mubr.f32.mxu0 0.0
  %3755 = vmatmul.mubr.f32.gmra.mxu0 %v2903
  %v3756 = vpop.f32.mrf.mxu0
  %v3757 = vadd.f32 %v48, %v3756
  %v3758 = vpop.f32.mrf.mxu0
  %3759 = vdwg.mxu0
  %v3760 = vsel %vm27, %v3752, -inf
  %3761 = vmax.xlane.f32.xlu0 %v3760
  %v3762 = vpop.xlane.xlu0 %3761
  %v3763 = vsel %vm27, %v3757, -inf
  %3764 = vmax.xlane.f32.xlu0 %v3763
  %v3765 = vpop.xlane.xlu0 %3764
  %v3766 = vsub.f32 %v3752, %v3762
  %v3767 = vsub.f32 %v3757, %v3765
  %v3768 = vmul.f32 %v3766, 1.442695
  %v3769 = vpow.pop %v3768
  %v3770 = vmul.f32 %v3767, 1.442695
  %v3771 = vpow.pop %v3770
  %v3772 = vsel %vm27, %v3769, 0.0
  %3773 = vadd.xlane.f32.xlu0 %v3772
  %v3774 = vpop.xlane.xlu0 %3773
  %v3775 = vsel %vm27, %v3771, 0.0
  %3776 = vadd.xlane.f32.xlu0 %v3775
  %v3777 = vpop.xlane.xlu0 %3776
  %v3778 = vmax.f32 %v3774, 1e-30
  %v3779 = vmax.f32 %v3777, 1e-30
  %v3780 = vrcp.pop %v3778
  %v3781 = vrcp.pop %v3779
  %v3782 = vmul.f32 %v3769, %v3780
  %v3783 = vmul.f32 %v3771, %v3781
  %3784 = vrot.lane.b32.xlu0 %v2813, 64
  %v3785 = vpop.permute.xlu0 %3784
  %3786 = vrot.lane.b32.xlu0 %v2818, 64
  %v3787 = vpop.permute.xlu0 %3786
  %v3790 = vsel %vm334, %v3785, 0.0
  %v3791 = vsel %vm334, %v3787, 0.0
  %3792 = vrot.lane.b32.xlu0 %v2813, 88
  %v3793 = vpop.permute.xlu0 %3792
  %3794 = vrot.lane.b32.xlu0 %v2818, 88
  %v3795 = vpop.permute.xlu0 %3794
  %v3796 = vsel %vm36, %v3793, 0
  %v3798 = vsel %vm36, %v3795, 0
  %3800 = vmatprep.subr.mxu0 0.0
  %3801 = vmatpush1.xpose.msra.mxu0 0.0
  %3802 = vmatprep.subr.mxu0 0.0
  %3803 = vmatpush1.xpose.msra.mxu0 0.0
  %3804 = vmatprep.subr.mxu0 0.0
  %3805 = vmatpush1.xpose.msra.mxu0 0.0
  %3806 = vmatprep.subr.mxu0 0.0
  %3807 = vmatpush1.xpose.msra.mxu0 0.0
  %3808 = vmatprep.subr.mxu0 0.0
  %3809 = vmatpush1.xpose.msra.mxu0 0.0
  %3810 = vmatprep.subr.mxu0 0.0
  %3811 = vmatpush1.xpose.msra.mxu0 0.0
  %3812 = vmatprep.subr.mxu0 0.0
  %3813 = vmatpush1.xpose.msra.mxu0 0.0
  %3814 = vmatprep.subr.mxu0 0.0
  %3815 = vmatpush1.xpose.msra.mxu0 0.0
  %3816 = vmatprep.subr.mxu0 0.0
  %3817 = vmatpush1.xpose.msra.mxu0 0.0
  %3818 = vmatprep.subr.mxu0 0.0
  %3819 = vmatpush1.xpose.msra.mxu0 0.0
  %3820 = vmatprep.subr.mxu0 0.0
  %3821 = vmatpush1.xpose.msra.mxu0 0.0
  %3822 = vmatprep.subr.mxu0 0.0
  %3823 = vmatpush1.xpose.msra.mxu0 0.0
  %3824 = vmatprep.subr.mxu0 0.0
  %3825 = vmatpush1.xpose.msra.mxu0 0.0
  %3826 = vmatprep.subr.mxu0 0.0
  %3827 = vmatpush1.xpose.msra.mxu0 0.0
  %3828 = vmatprep.subr.mxu0 0.0
  %3829 = vmatpush1.xpose.msra.mxu0 %v3798
  %3830 = vmatprep.subr.mxu0 0.0
  %3831 = vmatpush1.xpose.msra.mxu0 %v3796
  %3832 = vmatprep.subr.mxu0 0.0
  %3833 = vmatpush2.xpose.msra.mxu0 0.0
  %3834 = vmatprep.subr.mxu0 0.0
  %3835 = vmatpush2.xpose.msra.mxu0 0.0
  %3836 = vmatprep.subr.mxu0 0.0
  %3837 = vmatpush2.xpose.msra.mxu0 0.0
  %3838 = vmatprep.subr.mxu0 0.0
  %3839 = vmatpush2.xpose.msra.mxu0 0.0
  %3840 = vmatprep.subr.mxu0 0.0
  %3841 = vmatpush2.xpose.msra.mxu0 0.0
  %3842 = vmatprep.subr.mxu0 0.0
  %3843 = vmatpush2.xpose.msra.mxu0 0.0
  %3844 = vmatprep.subr.mxu0 0.0
  %3845 = vmatpush2.xpose.msra.mxu0 0.0
  %3846 = vmatprep.subr.mxu0 0.0
  %3847 = vmatpush2.xpose.msra.mxu0 0.0
  %3848 = vmatprep.subr.mxu0 0.0
  %3849 = vmatpush2.xpose.msra.mxu0 0.0
  %3850 = vmatprep.subr.mxu0 0.0
  %3851 = vmatpush2.xpose.msra.mxu0 0.0
  %3852 = vmatprep.subr.mxu0 0.0
  %3853 = vmatpush2.xpose.msra.mxu0 0.0
  %3854 = vmatprep.subr.mxu0 0.0
  %3855 = vmatpush2.xpose.msra.mxu0 0.0
  %3856 = vmatprep.subr.mxu0 0.0
  %3857 = vmatpush2.xpose.msra.mxu0 0.0
  %3858 = vmatprep.subr.mxu0 0.0
  %3859 = vmatpush2.xpose.msra.mxu0 0.0
  %3860 = vmatprep.subr.mxu0 0.0
  %3861 = vmatpush2.xpose.msra.mxu0 0.0
  %3862 = vmatprep.subr.mxu0 0.0
  %3863 = vmatpush2.xpose.msra.mxu0 0.0
  %3864 = vmatprep.mubr.f32.mxu0 0.0
  %3865 = vmatmul.mubr.f32.gmra.mxu0 %v3017
  %v3866 = vpop.f32.mrf.mxu0
  %v3867 = vadd.f32 %v47, %v3866
  %v3868 = vpop.f32.mrf.mxu0
  %3869 = vmatprep.mubr.f32.mxu0 0.0
  %3870 = vmatmul.mubr.f32.gmra.mxu0 %v3019
  %v3871 = vpop.f32.mrf.mxu0
  %v3872 = vadd.f32 %v48, %v3871
  %v3873 = vpop.f32.mrf.mxu0
  %3874 = vdwg.mxu0
  %v3875 = vsel %vm27, %v3867, -inf
  %3876 = vmax.xlane.f32.xlu0 %v3875
  %v3877 = vpop.xlane.xlu0 %3876
  %v3878 = vsel %vm27, %v3872, -inf
  %3879 = vmax.xlane.f32.xlu0 %v3878
  %v3880 = vpop.xlane.xlu0 %3879
  %v3881 = vsub.f32 %v3867, %v3877
  %v3882 = vsub.f32 %v3872, %v3880
  %v3883 = vmul.f32 %v3881, 1.442695
  %v3884 = vpow.pop %v3883
  %v3885 = vmul.f32 %v3882, 1.442695
  %v3886 = vpow.pop %v3885
  %v3887 = vsel %vm27, %v3884, 0.0
  %3888 = vadd.xlane.f32.xlu0 %v3887
  %v3889 = vpop.xlane.xlu0 %3888
  %v3890 = vsel %vm27, %v3886, 0.0
  %3891 = vadd.xlane.f32.xlu0 %v3890
  %v3892 = vpop.xlane.xlu0 %3891
  %v3893 = vmax.f32 %v3889, 1e-30
  %v3894 = vmax.f32 %v3892, 1e-30
  %v3895 = vrcp.pop %v3893
  %v3896 = vrcp.pop %v3894
  %v3897 = vmul.f32 %v3884, %v3895
  %v3898 = vmul.f32 %v3886, %v3896
  %v3899 = vsel %vm441, %v3785, 0.0
  %v3900 = vsel %vm441, %v3787, 0.0
  %v3902 = vsel %vm27, %v3897, 0
  %v3905 = vsel %vm27, %v3898, 0
  %3907 = vmatprep.subr.mxu0 0.0
  %3908 = vmatpush1.msra.mxu0 0.0
  %3909 = vmatprep.subr.mxu0 0.0
  %3910 = vmatpush1.msra.mxu0 0.0
  %3911 = vmatprep.subr.mxu0 0.0
  %3912 = vmatpush1.msra.mxu0 0.0
  %3913 = vmatprep.subr.mxu0 0.0
  %3914 = vmatpush1.msra.mxu0 0.0
  %3915 = vmatprep.subr.mxu0 0.0
  %3916 = vmatpush1.msra.mxu0 0.0
  %3917 = vmatprep.subr.mxu0 0.0
  %3918 = vmatpush1.msra.mxu0 0.0
  %3919 = vmatprep.subr.mxu0 0.0
  %3920 = vmatpush1.msra.mxu0 0.0
  %3921 = vmatprep.subr.mxu0 0.0
  %3922 = vmatpush1.msra.mxu0 0.0
  %3923 = vmatprep.subr.mxu0 0.0
  %3924 = vmatpush1.msra.mxu0 0.0
  %3925 = vmatprep.subr.mxu0 0.0
  %3926 = vmatpush1.msra.mxu0 0.0
  %3927 = vmatprep.subr.mxu0 0.0
  %3928 = vmatpush1.msra.mxu0 0.0
  %3929 = vmatprep.subr.mxu0 0.0
  %3930 = vmatpush1.msra.mxu0 0.0
  %3931 = vmatprep.subr.mxu0 0.0
  %3932 = vmatpush1.msra.mxu0 0.0
  %3933 = vmatprep.subr.mxu0 0.0
  %3934 = vmatpush1.msra.mxu0 0.0
  %3935 = vmatprep.subr.mxu0 0.0
  %3936 = vmatpush1.msra.mxu0 %v3900
  %3937 = vmatprep.subr.mxu0 0.0
  %3938 = vmatpush1.msra.mxu0 %v3899
  %3939 = vmatprep.subr.mxu0 0.0
  %3940 = vmatpush2.msra.mxu0 0.0
  %3941 = vmatprep.subr.mxu0 0.0
  %3942 = vmatpush2.msra.mxu0 0.0
  %3943 = vmatprep.subr.mxu0 0.0
  %3944 = vmatpush2.msra.mxu0 0.0
  %3945 = vmatprep.subr.mxu0 0.0
  %3946 = vmatpush2.msra.mxu0 0.0
  %3947 = vmatprep.subr.mxu0 0.0
  %3948 = vmatpush2.msra.mxu0 0.0
  %3949 = vmatprep.subr.mxu0 0.0
  %3950 = vmatpush2.msra.mxu0 0.0
  %3951 = vmatprep.subr.mxu0 0.0
  %3952 = vmatpush2.msra.mxu0 0.0
  %3953 = vmatprep.subr.mxu0 0.0
  %3954 = vmatpush2.msra.mxu0 0.0
  %3955 = vmatprep.subr.mxu0 0.0
  %3956 = vmatpush2.msra.mxu0 0.0
  %3957 = vmatprep.subr.mxu0 0.0
  %3958 = vmatpush2.msra.mxu0 0.0
  %3959 = vmatprep.subr.mxu0 0.0
  %3960 = vmatpush2.msra.mxu0 0.0
  %3961 = vmatprep.subr.mxu0 0.0
  %3962 = vmatpush2.msra.mxu0 0.0
  %3963 = vmatprep.subr.mxu0 0.0
  %3964 = vmatpush2.msra.mxu0 0.0
  %3965 = vmatprep.subr.mxu0 0.0
  %3966 = vmatpush2.msra.mxu0 0.0
  %3967 = vmatprep.subr.mxu0 0.0
  %3968 = vmatpush2.msra.mxu0 0.0
  %3969 = vmatprep.subr.mxu0 0.0
  %3970 = vmatpush2.msra.mxu0 0.0
  %3971 = vmatprep.mubr.f32.mxu0 0.0
  %3972 = vmatmul.mubr.f32.gmra.mxu0 %v3902
  %v3973 = vpop.f32.mrf.mxu0
  %v3974 = vadd.f32 0.0, %v3973
  %v3975 = vpop.f32.mrf.mxu0
  %3976 = vmatprep.mubr.f32.mxu0 0.0
  %3977 = vmatmul.mubr.f32.gmra.mxu0 %v3905
  %v3978 = vpop.f32.mrf.mxu0
  %v3979 = vadd.f32 0.0, %v3978
  %v3980 = vpop.f32.mrf.mxu0
  %3981 = vdwg.mxu0
  %v3983 = vsel %vm27, %v3782, 0
  %v3986 = vsel %vm27, %v3783, 0
  %3988 = vmatprep.subr.mxu0 0.0
  %3989 = vmatpush1.msra.mxu0 0.0
  %3990 = vmatprep.subr.mxu0 0.0
  %3991 = vmatpush1.msra.mxu0 0.0
  %3992 = vmatprep.subr.mxu0 0.0
  %3993 = vmatpush1.msra.mxu0 0.0
  %3994 = vmatprep.subr.mxu0 0.0
  %3995 = vmatpush1.msra.mxu0 0.0
  %3996 = vmatprep.subr.mxu0 0.0
  %3997 = vmatpush1.msra.mxu0 0.0
  %3998 = vmatprep.subr.mxu0 0.0
  %3999 = vmatpush1.msra.mxu0 0.0
  %4000 = vmatprep.subr.mxu0 0.0
  %4001 = vmatpush1.msra.mxu0 0.0
  %4002 = vmatprep.subr.mxu0 0.0
  %4003 = vmatpush1.msra.mxu0 0.0
  %4004 = vmatprep.subr.mxu0 0.0
  %4005 = vmatpush1.msra.mxu0 0.0
  %4006 = vmatprep.subr.mxu0 0.0
  %4007 = vmatpush1.msra.mxu0 0.0
  %4008 = vmatprep.subr.mxu0 0.0
  %4009 = vmatpush1.msra.mxu0 0.0
  %4010 = vmatprep.subr.mxu0 0.0
  %4011 = vmatpush1.msra.mxu0 0.0
  %4012 = vmatprep.subr.mxu0 0.0
  %4013 = vmatpush1.msra.mxu0 0.0
  %4014 = vmatprep.subr.mxu0 0.0
  %4015 = vmatpush1.msra.mxu0 0.0
  %4016 = vmatprep.subr.mxu0 0.0
  %4017 = vmatpush1.msra.mxu0 %v3791
  %4018 = vmatprep.subr.mxu0 0.0
  %4019 = vmatpush1.msra.mxu0 %v3790
  %4020 = vmatprep.subr.mxu0 0.0
  %4021 = vmatpush2.msra.mxu0 0.0
  %4022 = vmatprep.subr.mxu0 0.0
  %4023 = vmatpush2.msra.mxu0 0.0
  %4024 = vmatprep.subr.mxu0 0.0
  %4025 = vmatpush2.msra.mxu0 0.0
  %4026 = vmatprep.subr.mxu0 0.0
  %4027 = vmatpush2.msra.mxu0 0.0
  %4028 = vmatprep.subr.mxu0 0.0
  %4029 = vmatpush2.msra.mxu0 0.0
  %4030 = vmatprep.subr.mxu0 0.0
  %4031 = vmatpush2.msra.mxu0 0.0
  %4032 = vmatprep.subr.mxu0 0.0
  %4033 = vmatpush2.msra.mxu0 0.0
  %4034 = vmatprep.subr.mxu0 0.0
  %4035 = vmatpush2.msra.mxu0 0.0
  %4036 = vmatprep.subr.mxu0 0.0
  %4037 = vmatpush2.msra.mxu0 0.0
  %4038 = vmatprep.subr.mxu0 0.0
  %4039 = vmatpush2.msra.mxu0 0.0
  %4040 = vmatprep.subr.mxu0 0.0
  %4041 = vmatpush2.msra.mxu0 0.0
  %4042 = vmatprep.subr.mxu0 0.0
  %4043 = vmatpush2.msra.mxu0 0.0
  %4044 = vmatprep.subr.mxu0 0.0
  %4045 = vmatpush2.msra.mxu0 0.0
  %4046 = vmatprep.subr.mxu0 0.0
  %4047 = vmatpush2.msra.mxu0 0.0
  %4048 = vmatprep.subr.mxu0 0.0
  %4049 = vmatpush2.msra.mxu0 0.0
  %4050 = vmatprep.subr.mxu0 0.0
  %4051 = vmatpush2.msra.mxu0 0.0
  %4052 = vmatprep.mubr.f32.mxu0 0.0
  %4053 = vmatmul.mubr.f32.gmra.mxu0 %v3983
  %v4054 = vpop.f32.mrf.mxu0
  %v4055 = vadd.f32 %v3974, %v4054
  %v4056 = vpop.f32.mrf.mxu0
  %4057 = vmatprep.mubr.f32.mxu0 0.0
  %4058 = vmatmul.mubr.f32.gmra.mxu0 %v3986
  %v4059 = vpop.f32.mrf.mxu0
  %v4060 = vadd.f32 %v3979, %v4059
  %v4061 = vpop.f32.mrf.mxu0
  %4062 = vdwg.mxu0
  %4063 = vrot.lane.b32.xlu0 %v2813, 80
  %v4064 = vpop.permute.xlu0 %4063
  %4065 = vrot.lane.b32.xlu0 %v2818, 80
  %v4066 = vpop.permute.xlu0 %4065
  %v4067 = vsel %vm36, %v4064, 0
  %v4069 = vsel %vm36, %v4066, 0
  %4071 = vmatprep.subr.mxu0 0.0
  %4072 = vmatpush1.xpose.msra.mxu0 0.0
  %4073 = vmatprep.subr.mxu0 0.0
  %4074 = vmatpush1.xpose.msra.mxu0 0.0
  %4075 = vmatprep.subr.mxu0 0.0
  %4076 = vmatpush1.xpose.msra.mxu0 0.0
  %4077 = vmatprep.subr.mxu0 0.0
  %4078 = vmatpush1.xpose.msra.mxu0 0.0
  %4079 = vmatprep.subr.mxu0 0.0
  %4080 = vmatpush1.xpose.msra.mxu0 0.0
  %4081 = vmatprep.subr.mxu0 0.0
  %4082 = vmatpush1.xpose.msra.mxu0 0.0
  %4083 = vmatprep.subr.mxu0 0.0
  %4084 = vmatpush1.xpose.msra.mxu0 0.0
  %4085 = vmatprep.subr.mxu0 0.0
  %4086 = vmatpush1.xpose.msra.mxu0 0.0
  %4087 = vmatprep.subr.mxu0 0.0
  %4088 = vmatpush1.xpose.msra.mxu0 0.0
  %4089 = vmatprep.subr.mxu0 0.0
  %4090 = vmatpush1.xpose.msra.mxu0 0.0
  %4091 = vmatprep.subr.mxu0 0.0
  %4092 = vmatpush1.xpose.msra.mxu0 0.0
  %4093 = vmatprep.subr.mxu0 0.0
  %4094 = vmatpush1.xpose.msra.mxu0 0.0
  %4095 = vmatprep.subr.mxu0 0.0
  %4096 = vmatpush1.xpose.msra.mxu0 0.0
  %4097 = vmatprep.subr.mxu0 0.0
  %4098 = vmatpush1.xpose.msra.mxu0 0.0
  %4099 = vmatprep.subr.mxu0 0.0
  %4100 = vmatpush1.xpose.msra.mxu0 %v4069
  %4101 = vmatprep.subr.mxu0 0.0
  %4102 = vmatpush1.xpose.msra.mxu0 %v4067
  %4103 = vmatprep.subr.mxu0 0.0
  %4104 = vmatpush2.xpose.msra.mxu0 0.0
  %4105 = vmatprep.subr.mxu0 0.0
  %4106 = vmatpush2.xpose.msra.mxu0 0.0
  %4107 = vmatprep.subr.mxu0 0.0
  %4108 = vmatpush2.xpose.msra.mxu0 0.0
  %4109 = vmatprep.subr.mxu0 0.0
  %4110 = vmatpush2.xpose.msra.mxu0 0.0
  %4111 = vmatprep.subr.mxu0 0.0
  %4112 = vmatpush2.xpose.msra.mxu0 0.0
  %4113 = vmatprep.subr.mxu0 0.0
  %4114 = vmatpush2.xpose.msra.mxu0 0.0
  %4115 = vmatprep.subr.mxu0 0.0
  %4116 = vmatpush2.xpose.msra.mxu0 0.0
  %4117 = vmatprep.subr.mxu0 0.0
  %4118 = vmatpush2.xpose.msra.mxu0 0.0
  %4119 = vmatprep.subr.mxu0 0.0
  %4120 = vmatpush2.xpose.msra.mxu0 0.0
  %4121 = vmatprep.subr.mxu0 0.0
  %4122 = vmatpush2.xpose.msra.mxu0 0.0
  %4123 = vmatprep.subr.mxu0 0.0
  %4124 = vmatpush2.xpose.msra.mxu0 0.0
  %4125 = vmatprep.subr.mxu0 0.0
  %4126 = vmatpush2.xpose.msra.mxu0 0.0
  %4127 = vmatprep.subr.mxu0 0.0
  %4128 = vmatpush2.xpose.msra.mxu0 0.0
  %4129 = vmatprep.subr.mxu0 0.0
  %4130 = vmatpush2.xpose.msra.mxu0 0.0
  %4131 = vmatprep.subr.mxu0 0.0
  %4132 = vmatpush2.xpose.msra.mxu0 0.0
  %4133 = vmatprep.subr.mxu0 0.0
  %4134 = vmatpush2.xpose.msra.mxu0 0.0
  %4135 = vmatprep.mubr.f32.mxu0 0.0
  %4136 = vmatmul.mubr.f32.gmra.mxu0 %v3291
  %v4137 = vpop.f32.mrf.mxu0
  %v4138 = vadd.f32 %v47, %v4137
  %v4139 = vpop.f32.mrf.mxu0
  %4140 = vmatprep.mubr.f32.mxu0 0.0
  %4141 = vmatmul.mubr.f32.gmra.mxu0 %v3293
  %v4142 = vpop.f32.mrf.mxu0
  %v4143 = vadd.f32 %v48, %v4142
  %v4144 = vpop.f32.mrf.mxu0
  %4145 = vdwg.mxu0
  %v4146 = vsel %vm27, %v4138, -inf
  %4147 = vmax.xlane.f32.xlu0 %v4146
  %v4148 = vpop.xlane.xlu0 %4147
  %v4149 = vsel %vm27, %v4143, -inf
  %4150 = vmax.xlane.f32.xlu0 %v4149
  %v4151 = vpop.xlane.xlu0 %4150
  %v4152 = vsub.f32 %v4138, %v4148
  %v4153 = vsub.f32 %v4143, %v4151
  %v4154 = vmul.f32 %v4152, 1.442695
  %v4155 = vpow.pop %v4154
  %v4156 = vmul.f32 %v4153, 1.442695
  %v4157 = vpow.pop %v4156
  %v4158 = vsel %vm27, %v4155, 0.0
  %4159 = vadd.xlane.f32.xlu0 %v4158
  %v4160 = vpop.xlane.xlu0 %4159
  %v4161 = vsel %vm27, %v4157, 0.0
  %4162 = vadd.xlane.f32.xlu0 %v4161
  %v4163 = vpop.xlane.xlu0 %4162
  %v4164 = vmax.f32 %v4160, 1e-30
  %v4165 = vmax.f32 %v4163, 1e-30
  %v4166 = vrcp.pop %v4164
  %v4167 = vrcp.pop %v4165
  %v4168 = vmul.f32 %v4155, %v4166
  %v4169 = vmul.f32 %v4157, %v4167
  %v4170 = vsel %vm688, %v3785, 0.0
  %v4171 = vsel %vm688, %v3787, 0.0
  %v4173 = vsel %vm27, %v4168, 0
  %v4176 = vsel %vm27, %v4169, 0
  %4178 = vmatprep.subr.mxu0 0.0
  %4179 = vmatpush1.msra.mxu0 0.0
  %4180 = vmatprep.subr.mxu0 0.0
  %4181 = vmatpush1.msra.mxu0 0.0
  %4182 = vmatprep.subr.mxu0 0.0
  %4183 = vmatpush1.msra.mxu0 0.0
  %4184 = vmatprep.subr.mxu0 0.0
  %4185 = vmatpush1.msra.mxu0 0.0
  %4186 = vmatprep.subr.mxu0 0.0
  %4187 = vmatpush1.msra.mxu0 0.0
  %4188 = vmatprep.subr.mxu0 0.0
  %4189 = vmatpush1.msra.mxu0 0.0
  %4190 = vmatprep.subr.mxu0 0.0
  %4191 = vmatpush1.msra.mxu0 0.0
  %4192 = vmatprep.subr.mxu0 0.0
  %4193 = vmatpush1.msra.mxu0 0.0
  %4194 = vmatprep.subr.mxu0 0.0
  %4195 = vmatpush1.msra.mxu0 0.0
  %4196 = vmatprep.subr.mxu0 0.0
  %4197 = vmatpush1.msra.mxu0 0.0
  %4198 = vmatprep.subr.mxu0 0.0
  %4199 = vmatpush1.msra.mxu0 0.0
  %4200 = vmatprep.subr.mxu0 0.0
  %4201 = vmatpush1.msra.mxu0 0.0
  %4202 = vmatprep.subr.mxu0 0.0
  %4203 = vmatpush1.msra.mxu0 0.0
  %4204 = vmatprep.subr.mxu0 0.0
  %4205 = vmatpush1.msra.mxu0 0.0
  %4206 = vmatprep.subr.mxu0 0.0
  %4207 = vmatpush1.msra.mxu0 %v4171
  %4208 = vmatprep.subr.mxu0 0.0
  %4209 = vmatpush1.msra.mxu0 %v4170
  %4210 = vmatprep.subr.mxu0 0.0
  %4211 = vmatpush2.msra.mxu0 0.0
  %4212 = vmatprep.subr.mxu0 0.0
  %4213 = vmatpush2.msra.mxu0 0.0
  %4214 = vmatprep.subr.mxu0 0.0
  %4215 = vmatpush2.msra.mxu0 0.0
  %4216 = vmatprep.subr.mxu0 0.0
  %4217 = vmatpush2.msra.mxu0 0.0
  %4218 = vmatprep.subr.mxu0 0.0
  %4219 = vmatpush2.msra.mxu0 0.0
  %4220 = vmatprep.subr.mxu0 0.0
  %4221 = vmatpush2.msra.mxu0 0.0
  %4222 = vmatprep.subr.mxu0 0.0
  %4223 = vmatpush2.msra.mxu0 0.0
  %4224 = vmatprep.subr.mxu0 0.0
  %4225 = vmatpush2.msra.mxu0 0.0
  %4226 = vmatprep.subr.mxu0 0.0
  %4227 = vmatpush2.msra.mxu0 0.0
  %4228 = vmatprep.subr.mxu0 0.0
  %4229 = vmatpush2.msra.mxu0 0.0
  %4230 = vmatprep.subr.mxu0 0.0
  %4231 = vmatpush2.msra.mxu0 0.0
  %4232 = vmatprep.subr.mxu0 0.0
  %4233 = vmatpush2.msra.mxu0 0.0
  %4234 = vmatprep.subr.mxu0 0.0
  %4235 = vmatpush2.msra.mxu0 0.0
  %4236 = vmatprep.subr.mxu0 0.0
  %4237 = vmatpush2.msra.mxu0 0.0
  %4238 = vmatprep.subr.mxu0 0.0
  %4239 = vmatpush2.msra.mxu0 0.0
  %4240 = vmatprep.subr.mxu0 0.0
  %4241 = vmatpush2.msra.mxu0 0.0
  %4242 = vmatprep.mubr.f32.mxu0 0.0
  %4243 = vmatmul.mubr.f32.gmra.mxu0 %v4173
  %v4244 = vpop.f32.mrf.mxu0
  %v4245 = vadd.f32 0.0, %v4244
  %v4246 = vpop.f32.mrf.mxu0
  %4247 = vmatprep.mubr.f32.mxu0 0.0
  %4248 = vmatmul.mubr.f32.gmra.mxu0 %v4176
  %v4249 = vpop.f32.mrf.mxu0
  %v4250 = vadd.f32 0.0, %v4249
  %v4251 = vpop.f32.mrf.mxu0
  %4252 = vdwg.mxu0
  %v4253 = vadd.f32 %v4055, %v4245
  %v4254 = vadd.f32 %v4060, %v4250
  %4255 = vrot.lane.b32.xlu0 %v2813, 72
  %v4256 = vpop.permute.xlu0 %4255
  %4257 = vrot.lane.b32.xlu0 %v2818, 72
  %v4258 = vpop.permute.xlu0 %4257
  %v4259 = vsel %vm36, %v4256, 0
  %v4261 = vsel %vm36, %v4258, 0
  %4263 = vmatprep.subr.mxu0 0.0
  %4264 = vmatpush1.xpose.msra.mxu0 0.0
  %4265 = vmatprep.subr.mxu0 0.0
  %4266 = vmatpush1.xpose.msra.mxu0 0.0
  %4267 = vmatprep.subr.mxu0 0.0
  %4268 = vmatpush1.xpose.msra.mxu0 0.0
  %4269 = vmatprep.subr.mxu0 0.0
  %4270 = vmatpush1.xpose.msra.mxu0 0.0
  %4271 = vmatprep.subr.mxu0 0.0
  %4272 = vmatpush1.xpose.msra.mxu0 0.0
  %4273 = vmatprep.subr.mxu0 0.0
  %4274 = vmatpush1.xpose.msra.mxu0 0.0
  %4275 = vmatprep.subr.mxu0 0.0
  %4276 = vmatpush1.xpose.msra.mxu0 0.0
  %4277 = vmatprep.subr.mxu0 0.0
  %4278 = vmatpush1.xpose.msra.mxu0 0.0
  %4279 = vmatprep.subr.mxu0 0.0
  %4280 = vmatpush1.xpose.msra.mxu0 0.0
  %4281 = vmatprep.subr.mxu0 0.0
  %4282 = vmatpush1.xpose.msra.mxu0 0.0
  %4283 = vmatprep.subr.mxu0 0.0
  %4284 = vmatpush1.xpose.msra.mxu0 0.0
  %4285 = vmatprep.subr.mxu0 0.0
  %4286 = vmatpush1.xpose.msra.mxu0 0.0
  %4287 = vmatprep.subr.mxu0 0.0
  %4288 = vmatpush1.xpose.msra.mxu0 0.0
  %4289 = vmatprep.subr.mxu0 0.0
  %4290 = vmatpush1.xpose.msra.mxu0 0.0
  %4291 = vmatprep.subr.mxu0 0.0
  %4292 = vmatpush1.xpose.msra.mxu0 %v4261
  %4293 = vmatprep.subr.mxu0 0.0
  %4294 = vmatpush1.xpose.msra.mxu0 %v4259
  %4295 = vmatprep.subr.mxu0 0.0
  %4296 = vmatpush2.xpose.msra.mxu0 0.0
  %4297 = vmatprep.subr.mxu0 0.0
  %4298 = vmatpush2.xpose.msra.mxu0 0.0
  %4299 = vmatprep.subr.mxu0 0.0
  %4300 = vmatpush2.xpose.msra.mxu0 0.0
  %4301 = vmatprep.subr.mxu0 0.0
  %4302 = vmatpush2.xpose.msra.mxu0 0.0
  %4303 = vmatprep.subr.mxu0 0.0
  %4304 = vmatpush2.xpose.msra.mxu0 0.0
  %4305 = vmatprep.subr.mxu0 0.0
  %4306 = vmatpush2.xpose.msra.mxu0 0.0
  %4307 = vmatprep.subr.mxu0 0.0
  %4308 = vmatpush2.xpose.msra.mxu0 0.0
  %4309 = vmatprep.subr.mxu0 0.0
  %4310 = vmatpush2.xpose.msra.mxu0 0.0
  %4311 = vmatprep.subr.mxu0 0.0
  %4312 = vmatpush2.xpose.msra.mxu0 0.0
  %4313 = vmatprep.subr.mxu0 0.0
  %4314 = vmatpush2.xpose.msra.mxu0 0.0
  %4315 = vmatprep.subr.mxu0 0.0
  %4316 = vmatpush2.xpose.msra.mxu0 0.0
  %4317 = vmatprep.subr.mxu0 0.0
  %4318 = vmatpush2.xpose.msra.mxu0 0.0
  %4319 = vmatprep.subr.mxu0 0.0
  %4320 = vmatpush2.xpose.msra.mxu0 0.0
  %4321 = vmatprep.subr.mxu0 0.0
  %4322 = vmatpush2.xpose.msra.mxu0 0.0
  %4323 = vmatprep.subr.mxu0 0.0
  %4324 = vmatpush2.xpose.msra.mxu0 0.0
  %4325 = vmatprep.subr.mxu0 0.0
  %4326 = vmatpush2.xpose.msra.mxu0 0.0
  %4327 = vmatprep.mubr.f32.mxu0 0.0
  %4328 = vmatmul.mubr.f32.gmra.mxu0 %v3486
  %v4329 = vpop.f32.mrf.mxu0
  %v4330 = vadd.f32 %v47, %v4329
  %v4331 = vpop.f32.mrf.mxu0
  %4332 = vmatprep.mubr.f32.mxu0 0.0
  %4333 = vmatmul.mubr.f32.gmra.mxu0 %v3488
  %v4334 = vpop.f32.mrf.mxu0
  %v4335 = vadd.f32 %v48, %v4334
  %v4336 = vpop.f32.mrf.mxu0
  %4337 = vdwg.mxu0
  %v4338 = vsel %vm27, %v4330, -inf
  %4339 = vmax.xlane.f32.xlu0 %v4338
  %v4340 = vpop.xlane.xlu0 %4339
  %v4341 = vsel %vm27, %v4335, -inf
  %4342 = vmax.xlane.f32.xlu0 %v4341
  %v4343 = vpop.xlane.xlu0 %4342
  %v4344 = vsub.f32 %v4330, %v4340
  %v4345 = vsub.f32 %v4335, %v4343
  %v4346 = vmul.f32 %v4344, 1.442695
  %v4347 = vpow.pop %v4346
  %v4348 = vmul.f32 %v4345, 1.442695
  %v4349 = vpow.pop %v4348
  %v4350 = vsel %vm27, %v4347, 0.0
  %4351 = vadd.xlane.f32.xlu0 %v4350
  %v4352 = vpop.xlane.xlu0 %4351
  %v4353 = vsel %vm27, %v4349, 0.0
  %4354 = vadd.xlane.f32.xlu0 %v4353
  %v4355 = vpop.xlane.xlu0 %4354
  %v4356 = vmax.f32 %v4352, 1e-30
  %v4357 = vmax.f32 %v4355, 1e-30
  %v4358 = vrcp.pop %v4356
  %v4359 = vrcp.pop %v4357
  %v4360 = vmul.f32 %v4347, %v4358
  %v4361 = vmul.f32 %v4349, %v4359
  %v4362 = vsel %vm863, %v3785, 0.0
  %v4363 = vsel %vm863, %v3787, 0.0
  %v4365 = vsel %vm27, %v4360, 0
  %v4368 = vsel %vm27, %v4361, 0
  %4370 = vmatprep.subr.mxu0 0.0
  %4371 = vmatpush1.msra.mxu0 0.0
  %4372 = vmatprep.subr.mxu0 0.0
  %4373 = vmatpush1.msra.mxu0 0.0
  %4374 = vmatprep.subr.mxu0 0.0
  %4375 = vmatpush1.msra.mxu0 0.0
  %4376 = vmatprep.subr.mxu0 0.0
  %4377 = vmatpush1.msra.mxu0 0.0
  %4378 = vmatprep.subr.mxu0 0.0
  %4379 = vmatpush1.msra.mxu0 0.0
  %4380 = vmatprep.subr.mxu0 0.0
  %4381 = vmatpush1.msra.mxu0 0.0
  %4382 = vmatprep.subr.mxu0 0.0
  %4383 = vmatpush1.msra.mxu0 0.0
  %4384 = vmatprep.subr.mxu0 0.0
  %4385 = vmatpush1.msra.mxu0 0.0
  %4386 = vmatprep.subr.mxu0 0.0
  %4387 = vmatpush1.msra.mxu0 0.0
  %4388 = vmatprep.subr.mxu0 0.0
  %4389 = vmatpush1.msra.mxu0 0.0
  %4390 = vmatprep.subr.mxu0 0.0
  %4391 = vmatpush1.msra.mxu0 0.0
  %4392 = vmatprep.subr.mxu0 0.0
  %4393 = vmatpush1.msra.mxu0 0.0
  %4394 = vmatprep.subr.mxu0 0.0
  %4395 = vmatpush1.msra.mxu0 0.0
  %4396 = vmatprep.subr.mxu0 0.0
  %4397 = vmatpush1.msra.mxu0 0.0
  %4398 = vmatprep.subr.mxu0 0.0
  %4399 = vmatpush1.msra.mxu0 %v4363
  %4400 = vmatprep.subr.mxu0 0.0
  %4401 = vmatpush1.msra.mxu0 %v4362
  %4402 = vmatprep.subr.mxu0 0.0
  %4403 = vmatpush2.msra.mxu0 0.0
  %4404 = vmatprep.subr.mxu0 0.0
  %4405 = vmatpush2.msra.mxu0 0.0
  %4406 = vmatprep.subr.mxu0 0.0
  %4407 = vmatpush2.msra.mxu0 0.0
  %4408 = vmatprep.subr.mxu0 0.0
  %4409 = vmatpush2.msra.mxu0 0.0
  %4410 = vmatprep.subr.mxu0 0.0
  %4411 = vmatpush2.msra.mxu0 0.0
  %4412 = vmatprep.subr.mxu0 0.0
  %4413 = vmatpush2.msra.mxu0 0.0
  %4414 = vmatprep.subr.mxu0 0.0
  %4415 = vmatpush2.msra.mxu0 0.0
  %4416 = vmatprep.subr.mxu0 0.0
  %4417 = vmatpush2.msra.mxu0 0.0
  %4418 = vmatprep.subr.mxu0 0.0
  %4419 = vmatpush2.msra.mxu0 0.0
  %4420 = vmatprep.subr.mxu0 0.0
  %4421 = vmatpush2.msra.mxu0 0.0
  %4422 = vmatprep.subr.mxu0 0.0
  %4423 = vmatpush2.msra.mxu0 0.0
  %4424 = vmatprep.subr.mxu0 0.0
  %4425 = vmatpush2.msra.mxu0 0.0
  %4426 = vmatprep.subr.mxu0 0.0
  %4427 = vmatpush2.msra.mxu0 0.0
  %4428 = vmatprep.subr.mxu0 0.0
  %4429 = vmatpush2.msra.mxu0 0.0
  %4430 = vmatprep.subr.mxu0 0.0
  %4431 = vmatpush2.msra.mxu0 0.0
  %4432 = vmatprep.subr.mxu0 0.0
  %4433 = vmatpush2.msra.mxu0 0.0
  %4434 = vmatprep.mubr.f32.mxu0 0.0
  %4435 = vmatmul.mubr.f32.gmra.mxu0 %v4365
  %v4436 = vpop.f32.mrf.mxu0
  %v4437 = vadd.f32 0.0, %v4436
  %v4438 = vpop.f32.mrf.mxu0
  %4439 = vmatprep.mubr.f32.mxu0 0.0
  %4440 = vmatmul.mubr.f32.gmra.mxu0 %v4368
  %v4441 = vpop.f32.mrf.mxu0
  %v4442 = vadd.f32 0.0, %v4441
  %v4443 = vpop.f32.mrf.mxu0
  %4444 = vdwg.mxu0
  %v4445 = vadd.f32 %v4253, %v4437
  %v4446 = vadd.f32 %v4254, %v4442
  %v4447 = vmul.f32 %v4445, %v55
  %v4448 = vmul.f32 %v4446, %v56
  %v4449 = vadd.f32 %v3675, %v4447
  %v4450 = vadd.f32 %v3676, %v4448
  %v4451 = vmul.f32 %v4449, 0.5
  %v4452 = vmul.f32 %v4450, 0.5
  %v4453 = vmul.f32 %v4449, 0.70710677
  %v4454 = vmul.f32 %v4450, 0.70710677
  %v4455 = vand.u32 2147483647, %v4453
  %v4456 = vand.u32 2147483647, %v4454
  %v4457 = vmul.f32 %v4455, 0.3275911
  %v4458 = vmul.f32 %v4456, 0.3275911
  %v4459 = vadd.f32 %v4457, 1.0
  %v4460 = vadd.f32 %v4458, 1.0
  %v4461 = vrcp.pop %v4459
  %v4462 = vmul.f32 1.0, %v4461
  %v4463 = vrcp.pop %v4460
  %v4464 = vmul.f32 1.0, %v4463
  %v4465 = vmul.f32 %v4462, 1.0614054
  %v4466 = vmul.f32 %v4464, 1.0614054
  %v4467 = vsub.f32 %v4465, 1.4531521
  %v4468 = vsub.f32 %v4466, 1.4531521
  %v4469 = vmul.f32 %v4467, %v4462
  %v4470 = vmul.f32 %v4468, %v4464
  %v4471 = vadd.f32 %v4469, 1.4214138
  %v4472 = vadd.f32 %v4470, 1.4214138
  %v4473 = vmul.f32 %v4471, %v4462
  %v4474 = vmul.f32 %v4472, %v4464
  %v4475 = vsub.f32 %v4473, 0.28449672
  %v4476 = vsub.f32 %v4474, 0.28449672
  %v4477 = vmul.f32 %v4475, %v4462
  %v4478 = vmul.f32 %v4476, %v4464
  %v4479 = vadd.f32 %v4477, 0.2548296
  %v4480 = vadd.f32 %v4478, 0.2548296
  %v4481 = vmul.f32 %v4479, %v4462
  %v4482 = vmul.f32 %v4480, %v4464
  %v4483 = vsub.f32 0.0, %v4455
  %v4484 = vsub.f32 0.0, %v4456
  %v4485 = vmul.f32 %v4483, %v4455
  %v4486 = vmul.f32 %v4484, %v4456
  %v4487 = vmul.f32 %v4485, 1.442695
  %v4488 = vpow.pop %v4487
  %v4489 = vmul.f32 %v4486, 1.442695
  %v4490 = vpow.pop %v4489
  %v4491 = vmul.f32 %v4481, %v4488
  %v4492 = vmul.f32 %v4482, %v4490
  %v4493 = vsub.f32 1.0, %v4491
  %v4494 = vsub.f32 1.0, %v4492
  %vm4495 = vcmp.ge.f32.partialorder %v4453, 0.0
  %vm4496 = vcmp.ge.f32.partialorder %v4454, 0.0
  %v4497 = vsub.f32 0.0, %v4493
  %v4498 = vsub.f32 0.0, %v4494
  %v4499 = vsel %vm4495, %v4493, %v4497
  %v4500 = vsel %vm4496, %v4494, %v4498
  %v4501 = vadd.f32 %v4499, 1.0
  %v4502 = vadd.f32 %v4500, 1.0
  %v4503 = vmul.f32 %v4451, %v4501
  %v4504 = vmul.f32 %v4452, %v4502
  %v4505 = vld [vmem:[%s3 + $0x1a0] sm:$0xff]
  %v4506 = vld [vmem:[%s3 + $0x1b0] sm:$0xff]
  %v4507 = vld [vmem:[%s3 + $0x1c0] sm:$0xff]
  %v4508 = vld [vmem:[%s3 + $0x1d0] sm:$0xff]
  %v4509 = vld [vmem:[%s3 + $0x1e0] ss:$0 sm:$0xff]
  %v4511 = vsel %vm2545, %v4503, 0
  %v4514 = vsel %vm2545, %v4504, 0
  %4516 = vmatprep.subr.mxu0 0.0
  %4517 = vmatpush1.msra.mxu0 0.0
  %4518 = vmatprep.subr.mxu0 0.0
  %4519 = vmatpush1.msra.mxu0 0.0
  %4520 = vmatprep.subr.mxu0 0.0
  %4521 = vmatpush1.msra.mxu0 0.0
  %4522 = vmatprep.subr.mxu0 0.0
  %4523 = vmatpush1.msra.mxu0 0.0
  %4524 = vmatprep.subr.mxu0 0.0
  %4525 = vmatpush1.msra.mxu0 0.0
  %4526 = vmatprep.subr.mxu0 0.0
  %4527 = vmatpush1.msra.mxu0 0.0
  %4528 = vmatprep.subr.mxu0 0.0
  %4529 = vmatpush1.msra.mxu0 0.0
  %4530 = vmatprep.subr.mxu0 0.0
  %4531 = vmatpush1.msra.mxu0 0.0
  %4532 = vmatprep.subr.mxu0 0.0
  %4533 = vmatpush1.msra.mxu0 0.0
  %4534 = vmatprep.subr.mxu0 0.0
  %4535 = vmatpush1.msra.mxu0 0.0
  %4536 = vmatprep.subr.mxu0 0.0
  %4537 = vmatpush1.msra.mxu0 0.0
  %4538 = vmatprep.subr.mxu0 0.0
  %4539 = vmatpush1.msra.mxu0 0.0
  %4540 = vmatprep.subr.mxu0 0.0
  %4541 = vmatpush1.msra.mxu0 %v4508
  %4542 = vmatprep.subr.mxu0 0.0
  %4543 = vmatpush1.msra.mxu0 %v4507
  %4544 = vmatprep.subr.mxu0 0.0
  %4545 = vmatpush1.msra.mxu0 %v4506
  %4546 = vmatprep.subr.mxu0 0.0
  %4547 = vmatpush1.msra.mxu0 %v4505
  %4548 = vmatprep.subr.mxu0 0.0
  %4549 = vmatpush2.msra.mxu0 0.0
  %4550 = vmatprep.subr.mxu0 0.0
  %4551 = vmatpush2.msra.mxu0 0.0
  %4552 = vmatprep.subr.mxu0 0.0
  %4553 = vmatpush2.msra.mxu0 0.0
  %4554 = vmatprep.subr.mxu0 0.0
  %4555 = vmatpush2.msra.mxu0 0.0
  %4556 = vmatprep.subr.mxu0 0.0
  %4557 = vmatpush2.msra.mxu0 0.0
  %4558 = vmatprep.subr.mxu0 0.0
  %4559 = vmatpush2.msra.mxu0 0.0
  %4560 = vmatprep.subr.mxu0 0.0
  %4561 = vmatpush2.msra.mxu0 0.0
  %4562 = vmatprep.subr.mxu0 0.0
  %4563 = vmatpush2.msra.mxu0 0.0
  %4564 = vmatprep.subr.mxu0 0.0
  %4565 = vmatpush2.msra.mxu0 0.0
  %4566 = vmatprep.subr.mxu0 0.0
  %4567 = vmatpush2.msra.mxu0 0.0
  %4568 = vmatprep.subr.mxu0 0.0
  %4569 = vmatpush2.msra.mxu0 0.0
  %4570 = vmatprep.subr.mxu0 0.0
  %4571 = vmatpush2.msra.mxu0 0.0
  %4572 = vmatprep.subr.mxu0 0.0
  %4573 = vmatpush2.msra.mxu0 0.0
  %4574 = vmatprep.subr.mxu0 0.0
  %4575 = vmatpush2.msra.mxu0 0.0
  %4576 = vmatprep.subr.mxu0 0.0
  %4577 = vmatpush2.msra.mxu0 0.0
  %4578 = vmatprep.subr.mxu0 0.0
  %4579 = vmatpush2.msra.mxu0 0.0
  %4580 = vmatprep.mubr.f32.mxu0 0.0
  %4581 = vmatmul.mubr.f32.gmra.mxu0 %v4511
  %v4582 = vpop.f32.mrf.mxu0
  %v4583 = vadd.f32 %v4509, %v4582
  %v4584 = vpop.f32.mrf.mxu0
  %4585 = vmatprep.mubr.f32.mxu0 0.0
  %4586 = vmatmul.mubr.f32.gmra.mxu0 %v4514
  %v4587 = vpop.f32.mrf.mxu0
  %v4588 = vadd.f32 %v4509, %v4587
  %v4589 = vpop.f32.mrf.mxu0
  %4590 = vdwg.mxu0
  %v4591 = vld [vmem:[%s3 + $0x1f0] ss:$0 sm:$0xff]
  %v4592 = vmul.f32 %v4591, %v2732
  %v4593 = vmul.f32 %v4591, %v2733
  %v4594 = vadd.f32 %v4583, %v4592
  %v4595 = vadd.f32 %v4588, %v4593
  %v4596 = vld [vmem:[%s3 + $0x200] sm:$0xff]
  %v4597 = vld [vmem:[%s3 + $0x210] sm:$0xff]
  %v4598 = vld [vmem:[%s3 + $0x220] sm:$0xff]
  %v4599 = vld [vmem:[%s3 + $0x230] sm:$0xff]
  %v4600 = vld [vmem:[%s3 + $0x240] ss:$0 sm:$0xff]
  %v4602 = vsel %vm2545, %v4594, 0
  %v4605 = vsel %vm2545, %v4595, 0
  %4607 = vmatprep.subr.mxu0 0.0
  %4608 = vmatpush1.msra.mxu0 0.0
  %4609 = vmatprep.subr.mxu0 0.0
  %4610 = vmatpush1.msra.mxu0 0.0
  %4611 = vmatprep.subr.mxu0 0.0
  %4612 = vmatpush1.msra.mxu0 0.0
  %4613 = vmatprep.subr.mxu0 0.0
  %4614 = vmatpush1.msra.mxu0 0.0
  %4615 = vmatprep.subr.mxu0 0.0
  %4616 = vmatpush1.msra.mxu0 0.0
  %4617 = vmatprep.subr.mxu0 0.0
  %4618 = vmatpush1.msra.mxu0 0.0
  %4619 = vmatprep.subr.mxu0 0.0
  %4620 = vmatpush1.msra.mxu0 0.0
  %4621 = vmatprep.subr.mxu0 0.0
  %4622 = vmatpush1.msra.mxu0 0.0
  %4623 = vmatprep.subr.mxu0 0.0
  %4624 = vmatpush1.msra.mxu0 0.0
  %4625 = vmatprep.subr.mxu0 0.0
  %4626 = vmatpush1.msra.mxu0 0.0
  %4627 = vmatprep.subr.mxu0 0.0
  %4628 = vmatpush1.msra.mxu0 0.0
  %4629 = vmatprep.subr.mxu0 0.0
  %4630 = vmatpush1.msra.mxu0 0.0
  %4631 = vmatprep.subr.mxu0 0.0
  %4632 = vmatpush1.msra.mxu0 %v4599
  %4633 = vmatprep.subr.mxu0 0.0
  %4634 = vmatpush1.msra.mxu0 %v4598
  %4635 = vmatprep.subr.mxu0 0.0
  %4636 = vmatpush1.msra.mxu0 %v4597
  %4637 = vmatprep.subr.mxu0 0.0
  %4638 = vmatpush1.msra.mxu0 %v4596
  %4639 = vmatprep.subr.mxu0 0.0
  %4640 = vmatpush2.msra.mxu0 0.0
  %4641 = vmatprep.subr.mxu0 0.0
  %4642 = vmatpush2.msra.mxu0 0.0
  %4643 = vmatprep.subr.mxu0 0.0
  %4644 = vmatpush2.msra.mxu0 0.0
  %4645 = vmatprep.subr.mxu0 0.0
  %4646 = vmatpush2.msra.mxu0 0.0
  %4647 = vmatprep.subr.mxu0 0.0
  %4648 = vmatpush2.msra.mxu0 0.0
  %4649 = vmatprep.subr.mxu0 0.0
  %4650 = vmatpush2.msra.mxu0 0.0
  %4651 = vmatprep.subr.mxu0 0.0
  %4652 = vmatpush2.msra.mxu0 0.0
  %4653 = vmatprep.subr.mxu0 0.0
  %4654 = vmatpush2.msra.mxu0 0.0
  %4655 = vmatprep.subr.mxu0 0.0
  %4656 = vmatpush2.msra.mxu0 0.0
  %4657 = vmatprep.subr.mxu0 0.0
  %4658 = vmatpush2.msra.mxu0 0.0
  %4659 = vmatprep.subr.mxu0 0.0
  %4660 = vmatpush2.msra.mxu0 0.0
  %4661 = vmatprep.subr.mxu0 0.0
  %4662 = vmatpush2.msra.mxu0 0.0
  %4663 = vmatprep.subr.mxu0 0.0
  %4664 = vmatpush2.msra.mxu0 0.0
  %4665 = vmatprep.subr.mxu0 0.0
  %4666 = vmatpush2.msra.mxu0 0.0
  %4667 = vmatprep.subr.mxu0 0.0
  %4668 = vmatpush2.msra.mxu0 0.0
  %4669 = vmatprep.subr.mxu0 0.0
  %4670 = vmatpush2.msra.mxu0 0.0
  %4671 = vmatprep.mubr.f32.mxu0 0.0
  %4672 = vmatmul.mubr.f32.gmra.mxu0 %v4602
  %v4673 = vpop.f32.mrf.mxu0
  %v4674 = vadd.f32 %v4600, %v4673
  %v4675 = vpop.f32.mrf.mxu0
  %4676 = vmatprep.mubr.f32.mxu0 0.0
  %4677 = vmatmul.mubr.f32.gmra.mxu0 %v4605
  %v4678 = vpop.f32.mrf.mxu0
  %v4679 = vadd.f32 %v4600, %v4678
  %v4680 = vpop.f32.mrf.mxu0
  %4681 = vdwg.mxu0
  %4682 = vst [vmem:[%s4] sm:$0xff] %v4674
  %4683 = vst [vmem:[%s4 + $0x8] sm:$0xff] %v4679
  // Predicated region
  $region18: #{hgt_model_forward.1} parent=0 // pred_check
    _
  $region19: #{hgt_model_forward.1} parent=0 // pred_check_branch
    %4685 = sbr.rel (0) target = $region21
  $region20: #{hgt_model_forward.1} parent=0 // pred_region
    _
  $region21: #{hgt_model_forward.1} parent=0 // pred_fallthru
    _
  // Predicated region
  $region22: #{hgt_model_forward.1} parent=0 // pred_check
    _
  $region23: #{hgt_model_forward.1} parent=0 // pred_check_branch
    %4687 = sbr.rel (0) target = $region25
  $region24: #{hgt_model_forward.1} parent=0 // pred_region
    _
  $region25: #{hgt_model_forward.1} parent=0 // pred_fallthru
    _

</llo_original>
